<compile_context>
chip_gen: v7x
topology: tpu7x:2x2x1
jax: 0.10.0
libtpu: 0.0.40
codegen_flags: <defaults>
</compile_context>

<pallas_src>
import jax
import jax.numpy as jnp
from jax.experimental import pallas as pl
from jax.experimental.pallas import tpu as pltpu

CLASSES = 10
INPUT_SIZE = 28 * 28          # 784
K_PAD = 896                   # 784 padded up to 7 x 128 lane tiles
PAD = 128                     # lane-dense padded hidden feature width
N_HIDDEN = 7                  # number of (Linear -> BatchNorm1d -> ReLU) blocks
BN_EPS = 1e-5


def _bn_relu(h, gamma, beta, inv_b):
    """Training-mode BatchNorm1d + ReLU with one-pass stats and fused affine.

    h: (B, 128) f32.  gamma/beta: (1, 128) f32.  inv_b: Python float 1/B.
    """
    s1 = jnp.sum(h, axis=0, keepdims=True)            # (1, 128)
    s2 = jnp.sum(h * h, axis=0, keepdims=True)        # (1, 128)
    mean = s1 * inv_b
    var = jnp.maximum(s2 * inv_b - mean * mean, 0.0)   # biased batch variance
    scale = gamma * jax.lax.rsqrt(var + BN_EPS)
    shift = beta - mean * scale
    return jnp.maximum(h * scale + shift, 0.0)         # fused FMA + ReLU
    # TODO(synk): if a bundle dump ever shows the XLU batch-axis reductions
    # binding, compute s1/s2 via a single ones-row MXU matmul instead.


def mlp_kernel(x_ref, w_in_ref, w_hid_ref, w_out_ref, bn_ref, b_out_ref, o_ref):
    batch = x_ref.shape[0]
    inv_b = 1.0 / batch

    # Layer 1 (fc_input): bf16 x bf16 -> f32 accumulate on the MXU.
    # Hidden-layer biases are dropped (they cancel exactly under training BN).
    h = jnp.dot(x_ref[...], w_in_ref[...], preferred_element_type=jnp.float32)
    h = _bn_relu(h, bn_ref[0, 0:1, :], bn_ref[0, 1:2, :], inv_b)

    # Layers 2..7 (fc1..fc6): stacked, zero-padded (128, 128) bf16 weights.
    for i in range(N_HIDDEN - 1):
        h = jnp.dot(h.astype(jnp.bfloat16), w_hid_ref[i],
                    preferred_element_type=jnp.float32)
        h = _bn_relu(h, bn_ref[i + 1, 0:1, :], bn_ref[i + 1, 1:2, :], inv_b)

    # Final Linear (fc_output): lane-dense 128-wide f32 output (cols 10..127 zero).
    o_ref[...] = (
        jnp.dot(h.astype(jnp.bfloat16), w_out_ref[...],
                preferred_element_type=jnp.float32)
        + b_out_ref[...]
    )


def example_neural_net_forward(x, packed_params, *, num_groups=1):
    """x: (B, 784) f32.  packed_params: output of pack_params().

    num_groups > 1 runs independent BN micro-batches as parallel grid steps
    (uses both TensorCores on v7x).  num_groups = 1 reproduces the module's
    single-batch BatchNorm exactly.
    """
    w_in, w_hid, w_out, bn, b_out = packed_params
    batch = x.shape[0]
    assert batch % num_groups == 0, "batch must divide evenly into groups"
    bg = batch // num_groups
    assert bg >= 2, "training-mode BatchNorm needs a per-group batch > 1"
    assert bg % 8 == 0, "per-group batch should be a multiple of 8 (sublane tiles)"

    # Pad input features to a full lane-tile multiple and cast to bf16 for the MXU.
    x_pad = jnp.pad(x, ((0, 0), (0, K_PAD - INPUT_SIZE))).astype(jnp.bfloat16)

    param_bytes = sum(int(p.nbytes) for p in packed_params)
    out_bytes = batch * PAD * 4

    # Generation-aware VMEM budgeting: only raise the scoped limit when the
    # per-grid-step working set actually needs it, and cap at ~72% of the
    # physical VMEM of this chip generation (128 MiB v5e/v6e, 64 MiB v7x).
    try:
        vmem_cap = int(pltpu.get_tpu_info().vmem_capacity_bytes)
    except Exception:  # pragma: no cover - conservative fallback
        vmem_cap = 64 << 20
    step_bytes = (
        int(x_pad.nbytes) // num_groups     # one group's x slab
        + param_bytes                       # all packed params stay resident
        + out_bytes // num_groups           # one group's output slab
        + 4 * bg * PAD * 4                  # live f32 activation headroom
    )
    default_scoped = 16 << 20               # smallest default scoped limit (v5e)
    vmem_limit = None
    if step_bytes > (default_scoped * 3) // 4:
        vmem_limit = min(int(step_bytes * 1.5) + (4 << 20), int(vmem_cap * 0.72))

    compiler_params = pltpu.CompilerParams(
        dimension_semantics=("parallel",),
        vmem_limit_bytes=vmem_limit,
    )

    cost = pl.CostEstimate(
        flops=2 * batch * (K_PAD * PAD + (N_HIDDEN - 1) * PAD * PAD + PAD * PAD),
        transcendentals=N_HIDDEN * PAD * num_groups,            # rsqrt per BN lane
        bytes_accessed=int(x_pad.nbytes) + param_bytes + out_bytes,
    )

    out_padded = pl.pallas_call(
        mlp_kernel,
        out_shape=jax.ShapeDtypeStruct((batch, PAD), jnp.float32),
        grid=(num_groups,),
        in_specs=[
            pl.BlockSpec((bg, K_PAD), lambda g: (g, 0)),                 # x
            pl.BlockSpec((K_PAD, PAD), lambda g: (0, 0)),                # fc_input W
            pl.BlockSpec((N_HIDDEN - 1, PAD, PAD), lambda g: (0, 0, 0)),  # fc1..fc6 W
            pl.BlockSpec((PAD, PAD), lambda g: (0, 0)),                  # fc_output W
            pl.BlockSpec((N_HIDDEN, 2, PAD), lambda g: (0, 0, 0)),       # BN gamma/beta
            pl.BlockSpec((1, PAD), lambda g: (0, 0)),                    # fc_output b
        ],
        out_specs=pl.BlockSpec((bg, PAD), lambda g: (g, 0)),
        compiler_params=compiler_params,
        cost_estimate=cost,
    )(x_pad, w_in, w_hid, w_out, bn, b_out)

    return out_padded[:, :CLASSES]


def init_params(key, layer_sizes):
    """Deterministic synthetic parameters in 'reference' layout.

    Linear weights stored as (in, out); biases/gamma/beta as (1, out). These are
    the semantics-defining f32 parameters (including hidden biases) used by the
    pure-JAX reference; pack_params() converts them to the kernel layout.
    """
    dims = [INPUT_SIZE] + list(layer_sizes) + [CLASSES]
    params = []
    for i in range(N_HIDDEN):
        d_in, d_out = dims[i], dims[i + 1]
        key, kw, kb = jax.random.split(key, 3)
        w = jax.random.normal(kw, (d_in, d_out), jnp.float32) * (1.0 / jnp.sqrt(d_in))
        b = jax.random.normal(kb, (1, d_out), jnp.float32) * 0.01
        gamma = jnp.ones((1, d_out), jnp.float32)
        beta = jnp.zeros((1, d_out), jnp.float32)
        params += [w, b, gamma, beta]
    d_in, d_out = dims[N_HIDDEN], dims[N_HIDDEN + 1]
    key, kw, kb = jax.random.split(key, 3)
    w = jax.random.normal(kw, (d_in, d_out), jnp.float32) * (1.0 / jnp.sqrt(d_in))
    b = jax.random.normal(kb, (1, d_out), jnp.float32) * 0.01
    params += [w, b]
    return params


def pack_params(params, layer_sizes):
    """Pad to 128-lane tiles, drop hidden biases, cast matmul weights to bf16,
    and stack into 5 kernel operands."""
    assert max(layer_sizes) <= PAD, "hidden widths must fit a single 128-lane tile"

    def pad_rc(w, r, c):
        return jnp.pad(w, ((0, r - w.shape[0]), (0, c - w.shape[1])))

    def pad_row(v, n):
        v = v.reshape(-1)
        return jnp.pad(v, (0, n - v.shape[0]))

    # fc_input weight: (784, L1) -> (896, 128) bf16. Hidden bias dropped (cancels
    # exactly under training-mode BN).
    w_in = pad_rc(params[0], K_PAD, PAD).astype(jnp.bfloat16)

    # fc1..fc6 weights: (L_i, L_{i+1}) -> (128, 128) bf16, zero rows/cols, stacked.
    w_hid = jnp.stack(
        [pad_rc(params[4 * i], PAD, PAD) for i in range(1, N_HIDDEN)]
    ).astype(jnp.bfloat16)

    # BN gamma/beta packed (7, 2, 128) f32; padded lanes get gamma=0, beta=0 so the
    # padded activation columns remain exactly zero through every layer.
    bn = jnp.stack(
        [
            jnp.stack(
                [pad_row(params[4 * i + 2], PAD), pad_row(params[4 * i + 3], PAD)]
            )
            for i in range(N_HIDDEN)
        ]
    ).astype(jnp.float32)

    # fc_output: (L7, 10) -> (128, 128) bf16 and bias -> (1, 128) f32; extra columns
    # are zero and sliced off in the wrapper (lane-dense store inside the kernel).
    w_out = pad_rc(params[4 * N_HIDDEN], PAD, PAD).astype(jnp.bfloat16)
    b_out = pad_row(params[4 * N_HIDDEN + 1], PAD).reshape(1, PAD).astype(jnp.float32)

    return w_in, w_hid, w_out, bn, b_out


def reference_forward(x, params):
    """Pure-JAX f32 reference with the original module's semantics (biases
    included, two-pass BN statistics, PyTorch training-mode BatchNorm1d)."""
    h = x
    for layer in range(N_HIDDEN):
        w, b, g, be = params[4 * layer : 4 * layer + 4]
        h = h @ w + b
        mean = jnp.mean(h, axis=0, keepdims=True)
        var = jnp.mean((h - mean) ** 2, axis=0, keepdims=True)
        h = (h - mean) * jax.lax.rsqrt(var + BN_EPS)
        h = jnp.maximum(h * g + be, 0.0)
    w, b = params[4 * N_HIDDEN], params[4 * N_HIDDEN + 1]
    return h @ w + b


if __name__ == "__main__":
    # Hidden widths as in the module constructor; batch=256 keeps the working set
    # ~1 MiB of VMEM while amortizing launch overhead and MXU fill/drain.
    layer_sizes = (128, 96, 64, 64, 48, 32, 32)
    batch = 256

    key = jax.random.PRNGKey(0)
    key, kx = jax.random.split(key)
    x = jax.random.normal(kx, (batch, INPUT_SIZE), jnp.float32)

    params = init_params(key, layer_sizes)
    packed = pack_params(params, layer_sizes)

    out = example_neural_net_forward(x, packed, num_groups=1)
    out = jax.block_until_ready(out)

    ref = reference_forward(x, params)
    assert out.shape == (batch, CLASSES)
    # bf16 matmul operands (f32 accumulate) vs. the f32 reference, plus one-pass
    # variance and exact hidden-bias cancellation -> allow a bf16-scale tolerance.
    assert jnp.allclose(out, ref, atol=5e-2, rtol=5e-2), "mismatch vs pure-JAX reference"

    print("KERNEL_OK")
</pallas_src>

<mosaic_0001>
module attributes {stable_mosaic.version = 11 : i64} {
  func.func @mlp_kernel(%arg0: i32, %arg1: memref<256x896xbf16, #tpu.memory_space<vmem>>, %arg2: memref<896x128xbf16, #tpu.memory_space<vmem>>, %arg3: memref<6x128x128xbf16, #tpu.memory_space<vmem>>, %arg4: memref<128x128xbf16, #tpu.memory_space<vmem>>, %arg5: memref<7x2x128xf32, #tpu.memory_space<vmem>>, %arg6: memref<1x128xf32, #tpu.memory_space<vmem>>, %arg7: memref<256x128xf32, #tpu.memory_space<vmem>>) attributes {dimension_semantics = [#tpu.dimension_semantics<parallel>], iteration_bounds = array<i64: 1>, scalar_prefetch = 0 : i64, scratch_operands = 0 : i64, tpu.core_type = #tpu.core_type<tc>, window_params = [{transform_indices = @transform_0, window_bounds = array<i64: 256, 896>}, {pipeline_mode = #tpu.pipeline_mode<synchronous>, transform_indices = @transform_1, window_bounds = array<i64: 896, 128>}, {pipeline_mode = #tpu.pipeline_mode<synchronous>, transform_indices = @transform_2, window_bounds = array<i64: 6, 128, 128>}, {pipeline_mode = #tpu.pipeline_mode<synchronous>, transform_indices = @transform_3, window_bounds = array<i64: 128, 128>}, {pipeline_mode = #tpu.pipeline_mode<synchronous>, transform_indices = @transform_4, window_bounds = array<i64: 7, 2, 128>}, {pipeline_mode = #tpu.pipeline_mode<synchronous>, transform_indices = @transform_5, window_bounds = array<i64: 1, 128>}, {transform_indices = @transform_6, window_bounds = array<i64: 256, 128>}]} {
    %c0 = arith.constant 0 : index
    %c0_0 = arith.constant 0 : index
    %0 = vector.load %arg1[%c0, %c0_0] : memref<256x896xbf16, #tpu.memory_space<vmem>>, vector<256x896xbf16>
    %c0_1 = arith.constant 0 : index
    %c0_2 = arith.constant 0 : index
    %1 = vector.load %arg2[%c0_1, %c0_2] : memref<896x128xbf16, #tpu.memory_space<vmem>>, vector<896x128xbf16>
    %cst = arith.constant dense<0.000000e+00> : vector<256x128xf32>
    %2 = tpu.matmul %0, %1, %cst {dimension_numbers = #tpu.dot_dimension_numbers<[1], [0], [0], [1], [0, 0, 1, 1], [], []>} : vector<256x896xbf16>, vector<896x128xbf16>, vector<256x128xf32> -> vector<256x128xf32>
    %c0_3 = arith.constant 0 : index
    %c0_4 = arith.constant 0 : index
    %c0_5 = arith.constant 0 : index
    %3 = vector.load %arg5[%c0_3, %c0_4, %c0_5] : memref<7x2x128xf32, #tpu.memory_space<vmem>>, vector<1x1x128xf32>
    %4 = vector.shape_cast %3 : vector<1x1x128xf32> to vector<1x128xf32>
    %c0_6 = arith.constant 0 : index
    %c1 = arith.constant 1 : index
    %c0_7 = arith.constant 0 : index
    %5 = vector.load %arg5[%c0_6, %c1, %c0_7] : memref<7x2x128xf32, #tpu.memory_space<vmem>>, vector<1x1x128xf32>
    %6 = vector.shape_cast %5 : vector<1x1x128xf32> to vector<1x128xf32>
    %cst_8 = arith.constant dense<0.000000e+00> : vector<128xf32>
    %7 = vector.multi_reduction <add>, %2, %cst_8 [0] : vector<256x128xf32> to vector<128xf32>
    %8 = vector.shape_cast %7 : vector<128xf32> to vector<1x128xf32>
    %9 = arith.mulf %2, %2 : vector<256x128xf32>
    %cst_9 = arith.constant dense<0.000000e+00> : vector<128xf32>
    %10 = vector.multi_reduction <add>, %9, %cst_9 [0] : vector<256x128xf32> to vector<128xf32>
    %11 = vector.shape_cast %10 : vector<128xf32> to vector<1x128xf32>
    %cst_10 = arith.constant 3.906250e-03 : f32
    %12 = vector.broadcast %cst_10 : f32 to vector<1x128xf32>
    %13 = arith.mulf %8, %12 : vector<1x128xf32>
    %cst_11 = arith.constant 3.906250e-03 : f32
    %14 = vector.broadcast %cst_11 : f32 to vector<1x128xf32>
    %15 = arith.mulf %11, %14 : vector<1x128xf32>
    %16 = arith.mulf %13, %13 : vector<1x128xf32>
    %17 = arith.subf %15, %16 : vector<1x128xf32>
    %cst_12 = arith.constant 0.000000e+00 : f32
    %18 = vector.broadcast %cst_12 : f32 to vector<1x128xf32>
    %19 = arith.maximumf %17, %18 : vector<1x128xf32>
    %cst_13 = arith.constant 9.99999974E-6 : f32
    %20 = vector.broadcast %cst_13 : f32 to vector<1x128xf32>
    %21 = arith.addf %19, %20 : vector<1x128xf32>
    %22 = math.rsqrt %21 : vector<1x128xf32>
    %23 = arith.mulf %4, %22 : vector<1x128xf32>
    %24 = arith.mulf %13, %23 : vector<1x128xf32>
    %25 = arith.subf %6, %24 : vector<1x128xf32>
    %26 = vector.broadcast %23 : vector<1x128xf32> to vector<256x128xf32>
    %27 = arith.mulf %2, %26 : vector<256x128xf32>
    %28 = vector.broadcast %25 : vector<1x128xf32> to vector<256x128xf32>
    %29 = arith.addf %27, %28 : vector<256x128xf32>
    %cst_14 = arith.constant 0.000000e+00 : f32
    %30 = vector.broadcast %cst_14 : f32 to vector<256x128xf32>
    %31 = arith.maximumf %29, %30 : vector<256x128xf32>
    %32 = arith.truncf %31 : vector<256x128xf32> to vector<256x128xbf16>
    %c0_15 = arith.constant 0 : index
    %c0_16 = arith.constant 0 : index
    %c0_17 = arith.constant 0 : index
    %33 = vector.load %arg3[%c0_15, %c0_16, %c0_17] : memref<6x128x128xbf16, #tpu.memory_space<vmem>>, vector<1x128x128xbf16>
    %34 = vector.shape_cast %33 : vector<1x128x128xbf16> to vector<128x128xbf16>
    %cst_18 = arith.constant dense<0.000000e+00> : vector<256x128xf32>
    %35 = tpu.matmul %32, %34, %cst_18 {dimension_numbers = #tpu.dot_dimension_numbers<[1], [0], [0], [1], [0, 0, 1, 1], [], []>} : vector<256x128xbf16>, vector<128x128xbf16>, vector<256x128xf32> -> vector<256x128xf32>
    %c1_19 = arith.constant 1 : index
    %c0_20 = arith.constant 0 : index
    %c0_21 = arith.constant 0 : index
    %36 = vector.load %arg5[%c1_19, %c0_20, %c0_21] : memref<7x2x128xf32, #tpu.memory_space<vmem>>, vector<1x1x128xf32>
    %37 = vector.shape_cast %36 : vector<1x1x128xf32> to vector<1x128xf32>
    %c1_22 = arith.constant 1 : index
    %c1_23 = arith.constant 1 : index
    %c0_24 = arith.constant 0 : index
    %38 = vector.load %arg5[%c1_22, %c1_23, %c0_24] : memref<7x2x128xf32, #tpu.memory_space<vmem>>, vector<1x1x128xf32>
    %39 = vector.shape_cast %38 : vector<1x1x128xf32> to vector<1x128xf32>
    %cst_25 = arith.constant dense<0.000000e+00> : vector<128xf32>
    %40 = vector.multi_reduction <add>, %35, %cst_25 [0] : vector<256x128xf32> to vector<128xf32>
    %41 = vector.shape_cast %40 : vector<128xf32> to vector<1x128xf32>
    %42 = arith.mulf %35, %35 : vector<256x128xf32>
    %cst_26 = arith.constant dense<0.000000e+00> : vector<128xf32>
    %43 = vector.multi_reduction <add>, %42, %cst_26 [0] : vector<256x128xf32> to vector<128xf32>
    %44 = vector.shape_cast %43 : vector<128xf32> to vector<1x128xf32>
    %cst_27 = arith.constant 3.906250e-03 : f32
    %45 = vector.broadcast %cst_27 : f32 to vector<1x128xf32>
    %46 = arith.mulf %41, %45 : vector<1x128xf32>
    %cst_28 = arith.constant 3.906250e-03 : f32
    %47 = vector.broadcast %cst_28 : f32 to vector<1x128xf32>
    %48 = arith.mulf %44, %47 : vector<1x128xf32>
    %49 = arith.mulf %46, %46 : vector<1x128xf32>
    %50 = arith.subf %48, %49 : vector<1x128xf32>
    %cst_29 = arith.constant 0.000000e+00 : f32
    %51 = vector.broadcast %cst_29 : f32 to vector<1x128xf32>
    %52 = arith.maximumf %50, %51 : vector<1x128xf32>
    %cst_30 = arith.constant 9.99999974E-6 : f32
    %53 = vector.broadcast %cst_30 : f32 to vector<1x128xf32>
    %54 = arith.addf %52, %53 : vector<1x128xf32>
    %55 = math.rsqrt %54 : vector<1x128xf32>
    %56 = arith.mulf %37, %55 : vector<1x128xf32>
    %57 = arith.mulf %46, %56 : vector<1x128xf32>
    %58 = arith.subf %39, %57 : vector<1x128xf32>
    %59 = vector.broadcast %56 : vector<1x128xf32> to vector<256x128xf32>
    %60 = arith.mulf %35, %59 : vector<256x128xf32>
    %61 = vector.broadcast %58 : vector<1x128xf32> to vector<256x128xf32>
    %62 = arith.addf %60, %61 : vector<256x128xf32>
    %cst_31 = arith.constant 0.000000e+00 : f32
    %63 = vector.broadcast %cst_31 : f32 to vector<256x128xf32>
    %64 = arith.maximumf %62, %63 : vector<256x128xf32>
    %65 = arith.truncf %64 : vector<256x128xf32> to vector<256x128xbf16>
    %c1_32 = arith.constant 1 : index
    %c0_33 = arith.constant 0 : index
    %c0_34 = arith.constant 0 : index
    %66 = vector.load %arg3[%c1_32, %c0_33, %c0_34] : memref<6x128x128xbf16, #tpu.memory_space<vmem>>, vector<1x128x128xbf16>
    %67 = vector.shape_cast %66 : vector<1x128x128xbf16> to vector<128x128xbf16>
    %cst_35 = arith.constant dense<0.000000e+00> : vector<256x128xf32>
    %68 = tpu.matmul %65, %67, %cst_35 {dimension_numbers = #tpu.dot_dimension_numbers<[1], [0], [0], [1], [0, 0, 1, 1], [], []>} : vector<256x128xbf16>, vector<128x128xbf16>, vector<256x128xf32> -> vector<256x128xf32>
    %c2 = arith.constant 2 : index
    %c0_36 = arith.constant 0 : index
    %c0_37 = arith.constant 0 : index
    %69 = vector.load %arg5[%c2, %c0_36, %c0_37] : memref<7x2x128xf32, #tpu.memory_space<vmem>>, vector<1x1x128xf32>
    %70 = vector.shape_cast %69 : vector<1x1x128xf32> to vector<1x128xf32>
    %c2_38 = arith.constant 2 : index
    %c1_39 = arith.constant 1 : index
    %c0_40 = arith.constant 0 : index
    %71 = vector.load %arg5[%c2_38, %c1_39, %c0_40] : memref<7x2x128xf32, #tpu.memory_space<vmem>>, vector<1x1x128xf32>
    %72 = vector.shape_cast %71 : vector<1x1x128xf32> to vector<1x128xf32>
    %cst_41 = arith.constant dense<0.000000e+00> : vector<128xf32>
    %73 = vector.multi_reduction <add>, %68, %cst_41 [0] : vector<256x128xf32> to vector<128xf32>
    %74 = vector.shape_cast %73 : vector<128xf32> to vector<1x128xf32>
    %75 = arith.mulf %68, %68 : vector<256x128xf32>
    %cst_42 = arith.constant dense<0.000000e+00> : vector<128xf32>
    %76 = vector.multi_reduction <add>, %75, %cst_42 [0] : vector<256x128xf32> to vector<128xf32>
    %77 = vector.shape_cast %76 : vector<128xf32> to vector<1x128xf32>
    %cst_43 = arith.constant 3.906250e-03 : f32
    %78 = vector.broadcast %cst_43 : f32 to vector<1x128xf32>
    %79 = arith.mulf %74, %78 : vector<1x128xf32>
    %cst_44 = arith.constant 3.906250e-03 : f32
    %80 = vector.broadcast %cst_44 : f32 to vector<1x128xf32>
    %81 = arith.mulf %77, %80 : vector<1x128xf32>
    %82 = arith.mulf %79, %79 : vector<1x128xf32>
    %83 = arith.subf %81, %82 : vector<1x128xf32>
    %cst_45 = arith.constant 0.000000e+00 : f32
    %84 = vector.broadcast %cst_45 : f32 to vector<1x128xf32>
    %85 = arith.maximumf %83, %84 : vector<1x128xf32>
    %cst_46 = arith.constant 9.99999974E-6 : f32
    %86 = vector.broadcast %cst_46 : f32 to vector<1x128xf32>
    %87 = arith.addf %85, %86 : vector<1x128xf32>
    %88 = math.rsqrt %87 : vector<1x128xf32>
    %89 = arith.mulf %70, %88 : vector<1x128xf32>
    %90 = arith.mulf %79, %89 : vector<1x128xf32>
    %91 = arith.subf %72, %90 : vector<1x128xf32>
    %92 = vector.broadcast %89 : vector<1x128xf32> to vector<256x128xf32>
    %93 = arith.mulf %68, %92 : vector<256x128xf32>
    %94 = vector.broadcast %91 : vector<1x128xf32> to vector<256x128xf32>
    %95 = arith.addf %93, %94 : vector<256x128xf32>
    %cst_47 = arith.constant 0.000000e+00 : f32
    %96 = vector.broadcast %cst_47 : f32 to vector<256x128xf32>
    %97 = arith.maximumf %95, %96 : vector<256x128xf32>
    %98 = arith.truncf %97 : vector<256x128xf32> to vector<256x128xbf16>
    %c2_48 = arith.constant 2 : index
    %c0_49 = arith.constant 0 : index
    %c0_50 = arith.constant 0 : index
    %99 = vector.load %arg3[%c2_48, %c0_49, %c0_50] : memref<6x128x128xbf16, #tpu.memory_space<vmem>>, vector<1x128x128xbf16>
    %100 = vector.shape_cast %99 : vector<1x128x128xbf16> to vector<128x128xbf16>
    %cst_51 = arith.constant dense<0.000000e+00> : vector<256x128xf32>
    %101 = tpu.matmul %98, %100, %cst_51 {dimension_numbers = #tpu.dot_dimension_numbers<[1], [0], [0], [1], [0, 0, 1, 1], [], []>} : vector<256x128xbf16>, vector<128x128xbf16>, vector<256x128xf32> -> vector<256x128xf32>
    %c3 = arith.constant 3 : index
    %c0_52 = arith.constant 0 : index
    %c0_53 = arith.constant 0 : index
    %102 = vector.load %arg5[%c3, %c0_52, %c0_53] : memref<7x2x128xf32, #tpu.memory_space<vmem>>, vector<1x1x128xf32>
    %103 = vector.shape_cast %102 : vector<1x1x128xf32> to vector<1x128xf32>
    %c3_54 = arith.constant 3 : index
    %c1_55 = arith.constant 1 : index
    %c0_56 = arith.constant 0 : index
    %104 = vector.load %arg5[%c3_54, %c1_55, %c0_56] : memref<7x2x128xf32, #tpu.memory_space<vmem>>, vector<1x1x128xf32>
    %105 = vector.shape_cast %104 : vector<1x1x128xf32> to vector<1x128xf32>
    %cst_57 = arith.constant dense<0.000000e+00> : vector<128xf32>
    %106 = vector.multi_reduction <add>, %101, %cst_57 [0] : vector<256x128xf32> to vector<128xf32>
    %107 = vector.shape_cast %106 : vector<128xf32> to vector<1x128xf32>
    %108 = arith.mulf %101, %101 : vector<256x128xf32>
    %cst_58 = arith.constant dense<0.000000e+00> : vector<128xf32>
    %109 = vector.multi_reduction <add>, %108, %cst_58 [0] : vector<256x128xf32> to vector<128xf32>
    %110 = vector.shape_cast %109 : vector<128xf32> to vector<1x128xf32>
    %cst_59 = arith.constant 3.906250e-03 : f32
    %111 = vector.broadcast %cst_59 : f32 to vector<1x128xf32>
    %112 = arith.mulf %107, %111 : vector<1x128xf32>
    %cst_60 = arith.constant 3.906250e-03 : f32
    %113 = vector.broadcast %cst_60 : f32 to vector<1x128xf32>
    %114 = arith.mulf %110, %113 : vector<1x128xf32>
    %115 = arith.mulf %112, %112 : vector<1x128xf32>
    %116 = arith.subf %114, %115 : vector<1x128xf32>
    %cst_61 = arith.constant 0.000000e+00 : f32
    %117 = vector.broadcast %cst_61 : f32 to vector<1x128xf32>
    %118 = arith.maximumf %116, %117 : vector<1x128xf32>
    %cst_62 = arith.constant 9.99999974E-6 : f32
    %119 = vector.broadcast %cst_62 : f32 to vector<1x128xf32>
    %120 = arith.addf %118, %119 : vector<1x128xf32>
    %121 = math.rsqrt %120 : vector<1x128xf32>
    %122 = arith.mulf %103, %121 : vector<1x128xf32>
    %123 = arith.mulf %112, %122 : vector<1x128xf32>
    %124 = arith.subf %105, %123 : vector<1x128xf32>
    %125 = vector.broadcast %122 : vector<1x128xf32> to vector<256x128xf32>
    %126 = arith.mulf %101, %125 : vector<256x128xf32>
    %127 = vector.broadcast %124 : vector<1x128xf32> to vector<256x128xf32>
    %128 = arith.addf %126, %127 : vector<256x128xf32>
    %cst_63 = arith.constant 0.000000e+00 : f32
    %129 = vector.broadcast %cst_63 : f32 to vector<256x128xf32>
    %130 = arith.maximumf %128, %129 : vector<256x128xf32>
    %131 = arith.truncf %130 : vector<256x128xf32> to vector<256x128xbf16>
    %c3_64 = arith.constant 3 : index
    %c0_65 = arith.constant 0 : index
    %c0_66 = arith.constant 0 : index
    %132 = vector.load %arg3[%c3_64, %c0_65, %c0_66] : memref<6x128x128xbf16, #tpu.memory_space<vmem>>, vector<1x128x128xbf16>
    %133 = vector.shape_cast %132 : vector<1x128x128xbf16> to vector<128x128xbf16>
    %cst_67 = arith.constant dense<0.000000e+00> : vector<256x128xf32>
    %134 = tpu.matmul %131, %133, %cst_67 {dimension_numbers = #tpu.dot_dimension_numbers<[1], [0], [0], [1], [0, 0, 1, 1], [], []>} : vector<256x128xbf16>, vector<128x128xbf16>, vector<256x128xf32> -> vector<256x128xf32>
    %c4 = arith.constant 4 : index
    %c0_68 = arith.constant 0 : index
    %c0_69 = arith.constant 0 : index
    %135 = vector.load %arg5[%c4, %c0_68, %c0_69] : memref<7x2x128xf32, #tpu.memory_space<vmem>>, vector<1x1x128xf32>
    %136 = vector.shape_cast %135 : vector<1x1x128xf32> to vector<1x128xf32>
    %c4_70 = arith.constant 4 : index
    %c1_71 = arith.constant 1 : index
    %c0_72 = arith.constant 0 : index
    %137 = vector.load %arg5[%c4_70, %c1_71, %c0_72] : memref<7x2x128xf32, #tpu.memory_space<vmem>>, vector<1x1x128xf32>
    %138 = vector.shape_cast %137 : vector<1x1x128xf32> to vector<1x128xf32>
    %cst_73 = arith.constant dense<0.000000e+00> : vector<128xf32>
    %139 = vector.multi_reduction <add>, %134, %cst_73 [0] : vector<256x128xf32> to vector<128xf32>
    %140 = vector.shape_cast %139 : vector<128xf32> to vector<1x128xf32>
    %141 = arith.mulf %134, %134 : vector<256x128xf32>
    %cst_74 = arith.constant dense<0.000000e+00> : vector<128xf32>
    %142 = vector.multi_reduction <add>, %141, %cst_74 [0] : vector<256x128xf32> to vector<128xf32>
    %143 = vector.shape_cast %142 : vector<128xf32> to vector<1x128xf32>
    %cst_75 = arith.constant 3.906250e-03 : f32
    %144 = vector.broadcast %cst_75 : f32 to vector<1x128xf32>
    %145 = arith.mulf %140, %144 : vector<1x128xf32>
    %cst_76 = arith.constant 3.906250e-03 : f32
    %146 = vector.broadcast %cst_76 : f32 to vector<1x128xf32>
    %147 = arith.mulf %143, %146 : vector<1x128xf32>
    %148 = arith.mulf %145, %145 : vector<1x128xf32>
    %149 = arith.subf %147, %148 : vector<1x128xf32>
    %cst_77 = arith.constant 0.000000e+00 : f32
    %150 = vector.broadcast %cst_77 : f32 to vector<1x128xf32>
    %151 = arith.maximumf %149, %150 : vector<1x128xf32>
    %cst_78 = arith.constant 9.99999974E-6 : f32
    %152 = vector.broadcast %cst_78 : f32 to vector<1x128xf32>
    %153 = arith.addf %151, %152 : vector<1x128xf32>
    %154 = math.rsqrt %153 : vector<1x128xf32>
    %155 = arith.mulf %136, %154 : vector<1x128xf32>
    %156 = arith.mulf %145, %155 : vector<1x128xf32>
    %157 = arith.subf %138, %156 : vector<1x128xf32>
    %158 = vector.broadcast %155 : vector<1x128xf32> to vector<256x128xf32>
    %159 = arith.mulf %134, %158 : vector<256x128xf32>
    %160 = vector.broadcast %157 : vector<1x128xf32> to vector<256x128xf32>
    %161 = arith.addf %159, %160 : vector<256x128xf32>
    %cst_79 = arith.constant 0.000000e+00 : f32
    %162 = vector.broadcast %cst_79 : f32 to vector<256x128xf32>
    %163 = arith.maximumf %161, %162 : vector<256x128xf32>
    %164 = arith.truncf %163 : vector<256x128xf32> to vector<256x128xbf16>
    %c4_80 = arith.constant 4 : index
    %c0_81 = arith.constant 0 : index
    %c0_82 = arith.constant 0 : index
    %165 = vector.load %arg3[%c4_80, %c0_81, %c0_82] : memref<6x128x128xbf16, #tpu.memory_space<vmem>>, vector<1x128x128xbf16>
    %166 = vector.shape_cast %165 : vector<1x128x128xbf16> to vector<128x128xbf16>
    %cst_83 = arith.constant dense<0.000000e+00> : vector<256x128xf32>
    %167 = tpu.matmul %164, %166, %cst_83 {dimension_numbers = #tpu.dot_dimension_numbers<[1], [0], [0], [1], [0, 0, 1, 1], [], []>} : vector<256x128xbf16>, vector<128x128xbf16>, vector<256x128xf32> -> vector<256x128xf32>
    %c5 = arith.constant 5 : index
    %c0_84 = arith.constant 0 : index
    %c0_85 = arith.constant 0 : index
    %168 = vector.load %arg5[%c5, %c0_84, %c0_85] : memref<7x2x128xf32, #tpu.memory_space<vmem>>, vector<1x1x128xf32>
    %169 = vector.shape_cast %168 : vector<1x1x128xf32> to vector<1x128xf32>
    %c5_86 = arith.constant 5 : index
    %c1_87 = arith.constant 1 : index
    %c0_88 = arith.constant 0 : index
    %170 = vector.load %arg5[%c5_86, %c1_87, %c0_88] : memref<7x2x128xf32, #tpu.memory_space<vmem>>, vector<1x1x128xf32>
    %171 = vector.shape_cast %170 : vector<1x1x128xf32> to vector<1x128xf32>
    %cst_89 = arith.constant dense<0.000000e+00> : vector<128xf32>
    %172 = vector.multi_reduction <add>, %167, %cst_89 [0] : vector<256x128xf32> to vector<128xf32>
    %173 = vector.shape_cast %172 : vector<128xf32> to vector<1x128xf32>
    %174 = arith.mulf %167, %167 : vector<256x128xf32>
    %cst_90 = arith.constant dense<0.000000e+00> : vector<128xf32>
    %175 = vector.multi_reduction <add>, %174, %cst_90 [0] : vector<256x128xf32> to vector<128xf32>
    %176 = vector.shape_cast %175 : vector<128xf32> to vector<1x128xf32>
    %cst_91 = arith.constant 3.906250e-03 : f32
    %177 = vector.broadcast %cst_91 : f32 to vector<1x128xf32>
    %178 = arith.mulf %173, %177 : vector<1x128xf32>
    %cst_92 = arith.constant 3.906250e-03 : f32
    %179 = vector.broadcast %cst_92 : f32 to vector<1x128xf32>
    %180 = arith.mulf %176, %179 : vector<1x128xf32>
    %181 = arith.mulf %178, %178 : vector<1x128xf32>
    %182 = arith.subf %180, %181 : vector<1x128xf32>
    %cst_93 = arith.constant 0.000000e+00 : f32
    %183 = vector.broadcast %cst_93 : f32 to vector<1x128xf32>
    %184 = arith.maximumf %182, %183 : vector<1x128xf32>
    %cst_94 = arith.constant 9.99999974E-6 : f32
    %185 = vector.broadcast %cst_94 : f32 to vector<1x128xf32>
    %186 = arith.addf %184, %185 : vector<1x128xf32>
    %187 = math.rsqrt %186 : vector<1x128xf32>
    %188 = arith.mulf %169, %187 : vector<1x128xf32>
    %189 = arith.mulf %178, %188 : vector<1x128xf32>
    %190 = arith.subf %171, %189 : vector<1x128xf32>
    %191 = vector.broadcast %188 : vector<1x128xf32> to vector<256x128xf32>
    %192 = arith.mulf %167, %191 : vector<256x128xf32>
    %193 = vector.broadcast %190 : vector<1x128xf32> to vector<256x128xf32>
    %194 = arith.addf %192, %193 : vector<256x128xf32>
    %cst_95 = arith.constant 0.000000e+00 : f32
    %195 = vector.broadcast %cst_95 : f32 to vector<256x128xf32>
    %196 = arith.maximumf %194, %195 : vector<256x128xf32>
    %197 = arith.truncf %196 : vector<256x128xf32> to vector<256x128xbf16>
    %c5_96 = arith.constant 5 : index
    %c0_97 = arith.constant 0 : index
    %c0_98 = arith.constant 0 : index
    %198 = vector.load %arg3[%c5_96, %c0_97, %c0_98] : memref<6x128x128xbf16, #tpu.memory_space<vmem>>, vector<1x128x128xbf16>
    %199 = vector.shape_cast %198 : vector<1x128x128xbf16> to vector<128x128xbf16>
    %cst_99 = arith.constant dense<0.000000e+00> : vector<256x128xf32>
    %200 = tpu.matmul %197, %199, %cst_99 {dimension_numbers = #tpu.dot_dimension_numbers<[1], [0], [0], [1], [0, 0, 1, 1], [], []>} : vector<256x128xbf16>, vector<128x128xbf16>, vector<256x128xf32> -> vector<256x128xf32>
    %c6 = arith.constant 6 : index
    %c0_100 = arith.constant 0 : index
    %c0_101 = arith.constant 0 : index
    %201 = vector.load %arg5[%c6, %c0_100, %c0_101] : memref<7x2x128xf32, #tpu.memory_space<vmem>>, vector<1x1x128xf32>
    %202 = vector.shape_cast %201 : vector<1x1x128xf32> to vector<1x128xf32>
    %c6_102 = arith.constant 6 : index
    %c1_103 = arith.constant 1 : index
    %c0_104 = arith.constant 0 : index
    %203 = vector.load %arg5[%c6_102, %c1_103, %c0_104] : memref<7x2x128xf32, #tpu.memory_space<vmem>>, vector<1x1x128xf32>
    %204 = vector.shape_cast %203 : vector<1x1x128xf32> to vector<1x128xf32>
    %cst_105 = arith.constant dense<0.000000e+00> : vector<128xf32>
    %205 = vector.multi_reduction <add>, %200, %cst_105 [0] : vector<256x128xf32> to vector<128xf32>
    %206 = vector.shape_cast %205 : vector<128xf32> to vector<1x128xf32>
    %207 = arith.mulf %200, %200 : vector<256x128xf32>
    %cst_106 = arith.constant dense<0.000000e+00> : vector<128xf32>
    %208 = vector.multi_reduction <add>, %207, %cst_106 [0] : vector<256x128xf32> to vector<128xf32>
    %209 = vector.shape_cast %208 : vector<128xf32> to vector<1x128xf32>
    %cst_107 = arith.constant 3.906250e-03 : f32
    %210 = vector.broadcast %cst_107 : f32 to vector<1x128xf32>
    %211 = arith.mulf %206, %210 : vector<1x128xf32>
    %cst_108 = arith.constant 3.906250e-03 : f32
    %212 = vector.broadcast %cst_108 : f32 to vector<1x128xf32>
    %213 = arith.mulf %209, %212 : vector<1x128xf32>
    %214 = arith.mulf %211, %211 : vector<1x128xf32>
    %215 = arith.subf %213, %214 : vector<1x128xf32>
    %cst_109 = arith.constant 0.000000e+00 : f32
    %216 = vector.broadcast %cst_109 : f32 to vector<1x128xf32>
    %217 = arith.maximumf %215, %216 : vector<1x128xf32>
    %cst_110 = arith.constant 9.99999974E-6 : f32
    %218 = vector.broadcast %cst_110 : f32 to vector<1x128xf32>
    %219 = arith.addf %217, %218 : vector<1x128xf32>
    %220 = math.rsqrt %219 : vector<1x128xf32>
    %221 = arith.mulf %202, %220 : vector<1x128xf32>
    %222 = arith.mulf %211, %221 : vector<1x128xf32>
    %223 = arith.subf %204, %222 : vector<1x128xf32>
    %224 = vector.broadcast %221 : vector<1x128xf32> to vector<256x128xf32>
    %225 = arith.mulf %200, %224 : vector<256x128xf32>
    %226 = vector.broadcast %223 : vector<1x128xf32> to vector<256x128xf32>
    %227 = arith.addf %225, %226 : vector<256x128xf32>
    %cst_111 = arith.constant 0.000000e+00 : f32
    %228 = vector.broadcast %cst_111 : f32 to vector<256x128xf32>
    %229 = arith.maximumf %227, %228 : vector<256x128xf32>
    %230 = arith.truncf %229 : vector<256x128xf32> to vector<256x128xbf16>
    %c0_112 = arith.constant 0 : index
    %c0_113 = arith.constant 0 : index
    %231 = vector.load %arg4[%c0_112, %c0_113] : memref<128x128xbf16, #tpu.memory_space<vmem>>, vector<128x128xbf16>
    %cst_114 = arith.constant dense<0.000000e+00> : vector<256x128xf32>
    %232 = tpu.matmul %230, %231, %cst_114 {dimension_numbers = #tpu.dot_dimension_numbers<[1], [0], [0], [1], [0, 0, 1, 1], [], []>} : vector<256x128xbf16>, vector<128x128xbf16>, vector<256x128xf32> -> vector<256x128xf32>
    %c0_115 = arith.constant 0 : index
    %c0_116 = arith.constant 0 : index
    %233 = vector.load %arg6[%c0_115, %c0_116] : memref<1x128xf32, #tpu.memory_space<vmem>>, vector<1x128xf32>
    %234 = vector.broadcast %233 : vector<1x128xf32> to vector<256x128xf32>
    %235 = arith.addf %232, %234 : vector<256x128xf32>
    %c0_117 = arith.constant 0 : index
    %c0_118 = arith.constant 0 : index
    %236 = vector.load %arg7[%c0_117, %c0_118] : memref<256x128xf32, #tpu.memory_space<vmem>>, vector<256x128xf32>
    tpu.vector_store %arg7[%c0_117, %c0_118], %235 {strides = array<i32>} : memref<256x128xf32, #tpu.memory_space<vmem>>, vector<256x128xf32>,
    return
  }
  func.func @transform_0(%arg0: i32) -> (i32, i32) {
    %c0_i32 = arith.constant 0 : i32
    %c0_i32_0 = arith.constant 0 : i32
    return %arg0, %c0_i32 : i32, i32
  }
  func.func @transform_1(%arg0: i32) -> (i32, i32) {
    %c0_i32 = arith.constant 0 : i32
    %c0_i32_0 = arith.constant 0 : i32
    %c0_i32_1 = arith.constant 0 : i32
    return %c0_i32, %c0_i32_0 : i32, i32
  }
  func.func @transform_2(%arg0: i32) -> (i32, i32, i32) {
    %c0_i32 = arith.constant 0 : i32
    %c0_i32_0 = arith.constant 0 : i32
    %c0_i32_1 = arith.constant 0 : i32
    %c0_i32_2 = arith.constant 0 : i32
    return %c0_i32, %c0_i32_0, %c0_i32_1 : i32, i32, i32
  }
  func.func @transform_3(%arg0: i32) -> (i32, i32) {
    %c0_i32 = arith.constant 0 : i32
    %c0_i32_0 = arith.constant 0 : i32
    %c0_i32_1 = arith.constant 0 : i32
    return %c0_i32, %c0_i32_0 : i32, i32
  }
  func.func @transform_4(%arg0: i32) -> (i32, i32, i32) {
    %c0_i32 = arith.constant 0 : i32
    %c0_i32_0 = arith.constant 0 : i32
    %c0_i32_1 = arith.constant 0 : i32
    %c0_i32_2 = arith.constant 0 : i32
    return %c0_i32, %c0_i32_0, %c0_i32_1 : i32, i32, i32
  }
  func.func @transform_5(%arg0: i32) -> (i32, i32) {
    %c0_i32 = arith.constant 0 : i32
    %c0_i32_0 = arith.constant 0 : i32
    %c0_i32_1 = arith.constant 0 : i32
    return %c0_i32, %c0_i32_0 : i32, i32
  }
  func.func @transform_6(%arg0: i32) -> (i32, i32) {
    %c0_i32 = arith.constant 0 : i32
    %c0_i32_0 = arith.constant 0 : i32
    return %arg0, %c0_i32 : i32, i32
  }
}

</mosaic_0001>

<llo_original>
// kernel: tpu_custom_call.1
$region0: #{tpu_custom_call.1}
  #allocation0 [shape = 'u32[]', space=smem, size = 0x4, offset = 0x4, fixed_abs, tag = 'smem constant byte address 0x4 - core index']
  #allocation1 [shape = 'u32[144,128]{1,0:T(1,128)}', space=vmem, size = 0x12000, scoped, tag = 'internal scratch']
  %s0 = inlined_call_operand.hbm [shape: bf16[256,896], index: 0, kind: input, shape index: {}]
  %s1 = inlined_call_operand.hbm [shape: bf16[896,128], index: 1, kind: input, shape index: {}]
  %s2 = inlined_call_operand.hbm [shape: bf16[6,128,128], index: 2, kind: input, shape index: {}]
  %s3 = inlined_call_operand.hbm [shape: bf16[128,128], index: 3, kind: input, shape index: {}]
  %s4 = inlined_call_operand.vmem [shape: f32[7,2,128], index: 4, kind: input, shape index: {}]
  %s5 = inlined_call_operand.vmem [shape: f32[1,128], index: 5, kind: input, shape index: {}]
  %s6 = inlined_call_operand.hbm [shape: f32[256,128], index: 6, kind: output, shape index: {}]
  %s7 = sld [smem:[#allocation0]]
  $region50: #{tpu_custom_call.1} parent=0
    _
  %s9 = ssub.s32 1, %s7
  %s10 = scalar_select 0, %s9, %s7
  $region1: #{tpu_custom_call.1} parent=0
    #allocation2 [shape = 'u8[458752]{0}', space=vmem, size = 0x70000, scoped, tag = 'input window, operand 0, single buffered']
    #allocation3 [shape = 's32[1]{0}', space=sflag, size = 0x4, scoped, tag = 'scoped memory for tpu_custom_call.1']
    #allocation4 [shape = 's32[1]{0}', space=sflag, size = 0x4, scoped, tag = 'scoped memory for tpu_custom_call.1']
    #allocation5 [shape = 'u8[229376]{0}', space=vmem, size = 0x38000, scoped, tag = 'input window, operand 1, single buffered']
    #allocation6 [shape = 's32[1]{0}', space=sflag, size = 0x4, scoped, tag = 'scoped memory for tpu_custom_call.1']
    #allocation7 [shape = 'u8[196608]{0}', space=vmem, size = 0x30000, scoped, tag = 'input window, operand 2, single buffered']
    #allocation8 [shape = 'u8[32768]{0}', space=vmem, size = 0x8000, scoped, tag = 'input window, operand 3, single buffered']
    #allocation9 [shape = 's32[1]{0}', space=sflag, size = 0x4, scoped, tag = 'scoped memory for tpu_custom_call.1']
    #allocation10 [shape = 'u8[131072]{0}', space=vmem, size = 0x20000, scoped, tag = 'output window, operand 0, single buffered']
    %11 = vsyncpa [#allocation3], 0
    %12 = vsyncpa [#allocation6], 0
    %13 = vsyncpa [#allocation9], 0
    %14 = vsyncpa [#allocation4], 0
    // Predicated region
    $region2: #{tpu_custom_call.1} parent=1 // pred_check
      _
    $region3: #{tpu_custom_call.1} parent=1 // pred_check_branch
      %16 = sbr.rel (0) target = $region5
    $region4: #{tpu_custom_call.1} parent=1 // pred_region
      %s18 = ssub.s32 14336, 14336
      %19 = vsyncadd [#allocation3], %s18
      %s20 = sshll.u32 [#allocation2], 4
      %s21 = int_to_ptr.vmem [resolvable:$true] %s20
      %26 = dma.hbm_to_vmem [thread:$0]  %s0, 14336, %s21, [#allocation3], 448, 448, 28
    $region5: #{tpu_custom_call.1} parent=1 // pred_fallthru
      _
    // Predicated region
    $region6: #{tpu_custom_call.1} parent=1 // pred_check
      _
    $region7: #{tpu_custom_call.1} parent=1 // pred_check_branch
      %28 = sbr.rel (0) target = $region9
    $region8: #{tpu_custom_call.1} parent=1 // pred_region
      %s30 = ssub.s32 7168, 7168
      %31 = vsyncadd [#allocation6], %s30
      %s32 = sshll.u32 [#allocation5], 4
      %s33 = int_to_ptr.vmem [resolvable:$true] %s32
      %38 = dma.hbm_to_vmem [thread:$0]  %s1, 7168, %s33, [#allocation6], 64, 64, 4
    $region9: #{tpu_custom_call.1} parent=1 // pred_fallthru
      _
    // Predicated region
    $region10: #{tpu_custom_call.1} parent=1 // pred_check
      _
    $region11: #{tpu_custom_call.1} parent=1 // pred_check_branch
      %40 = sbr.rel (0) target = $region13
    $region12: #{tpu_custom_call.1} parent=1 // pred_region
      %s42 = ssub.s32 6144, 6144
      %43 = vsyncadd [#allocation6], %s42
      %s44 = sshll.u32 [#allocation7], 4
      %s45 = int_to_ptr.vmem [resolvable:$true] %s44
      %50 = dma.hbm_to_vmem [thread:$0]  %s2, 6144, %s45, [#allocation6], 64, 64, 4
    $region13: #{tpu_custom_call.1} parent=1 // pred_fallthru
      _
    // Predicated region
    $region14: #{tpu_custom_call.1} parent=1 // pred_check
      _
    $region15: #{tpu_custom_call.1} parent=1 // pred_check_branch
      %52 = sbr.rel (0) target = $region17
    $region16: #{tpu_custom_call.1} parent=1 // pred_region
      %s54 = ssub.s32 1024, 1024
      %55 = vsyncadd [#allocation9], %s54
      %s56 = sshll.u32 [#allocation8], 4
      %s57 = int_to_ptr.vmem [resolvable:$true] %s56
      %62 = dma.hbm_to_vmem [thread:$0]  %s3, 1024, %s57, [#allocation9], 64, 64, 4
    $region17: #{tpu_custom_call.1} parent=1 // pred_fallthru
      _
    // Predicated region
    $region18: #{tpu_custom_call.1} parent=1 // pred_check
      _
    $region19: #{tpu_custom_call.1} parent=1 // pred_check_branch
      %64 = sbr.rel (0) target = $region21
    $region20: #{tpu_custom_call.1} parent=1 // pred_region
      _
    $region21: #{tpu_custom_call.1} parent=1 // pred_fallthru
      _
    // Predicated region
    $region22: #{tpu_custom_call.1} parent=1 // pred_check
      _
    $region23: #{tpu_custom_call.1} parent=1 // pred_check_branch
      %66 = sbr.rel (0) target = $region25
    $region24: #{tpu_custom_call.1} parent=1 // pred_region
      _
    $region25: #{tpu_custom_call.1} parent=1 // pred_fallthru
      _
    // Predicated region
    $region26: #{tpu_custom_call.1} parent=1 // pred_check
      _
    $region27: #{tpu_custom_call.1} parent=1 // pred_check_branch
      %68 = sbr.rel (0) target = $region29
    $region28: #{tpu_custom_call.1} parent=1 // pred_region
      %69 = dma.done [#allocation3], 14336
    $region29: #{tpu_custom_call.1} parent=1 // pred_fallthru
      _
    // Predicated region
    $region30: #{tpu_custom_call.1} parent=1 // pred_check
      _
    $region31: #{tpu_custom_call.1} parent=1 // pred_check_branch
      %71 = sbr.rel (0) target = $region33
    $region32: #{tpu_custom_call.1} parent=1 // pred_region
      %72 = dma.done [#allocation6], 7168
    $region33: #{tpu_custom_call.1} parent=1 // pred_fallthru
      _
    // Predicated region
    $region34: #{tpu_custom_call.1} parent=1 // pred_check
      _
    $region35: #{tpu_custom_call.1} parent=1 // pred_check_branch
      %74 = sbr.rel (0) target = $region37
    $region36: #{tpu_custom_call.1} parent=1 // pred_region
      %75 = dma.done [#allocation6], 6144
    $region37: #{tpu_custom_call.1} parent=1 // pred_fallthru
      _
    // Predicated region
    $region38: #{tpu_custom_call.1} parent=1 // pred_check
      _
    $region39: #{tpu_custom_call.1} parent=1 // pred_check_branch
      %77 = sbr.rel (0) target = $region41
    $region40: #{tpu_custom_call.1} parent=1 // pred_region
      %78 = dma.done [#allocation9], 1024
    $region41: #{tpu_custom_call.1} parent=1 // pred_fallthru
      _
    %v80 = vld [vmem:[#allocation2] sm:$0xff]
    %v81 = vld [vmem:[#allocation2 + $0x8] sm:$0xff]
    %v82 = vld [vmem:[#allocation2 + $0x10] sm:$0xff]
    %v83 = vld [vmem:[#allocation2 + $0x18] sm:$0xf]
    %v84 = vld [vmem:[#allocation2 + $0x1c] sm:$0xff]
    %v85 = vld [vmem:[#allocation2 + $0x24] sm:$0xff]
    %v86 = vld [vmem:[#allocation2 + $0x2c] sm:$0xff]
    %v87 = vld [vmem:[#allocation2 + $0x34] sm:$0xf]
    %v88 = vld [vmem:[#allocation2 + $0x38] sm:$0xff]
    %v89 = vld [vmem:[#allocation2 + $0x40] sm:$0xff]
    %v90 = vld [vmem:[#allocation2 + $0x48] sm:$0xff]
    %v91 = vld [vmem:[#allocation2 + $0x50] sm:$0xf]
    %v92 = vld [vmem:[#allocation2 + $0x54] sm:$0xff]
    %v93 = vld [vmem:[#allocation2 + $0x5c] sm:$0xff]
    %v94 = vld [vmem:[#allocation2 + $0x64] sm:$0xff]
    %v95 = vld [vmem:[#allocation2 + $0x6c] sm:$0xf]
    %v96 = vld [vmem:[#allocation2 + $0x70] sm:$0xff]
    %v97 = vld [vmem:[#allocation2 + $0x78] sm:$0xff]
    %v98 = vld [vmem:[#allocation2 + $0x80] sm:$0xff]
    %v99 = vld [vmem:[#allocation2 + $0x88] sm:$0xf]
    %v100 = vld [vmem:[#allocation2 + $0x8c] sm:$0xff]
    %v101 = vld [vmem:[#allocation2 + $0x94] sm:$0xff]
    %v102 = vld [vmem:[#allocation2 + $0x9c] sm:$0xff]
    %v103 = vld [vmem:[#allocation2 + $0xa4] sm:$0xf]
    %v104 = vld [vmem:[#allocation2 + $0xa8] sm:$0xff]
    %v105 = vld [vmem:[#allocation2 + $0xb0] sm:$0xff]
    %v106 = vld [vmem:[#allocation2 + $0xb8] sm:$0xff]
    %v107 = vld [vmem:[#allocation2 + $0xc0] sm:$0xf]
    %v108 = vld [vmem:[#allocation2 + $0xc4] sm:$0xff]
    %v109 = vld [vmem:[#allocation2 + $0xcc] sm:$0xff]
    %v110 = vld [vmem:[#allocation2 + $0xd4] sm:$0xff]
    %v111 = vld [vmem:[#allocation2 + $0xdc] sm:$0xf]
    %v112 = vld [vmem:[#allocation2 + $0xe0] sm:$0xff]
    %v113 = vld [vmem:[#allocation2 + $0xe8] sm:$0xff]
    %v114 = vld [vmem:[#allocation2 + $0xf0] sm:$0xff]
    %v115 = vld [vmem:[#allocation2 + $0xf8] sm:$0xf]
    %v116 = vld [vmem:[#allocation2 + $0xfc] sm:$0xff]
    %v117 = vld [vmem:[#allocation2 + $0x104] sm:$0xff]
    %v118 = vld [vmem:[#allocation2 + $0x10c] sm:$0xff]
    %v119 = vld [vmem:[#allocation2 + $0x114] sm:$0xf]
    %v120 = vld [vmem:[#allocation2 + $0x118] sm:$0xff]
    %v121 = vld [vmem:[#allocation2 + $0x120] sm:$0xff]
    %v122 = vld [vmem:[#allocation2 + $0x128] sm:$0xff]
    %v123 = vld [vmem:[#allocation2 + $0x130] sm:$0xf]
    %v124 = vld [vmem:[#allocation2 + $0x134] sm:$0xff]
    %v125 = vld [vmem:[#allocation2 + $0x13c] sm:$0xff]
    %v126 = vld [vmem:[#allocation2 + $0x144] sm:$0xff]
    %v127 = vld [vmem:[#allocation2 + $0x14c] sm:$0xf]
    %v128 = vld [vmem:[#allocation2 + $0x150] sm:$0xff]
    %v129 = vld [vmem:[#allocation2 + $0x158] sm:$0xff]
    %v130 = vld [vmem:[#allocation2 + $0x160] sm:$0xff]
    %v131 = vld [vmem:[#allocation2 + $0x168] sm:$0xf]
    %v132 = vld [vmem:[#allocation2 + $0x16c] sm:$0xff]
    %v133 = vld [vmem:[#allocation2 + $0x174] sm:$0xff]
    %v134 = vld [vmem:[#allocation2 + $0x17c] sm:$0xff]
    %v135 = vld [vmem:[#allocation2 + $0x184] sm:$0xf]
    %v136 = vld [vmem:[#allocation2 + $0x188] sm:$0xff]
    %v137 = vld [vmem:[#allocation2 + $0x190] sm:$0xff]
    %v138 = vld [vmem:[#allocation2 + $0x198] sm:$0xff]
    %v139 = vld [vmem:[#allocation2 + $0x1a0] sm:$0xf]
    %v140 = vld [vmem:[#allocation2 + $0x1a4] sm:$0xff]
    %v141 = vld [vmem:[#allocation2 + $0x1ac] sm:$0xff]
    %v142 = vld [vmem:[#allocation2 + $0x1b4] sm:$0xff]
    %v143 = vld [vmem:[#allocation2 + $0x1bc] sm:$0xf]
    %v144 = vld [vmem:[#allocation2 + $0x1c0] sm:$0xff]
    %v145 = vld [vmem:[#allocation2 + $0x1c8] sm:$0xff]
    %v146 = vld [vmem:[#allocation2 + $0x1d0] sm:$0xff]
    %v147 = vld [vmem:[#allocation2 + $0x1d8] sm:$0xf]
    %v148 = vld [vmem:[#allocation2 + $0x1dc] sm:$0xff]
    %v149 = vld [vmem:[#allocation2 + $0x1e4] sm:$0xff]
    %v150 = vld [vmem:[#allocation2 + $0x1ec] sm:$0xff]
    %v151 = vld [vmem:[#allocation2 + $0x1f4] sm:$0xf]
    %v152 = vld [vmem:[#allocation2 + $0x1f8] sm:$0xff]
    %v153 = vld [vmem:[#allocation2 + $0x200] sm:$0xff]
    %v154 = vld [vmem:[#allocation2 + $0x208] sm:$0xff]
    %v155 = vld [vmem:[#allocation2 + $0x210] sm:$0xf]
    %v156 = vld [vmem:[#allocation2 + $0x214] sm:$0xff]
    %v157 = vld [vmem:[#allocation2 + $0x21c] sm:$0xff]
    %v158 = vld [vmem:[#allocation2 + $0x224] sm:$0xff]
    %v159 = vld [vmem:[#allocation2 + $0x22c] sm:$0xf]
    %v160 = vld [vmem:[#allocation2 + $0x230] sm:$0xff]
    %v161 = vld [vmem:[#allocation2 + $0x238] sm:$0xff]
    %v162 = vld [vmem:[#allocation2 + $0x240] sm:$0xff]
    %v163 = vld [vmem:[#allocation2 + $0x248] sm:$0xf]
    %v164 = vld [vmem:[#allocation2 + $0x24c] sm:$0xff]
    %v165 = vld [vmem:[#allocation2 + $0x254] sm:$0xff]
    %v166 = vld [vmem:[#allocation2 + $0x25c] sm:$0xff]
    %v167 = vld [vmem:[#allocation2 + $0x264] sm:$0xf]
    %v168 = vld [vmem:[#allocation2 + $0x268] sm:$0xff]
    %v169 = vld [vmem:[#allocation2 + $0x270] sm:$0xff]
    %v170 = vld [vmem:[#allocation2 + $0x278] sm:$0xff]
    %v171 = vld [vmem:[#allocation2 + $0x280] sm:$0xf]
    %v172 = vld [vmem:[#allocation2 + $0x284] sm:$0xff]
    %v173 = vld [vmem:[#allocation2 + $0x28c] sm:$0xff]
    %v174 = vld [vmem:[#allocation2 + $0x294] sm:$0xff]
    %v175 = vld [vmem:[#allocation2 + $0x29c] sm:$0xf]
    %v176 = vld [vmem:[#allocation2 + $0x2a0] sm:$0xff]
    %v177 = vld [vmem:[#allocation2 + $0x2a8] sm:$0xff]
    %v178 = vld [vmem:[#allocation2 + $0x2b0] sm:$0xff]
    %v179 = vld [vmem:[#allocation2 + $0x2b8] sm:$0xf]
    %v180 = vld [vmem:[#allocation2 + $0x2bc] sm:$0xff]
    %v181 = vld [vmem:[#allocation2 + $0x2c4] sm:$0xff]
    %v182 = vld [vmem:[#allocation2 + $0x2cc] sm:$0xff]
    %v183 = vld [vmem:[#allocation2 + $0x2d4] sm:$0xf]
    %v184 = vld [vmem:[#allocation2 + $0x2d8] sm:$0xff]
    %v185 = vld [vmem:[#allocation2 + $0x2e0] sm:$0xff]
    %v186 = vld [vmem:[#allocation2 + $0x2e8] sm:$0xff]
    %v187 = vld [vmem:[#allocation2 + $0x2f0] sm:$0xf]
    %v188 = vld [vmem:[#allocation2 + $0x2f4] sm:$0xff]
    %v189 = vld [vmem:[#allocation2 + $0x2fc] sm:$0xff]
    %v190 = vld [vmem:[#allocation2 + $0x304] sm:$0xff]
    %v191 = vld [vmem:[#allocation2 + $0x30c] sm:$0xf]
    %v192 = vld [vmem:[#allocation2 + $0x310] sm:$0xff]
    %v193 = vld [vmem:[#allocation2 + $0x318] sm:$0xff]
    %v194 = vld [vmem:[#allocation2 + $0x320] sm:$0xff]
    %v195 = vld [vmem:[#allocation2 + $0x328] sm:$0xf]
    %v196 = vld [vmem:[#allocation2 + $0x32c] sm:$0xff]
    %v197 = vld [vmem:[#allocation2 + $0x334] sm:$0xff]
    %v198 = vld [vmem:[#allocation2 + $0x33c] sm:$0xff]
    %v199 = vld [vmem:[#allocation2 + $0x344] sm:$0xf]
    %v200 = vld [vmem:[#allocation2 + $0x348] sm:$0xff]
    %v201 = vld [vmem:[#allocation2 + $0x350] sm:$0xff]
    %v202 = vld [vmem:[#allocation2 + $0x358] sm:$0xff]
    %v203 = vld [vmem:[#allocation2 + $0x360] sm:$0xf]
    %v204 = vld [vmem:[#allocation2 + $0x364] sm:$0xff]
    %v205 = vld [vmem:[#allocation2 + $0x36c] sm:$0xff]
    %v206 = vld [vmem:[#allocation2 + $0x374] sm:$0xff]
    %v207 = vld [vmem:[#allocation2 + $0x37c] sm:$0xf]
    %v208 = vld [vmem:[#allocation5] sm:$0xf]
    %v209 = vld [vmem:[#allocation5 + $0x4] sm:$0xf]
    %v210 = vld [vmem:[#allocation5 + $0x8] sm:$0xf]
    %v211 = vld [vmem:[#allocation5 + $0xc] sm:$0xf]
    %v212 = vld [vmem:[#allocation5 + $0x10] sm:$0xf]
    %v213 = vld [vmem:[#allocation5 + $0x14] sm:$0xf]
    %v214 = vld [vmem:[#allocation5 + $0x18] sm:$0xf]
    %v215 = vld [vmem:[#allocation5 + $0x1c] sm:$0xf]
    %v216 = vld [vmem:[#allocation5 + $0x20] sm:$0xf]
    %v217 = vld [vmem:[#allocation5 + $0x24] sm:$0xf]
    %v218 = vld [vmem:[#allocation5 + $0x28] sm:$0xf]
    %v219 = vld [vmem:[#allocation5 + $0x2c] sm:$0xf]
    %v220 = vld [vmem:[#allocation5 + $0x30] sm:$0xf]
    %v221 = vld [vmem:[#allocation5 + $0x34] sm:$0xf]
    %v222 = vld [vmem:[#allocation5 + $0x38] sm:$0xf]
    %v223 = vld [vmem:[#allocation5 + $0x3c] sm:$0xf]
    %v224 = vld [vmem:[#allocation5 + $0x40] sm:$0xf]
    %v225 = vld [vmem:[#allocation5 + $0x44] sm:$0xf]
    %v226 = vld [vmem:[#allocation5 + $0x48] sm:$0xf]
    %v227 = vld [vmem:[#allocation5 + $0x4c] sm:$0xf]
    %v228 = vld [vmem:[#allocation5 + $0x50] sm:$0xf]
    %v229 = vld [vmem:[#allocation5 + $0x54] sm:$0xf]
    %v230 = vld [vmem:[#allocation5 + $0x58] sm:$0xf]
    %v231 = vld [vmem:[#allocation5 + $0x5c] sm:$0xf]
    %v232 = vld [vmem:[#allocation5 + $0x60] sm:$0xf]
    %v233 = vld [vmem:[#allocation5 + $0x64] sm:$0xf]
    %v234 = vld [vmem:[#allocation5 + $0x68] sm:$0xf]
    %v235 = vld [vmem:[#allocation5 + $0x6c] sm:$0xf]
    %v236 = vld [vmem:[#allocation5 + $0x70] sm:$0xf]
    %v237 = vld [vmem:[#allocation5 + $0x74] sm:$0xf]
    %v238 = vld [vmem:[#allocation5 + $0x78] sm:$0xf]
    %v239 = vld [vmem:[#allocation5 + $0x7c] sm:$0xf]
    %v240 = vld [vmem:[#allocation5 + $0x80] sm:$0xf]
    %v241 = vld [vmem:[#allocation5 + $0x84] sm:$0xf]
    %v242 = vld [vmem:[#allocation5 + $0x88] sm:$0xf]
    %v243 = vld [vmem:[#allocation5 + $0x8c] sm:$0xf]
    %v244 = vld [vmem:[#allocation5 + $0x90] sm:$0xf]
    %v245 = vld [vmem:[#allocation5 + $0x94] sm:$0xf]
    %v246 = vld [vmem:[#allocation5 + $0x98] sm:$0xf]
    %v247 = vld [vmem:[#allocation5 + $0x9c] sm:$0xf]
    %v248 = vld [vmem:[#allocation5 + $0xa0] sm:$0xf]
    %v249 = vld [vmem:[#allocation5 + $0xa4] sm:$0xf]
    %v250 = vld [vmem:[#allocation5 + $0xa8] sm:$0xf]
    %v251 = vld [vmem:[#allocation5 + $0xac] sm:$0xf]
    %v252 = vld [vmem:[#allocation5 + $0xb0] sm:$0xf]
    %v253 = vld [vmem:[#allocation5 + $0xb4] sm:$0xf]
    %v254 = vld [vmem:[#allocation5 + $0xb8] sm:$0xf]
    %v255 = vld [vmem:[#allocation5 + $0xbc] sm:$0xf]
    %v256 = vld [vmem:[#allocation5 + $0xc0] sm:$0xf]
    %v257 = vld [vmem:[#allocation5 + $0xc4] sm:$0xf]
    %v258 = vld [vmem:[#allocation5 + $0xc8] sm:$0xf]
    %v259 = vld [vmem:[#allocation5 + $0xcc] sm:$0xf]
    %v260 = vld [vmem:[#allocation5 + $0xd0] sm:$0xf]
    %v261 = vld [vmem:[#allocation5 + $0xd4] sm:$0xf]
    %v262 = vld [vmem:[#allocation5 + $0xd8] sm:$0xf]
    %v263 = vld [vmem:[#allocation5 + $0xdc] sm:$0xf]
    %v264 = vld [vmem:[#allocation5 + $0xe0] sm:$0xf]
    %v265 = vld [vmem:[#allocation5 + $0xe4] sm:$0xf]
    %v266 = vld [vmem:[#allocation5 + $0xe8] sm:$0xf]
    %v267 = vld [vmem:[#allocation5 + $0xec] sm:$0xf]
    %v268 = vld [vmem:[#allocation5 + $0xf0] sm:$0xf]
    %v269 = vld [vmem:[#allocation5 + $0xf4] sm:$0xf]
    %v270 = vld [vmem:[#allocation5 + $0xf8] sm:$0xf]
    %v271 = vld [vmem:[#allocation5 + $0xfc] sm:$0xf]
    %v272 = vld [vmem:[#allocation5 + $0x100] sm:$0xf]
    %v273 = vld [vmem:[#allocation5 + $0x104] sm:$0xf]
    %v274 = vld [vmem:[#allocation5 + $0x108] sm:$0xf]
    %v275 = vld [vmem:[#allocation5 + $0x10c] sm:$0xf]
    %v276 = vld [vmem:[#allocation5 + $0x110] sm:$0xf]
    %v277 = vld [vmem:[#allocation5 + $0x114] sm:$0xf]
    %v278 = vld [vmem:[#allocation5 + $0x118] sm:$0xf]
    %v279 = vld [vmem:[#allocation5 + $0x11c] sm:$0xf]
    %v280 = vld [vmem:[#allocation5 + $0x120] sm:$0xf]
    %v281 = vld [vmem:[#allocation5 + $0x124] sm:$0xf]
    %v282 = vld [vmem:[#allocation5 + $0x128] sm:$0xf]
    %v283 = vld [vmem:[#allocation5 + $0x12c] sm:$0xf]
    %v284 = vld [vmem:[#allocation5 + $0x130] sm:$0xf]
    %v285 = vld [vmem:[#allocation5 + $0x134] sm:$0xf]
    %v286 = vld [vmem:[#allocation5 + $0x138] sm:$0xf]
    %v287 = vld [vmem:[#allocation5 + $0x13c] sm:$0xf]
    %v288 = vld [vmem:[#allocation5 + $0x140] sm:$0xf]
    %v289 = vld [vmem:[#allocation5 + $0x144] sm:$0xf]
    %v290 = vld [vmem:[#allocation5 + $0x148] sm:$0xf]
    %v291 = vld [vmem:[#allocation5 + $0x14c] sm:$0xf]
    %v292 = vld [vmem:[#allocation5 + $0x150] sm:$0xf]
    %v293 = vld [vmem:[#allocation5 + $0x154] sm:$0xf]
    %v294 = vld [vmem:[#allocation5 + $0x158] sm:$0xf]
    %v295 = vld [vmem:[#allocation5 + $0x15c] sm:$0xf]
    %v296 = vld [vmem:[#allocation5 + $0x160] sm:$0xf]
    %v297 = vld [vmem:[#allocation5 + $0x164] sm:$0xf]
    %v298 = vld [vmem:[#allocation5 + $0x168] sm:$0xf]
    %v299 = vld [vmem:[#allocation5 + $0x16c] sm:$0xf]
    %v300 = vld [vmem:[#allocation5 + $0x170] sm:$0xf]
    %v301 = vld [vmem:[#allocation5 + $0x174] sm:$0xf]
    %v302 = vld [vmem:[#allocation5 + $0x178] sm:$0xf]
    %v303 = vld [vmem:[#allocation5 + $0x17c] sm:$0xf]
    %v304 = vld [vmem:[#allocation5 + $0x180] sm:$0xf]
    %v305 = vld [vmem:[#allocation5 + $0x184] sm:$0xf]
    %v306 = vld [vmem:[#allocation5 + $0x188] sm:$0xf]
    %v307 = vld [vmem:[#allocation5 + $0x18c] sm:$0xf]
    %v308 = vld [vmem:[#allocation5 + $0x190] sm:$0xf]
    %v309 = vld [vmem:[#allocation5 + $0x194] sm:$0xf]
    %v310 = vld [vmem:[#allocation5 + $0x198] sm:$0xf]
    %v311 = vld [vmem:[#allocation5 + $0x19c] sm:$0xf]
    %v312 = vld [vmem:[#allocation5 + $0x1a0] sm:$0xf]
    %v313 = vld [vmem:[#allocation5 + $0x1a4] sm:$0xf]
    %v314 = vld [vmem:[#allocation5 + $0x1a8] sm:$0xf]
    %v315 = vld [vmem:[#allocation5 + $0x1ac] sm:$0xf]
    %v316 = vld [vmem:[#allocation5 + $0x1b0] sm:$0xf]
    %v317 = vld [vmem:[#allocation5 + $0x1b4] sm:$0xf]
    %v318 = vld [vmem:[#allocation5 + $0x1b8] sm:$0xf]
    %v319 = vld [vmem:[#allocation5 + $0x1bc] sm:$0xf]
    %v448 = vunpack.c.l.b16 %v80
    %v449 = vunpack.c.h.b16 %v80
    %v450 = vunpack.c.l.b16 %v81
    %v451 = vunpack.c.h.b16 %v81
    %v452 = vunpack.c.l.b16 %v82
    %v453 = vunpack.c.h.b16 %v82
    %v454 = vunpack.c.l.b16 %v83
    %v455 = vunpack.c.l.b16 %v84
    %v456 = vunpack.c.h.b16 %v84
    %v457 = vunpack.c.l.b16 %v85
    %v458 = vunpack.c.h.b16 %v85
    %v459 = vunpack.c.l.b16 %v86
    %v460 = vunpack.c.h.b16 %v86
    %v461 = vunpack.c.l.b16 %v87
    %v462 = vunpack.c.l.b16 %v88
    %v463 = vunpack.c.h.b16 %v88
    %v464 = vunpack.c.l.b16 %v89
    %v465 = vunpack.c.h.b16 %v89
    %v466 = vunpack.c.l.b16 %v90
    %v467 = vunpack.c.h.b16 %v90
    %v468 = vunpack.c.l.b16 %v91
    %v469 = vunpack.c.l.b16 %v92
    %v470 = vunpack.c.h.b16 %v92
    %v471 = vunpack.c.l.b16 %v93
    %v472 = vunpack.c.h.b16 %v93
    %v473 = vunpack.c.l.b16 %v94
    %v474 = vunpack.c.h.b16 %v94
    %v475 = vunpack.c.l.b16 %v95
    %v476 = vunpack.c.l.b16 %v96
    %v477 = vunpack.c.h.b16 %v96
    %v478 = vunpack.c.l.b16 %v97
    %v479 = vunpack.c.h.b16 %v97
    %v480 = vunpack.c.l.b16 %v98
    %v481 = vunpack.c.h.b16 %v98
    %v482 = vunpack.c.l.b16 %v99
    %v483 = vunpack.c.l.b16 %v100
    %v484 = vunpack.c.h.b16 %v100
    %v485 = vunpack.c.l.b16 %v101
    %v486 = vunpack.c.h.b16 %v101
    %v487 = vunpack.c.l.b16 %v102
    %v488 = vunpack.c.h.b16 %v102
    %v489 = vunpack.c.l.b16 %v103
    %v490 = vunpack.c.l.b16 %v104
    %v491 = vunpack.c.h.b16 %v104
    %v492 = vunpack.c.l.b16 %v105
    %v493 = vunpack.c.h.b16 %v105
    %v494 = vunpack.c.l.b16 %v106
    %v495 = vunpack.c.h.b16 %v106
    %v496 = vunpack.c.l.b16 %v107
    %v497 = vunpack.c.l.b16 %v108
    %v498 = vunpack.c.h.b16 %v108
    %v499 = vunpack.c.l.b16 %v109
    %v500 = vunpack.c.h.b16 %v109
    %v501 = vunpack.c.l.b16 %v110
    %v502 = vunpack.c.h.b16 %v110
    %v503 = vunpack.c.l.b16 %v111
    %v504 = vunpack.c.l.b16 %v112
    %v505 = vunpack.c.h.b16 %v112
    %v506 = vunpack.c.l.b16 %v113
    %v507 = vunpack.c.h.b16 %v113
    %v508 = vunpack.c.l.b16 %v114
    %v509 = vunpack.c.h.b16 %v114
    %v510 = vunpack.c.l.b16 %v115
    %v511 = vunpack.c.l.b16 %v116
    %v512 = vunpack.c.h.b16 %v116
    %v513 = vunpack.c.l.b16 %v117
    %v514 = vunpack.c.h.b16 %v117
    %v515 = vunpack.c.l.b16 %v118
    %v516 = vunpack.c.h.b16 %v118
    %v517 = vunpack.c.l.b16 %v119
    %v518 = vunpack.c.l.b16 %v120
    %v519 = vunpack.c.h.b16 %v120
    %v520 = vunpack.c.l.b16 %v121
    %v521 = vunpack.c.h.b16 %v121
    %v522 = vunpack.c.l.b16 %v122
    %v523 = vunpack.c.h.b16 %v122
    %v524 = vunpack.c.l.b16 %v123
    %v525 = vunpack.c.l.b16 %v124
    %v526 = vunpack.c.h.b16 %v124
    %v527 = vunpack.c.l.b16 %v125
    %v528 = vunpack.c.h.b16 %v125
    %v529 = vunpack.c.l.b16 %v126
    %v530 = vunpack.c.h.b16 %v126
    %v531 = vunpack.c.l.b16 %v127
    %v532 = vunpack.c.l.b16 %v128
    %v533 = vunpack.c.h.b16 %v128
    %v534 = vunpack.c.l.b16 %v129
    %v535 = vunpack.c.h.b16 %v129
    %v536 = vunpack.c.l.b16 %v130
    %v537 = vunpack.c.h.b16 %v130
    %v538 = vunpack.c.l.b16 %v131
    %v539 = vunpack.c.l.b16 %v132
    %v540 = vunpack.c.h.b16 %v132
    %v541 = vunpack.c.l.b16 %v133
    %v542 = vunpack.c.h.b16 %v133
    %v543 = vunpack.c.l.b16 %v134
    %v544 = vunpack.c.h.b16 %v134
    %v545 = vunpack.c.l.b16 %v135
    %v546 = vunpack.c.l.b16 %v136
    %v547 = vunpack.c.h.b16 %v136
    %v548 = vunpack.c.l.b16 %v137
    %v549 = vunpack.c.h.b16 %v137
    %v550 = vunpack.c.l.b16 %v138
    %v551 = vunpack.c.h.b16 %v138
    %v552 = vunpack.c.l.b16 %v139
    %v553 = vunpack.c.l.b16 %v140
    %v554 = vunpack.c.h.b16 %v140
    %v555 = vunpack.c.l.b16 %v141
    %v556 = vunpack.c.h.b16 %v141
    %v557 = vunpack.c.l.b16 %v142
    %v558 = vunpack.c.h.b16 %v142
    %v559 = vunpack.c.l.b16 %v143
    %v560 = vunpack.c.l.b16 %v144
    %v561 = vunpack.c.h.b16 %v144
    %v562 = vunpack.c.l.b16 %v145
    %v563 = vunpack.c.h.b16 %v145
    %v564 = vunpack.c.l.b16 %v146
    %v565 = vunpack.c.h.b16 %v146
    %v566 = vunpack.c.l.b16 %v147
    %v567 = vunpack.c.l.b16 %v148
    %v568 = vunpack.c.h.b16 %v148
    %v569 = vunpack.c.l.b16 %v149
    %v570 = vunpack.c.h.b16 %v149
    %v571 = vunpack.c.l.b16 %v150
    %v572 = vunpack.c.h.b16 %v150
    %v573 = vunpack.c.l.b16 %v151
    %v574 = vunpack.c.l.b16 %v152
    %v575 = vunpack.c.h.b16 %v152
    %v576 = vunpack.c.l.b16 %v153
    %v577 = vunpack.c.h.b16 %v153
    %v578 = vunpack.c.l.b16 %v154
    %v579 = vunpack.c.h.b16 %v154
    %v580 = vunpack.c.l.b16 %v155
    %v581 = vunpack.c.l.b16 %v156
    %v582 = vunpack.c.h.b16 %v156
    %v583 = vunpack.c.l.b16 %v157
    %v584 = vunpack.c.h.b16 %v157
    %v585 = vunpack.c.l.b16 %v158
    %v586 = vunpack.c.h.b16 %v158
    %v587 = vunpack.c.l.b16 %v159
    %v588 = vunpack.c.l.b16 %v160
    %v589 = vunpack.c.h.b16 %v160
    %v590 = vunpack.c.l.b16 %v161
    %v591 = vunpack.c.h.b16 %v161
    %v592 = vunpack.c.l.b16 %v162
    %v593 = vunpack.c.h.b16 %v162
    %v594 = vunpack.c.l.b16 %v163
    %v595 = vunpack.c.l.b16 %v164
    %v596 = vunpack.c.h.b16 %v164
    %v597 = vunpack.c.l.b16 %v165
    %v598 = vunpack.c.h.b16 %v165
    %v599 = vunpack.c.l.b16 %v166
    %v600 = vunpack.c.h.b16 %v166
    %v601 = vunpack.c.l.b16 %v167
    %v602 = vunpack.c.l.b16 %v168
    %v603 = vunpack.c.h.b16 %v168
    %v604 = vunpack.c.l.b16 %v169
    %v605 = vunpack.c.h.b16 %v169
    %v606 = vunpack.c.l.b16 %v170
    %v607 = vunpack.c.h.b16 %v170
    %v608 = vunpack.c.l.b16 %v171
    %v609 = vunpack.c.l.b16 %v172
    %v610 = vunpack.c.h.b16 %v172
    %v611 = vunpack.c.l.b16 %v173
    %v612 = vunpack.c.h.b16 %v173
    %v613 = vunpack.c.l.b16 %v174
    %v614 = vunpack.c.h.b16 %v174
    %v615 = vunpack.c.l.b16 %v175
    %v616 = vunpack.c.l.b16 %v176
    %v617 = vunpack.c.h.b16 %v176
    %v618 = vunpack.c.l.b16 %v177
    %v619 = vunpack.c.h.b16 %v177
    %v620 = vunpack.c.l.b16 %v178
    %v621 = vunpack.c.h.b16 %v178
    %v622 = vunpack.c.l.b16 %v179
    %v623 = vunpack.c.l.b16 %v180
    %v624 = vunpack.c.h.b16 %v180
    %v625 = vunpack.c.l.b16 %v181
    %v626 = vunpack.c.h.b16 %v181
    %v627 = vunpack.c.l.b16 %v182
    %v628 = vunpack.c.h.b16 %v182
    %v629 = vunpack.c.l.b16 %v183
    %v630 = vunpack.c.l.b16 %v184
    %v631 = vunpack.c.h.b16 %v184
    %v632 = vunpack.c.l.b16 %v185
    %v633 = vunpack.c.h.b16 %v185
    %v634 = vunpack.c.l.b16 %v186
    %v635 = vunpack.c.h.b16 %v186
    %v636 = vunpack.c.l.b16 %v187
    %v637 = vunpack.c.l.b16 %v188
    %v638 = vunpack.c.h.b16 %v188
    %v639 = vunpack.c.l.b16 %v189
    %v640 = vunpack.c.h.b16 %v189
    %v641 = vunpack.c.l.b16 %v190
    %v642 = vunpack.c.h.b16 %v190
    %v643 = vunpack.c.l.b16 %v191
    %v644 = vunpack.c.l.b16 %v192
    %v645 = vunpack.c.h.b16 %v192
    %v646 = vunpack.c.l.b16 %v193
    %v647 = vunpack.c.h.b16 %v193
    %v648 = vunpack.c.l.b16 %v194
    %v649 = vunpack.c.h.b16 %v194
    %v650 = vunpack.c.l.b16 %v195
    %v651 = vunpack.c.l.b16 %v196
    %v652 = vunpack.c.h.b16 %v196
    %v653 = vunpack.c.l.b16 %v197
    %v654 = vunpack.c.h.b16 %v197
    %v655 = vunpack.c.l.b16 %v198
    %v656 = vunpack.c.h.b16 %v198
    %v657 = vunpack.c.l.b16 %v199
    %v658 = vunpack.c.l.b16 %v200
    %v659 = vunpack.c.h.b16 %v200
    %v660 = vunpack.c.l.b16 %v201
    %v661 = vunpack.c.h.b16 %v201
    %v662 = vunpack.c.l.b16 %v202
    %v663 = vunpack.c.h.b16 %v202
    %v664 = vunpack.c.l.b16 %v203
    %v665 = vunpack.c.l.b16 %v204
    %v666 = vunpack.c.h.b16 %v204
    %v667 = vunpack.c.l.b16 %v205
    %v668 = vunpack.c.h.b16 %v205
    %v669 = vunpack.c.l.b16 %v206
    %v670 = vunpack.c.h.b16 %v206
    %v671 = vunpack.c.l.b16 %v207
    %v672 = vpack.c.b16 %v455, %v448
    %v673 = vpack.c.b16 %v456, %v449
    %v674 = vpack.c.b16 %v457, %v450
    %v675 = vpack.c.b16 %v458, %v451
    %v676 = vpack.c.b16 %v459, %v452
    %v677 = vpack.c.b16 %v460, %v453
    %v678 = vpack.c.b16 %v461, %v454
    %v679 = vpack.c.b16 %v469, %v462
    %v680 = vpack.c.b16 %v470, %v463
    %v681 = vpack.c.b16 %v471, %v464
    %v682 = vpack.c.b16 %v472, %v465
    %v683 = vpack.c.b16 %v473, %v466
    %v684 = vpack.c.b16 %v474, %v467
    %v685 = vpack.c.b16 %v475, %v468
    %v686 = vpack.c.b16 %v483, %v476
    %v687 = vpack.c.b16 %v484, %v477
    %v688 = vpack.c.b16 %v485, %v478
    %v689 = vpack.c.b16 %v486, %v479
    %v690 = vpack.c.b16 %v487, %v480
    %v691 = vpack.c.b16 %v488, %v481
    %v692 = vpack.c.b16 %v489, %v482
    %v693 = vpack.c.b16 %v497, %v490
    %v694 = vpack.c.b16 %v498, %v491
    %v695 = vpack.c.b16 %v499, %v492
    %v696 = vpack.c.b16 %v500, %v493
    %v697 = vpack.c.b16 %v501, %v494
    %v698 = vpack.c.b16 %v502, %v495
    %v699 = vpack.c.b16 %v503, %v496
    %v700 = vpack.c.b16 %v511, %v504
    %v701 = vpack.c.b16 %v512, %v505
    %v702 = vpack.c.b16 %v513, %v506
    %v703 = vpack.c.b16 %v514, %v507
    %v704 = vpack.c.b16 %v515, %v508
    %v705 = vpack.c.b16 %v516, %v509
    %v706 = vpack.c.b16 %v517, %v510
    %v707 = vpack.c.b16 %v525, %v518
    %v708 = vpack.c.b16 %v526, %v519
    %v709 = vpack.c.b16 %v527, %v520
    %v710 = vpack.c.b16 %v528, %v521
    %v711 = vpack.c.b16 %v529, %v522
    %v712 = vpack.c.b16 %v530, %v523
    %v713 = vpack.c.b16 %v531, %v524
    %v714 = vpack.c.b16 %v539, %v532
    %v715 = vpack.c.b16 %v540, %v533
    %v716 = vpack.c.b16 %v541, %v534
    %v717 = vpack.c.b16 %v542, %v535
    %v718 = vpack.c.b16 %v543, %v536
    %v719 = vpack.c.b16 %v544, %v537
    %v720 = vpack.c.b16 %v545, %v538
    %v721 = vpack.c.b16 %v553, %v546
    %v722 = vpack.c.b16 %v554, %v547
    %v723 = vpack.c.b16 %v555, %v548
    %v724 = vpack.c.b16 %v556, %v549
    %v725 = vpack.c.b16 %v557, %v550
    %v726 = vpack.c.b16 %v558, %v551
    %v727 = vpack.c.b16 %v559, %v552
    %v728 = vpack.c.b16 %v567, %v560
    %v729 = vpack.c.b16 %v568, %v561
    %v730 = vpack.c.b16 %v569, %v562
    %v731 = vpack.c.b16 %v570, %v563
    %v732 = vpack.c.b16 %v571, %v564
    %v733 = vpack.c.b16 %v572, %v565
    %v734 = vpack.c.b16 %v573, %v566
    %v735 = vpack.c.b16 %v581, %v574
    %v736 = vpack.c.b16 %v582, %v575
    %v737 = vpack.c.b16 %v583, %v576
    %v738 = vpack.c.b16 %v584, %v577
    %v739 = vpack.c.b16 %v585, %v578
    %v740 = vpack.c.b16 %v586, %v579
    %v741 = vpack.c.b16 %v587, %v580
    %v742 = vpack.c.b16 %v595, %v588
    %v743 = vpack.c.b16 %v596, %v589
    %v744 = vpack.c.b16 %v597, %v590
    %v745 = vpack.c.b16 %v598, %v591
    %v746 = vpack.c.b16 %v599, %v592
    %v747 = vpack.c.b16 %v600, %v593
    %v748 = vpack.c.b16 %v601, %v594
    %v749 = vpack.c.b16 %v609, %v602
    %v750 = vpack.c.b16 %v610, %v603
    %v751 = vpack.c.b16 %v611, %v604
    %v752 = vpack.c.b16 %v612, %v605
    %v753 = vpack.c.b16 %v613, %v606
    %v754 = vpack.c.b16 %v614, %v607
    %v755 = vpack.c.b16 %v615, %v608
    %v756 = vpack.c.b16 %v623, %v616
    %v757 = vpack.c.b16 %v624, %v617
    %v758 = vpack.c.b16 %v625, %v618
    %v759 = vpack.c.b16 %v626, %v619
    %v760 = vpack.c.b16 %v627, %v620
    %v761 = vpack.c.b16 %v628, %v621
    %v762 = vpack.c.b16 %v629, %v622
    %v763 = vpack.c.b16 %v637, %v630
    %v764 = vpack.c.b16 %v638, %v631
    %v765 = vpack.c.b16 %v639, %v632
    %v766 = vpack.c.b16 %v640, %v633
    %v767 = vpack.c.b16 %v641, %v634
    %v768 = vpack.c.b16 %v642, %v635
    %v769 = vpack.c.b16 %v643, %v636
    %v770 = vpack.c.b16 %v651, %v644
    %v771 = vpack.c.b16 %v652, %v645
    %v772 = vpack.c.b16 %v653, %v646
    %v773 = vpack.c.b16 %v654, %v647
    %v774 = vpack.c.b16 %v655, %v648
    %v775 = vpack.c.b16 %v656, %v649
    %v776 = vpack.c.b16 %v657, %v650
    %v777 = vpack.c.b16 %v665, %v658
    %v778 = vpack.c.b16 %v666, %v659
    %v779 = vpack.c.b16 %v667, %v660
    %v780 = vpack.c.b16 %v668, %v661
    %v781 = vpack.c.b16 %v669, %v662
    %v782 = vpack.c.b16 %v670, %v663
    %v783 = vpack.c.b16 %v671, %v664
    %v1008 = vunpack.c.l.b16 %v208
    %v1009 = vunpack.c.l.b16 %v209
    %v1010 = vunpack.c.l.b16 %v210
    %v1011 = vunpack.c.l.b16 %v211
    %v1012 = vunpack.c.l.b16 %v212
    %v1013 = vunpack.c.l.b16 %v213
    %v1014 = vunpack.c.l.b16 %v214
    %v1015 = vunpack.c.l.b16 %v215
    %v1016 = vunpack.c.l.b16 %v216
    %v1017 = vunpack.c.l.b16 %v217
    %v1018 = vunpack.c.l.b16 %v218
    %v1019 = vunpack.c.l.b16 %v219
    %v1020 = vunpack.c.l.b16 %v220
    %v1021 = vunpack.c.l.b16 %v221
    %v1022 = vunpack.c.l.b16 %v222
    %v1023 = vunpack.c.l.b16 %v223
    %v1024 = vunpack.c.l.b16 %v224
    %v1025 = vunpack.c.l.b16 %v225
    %v1026 = vunpack.c.l.b16 %v226
    %v1027 = vunpack.c.l.b16 %v227
    %v1028 = vunpack.c.l.b16 %v228
    %v1029 = vunpack.c.l.b16 %v229
    %v1030 = vunpack.c.l.b16 %v230
    %v1031 = vunpack.c.l.b16 %v231
    %v1032 = vunpack.c.l.b16 %v232
    %v1033 = vunpack.c.l.b16 %v233
    %v1034 = vunpack.c.l.b16 %v234
    %v1035 = vunpack.c.l.b16 %v235
    %v1036 = vunpack.c.l.b16 %v236
    %v1037 = vunpack.c.l.b16 %v237
    %v1038 = vunpack.c.l.b16 %v238
    %v1039 = vunpack.c.l.b16 %v239
    %v1040 = vunpack.c.l.b16 %v240
    %v1041 = vunpack.c.l.b16 %v241
    %v1042 = vunpack.c.l.b16 %v242
    %v1043 = vunpack.c.l.b16 %v243
    %v1044 = vunpack.c.l.b16 %v244
    %v1045 = vunpack.c.l.b16 %v245
    %v1046 = vunpack.c.l.b16 %v246
    %v1047 = vunpack.c.l.b16 %v247
    %v1048 = vunpack.c.l.b16 %v248
    %v1049 = vunpack.c.l.b16 %v249
    %v1050 = vunpack.c.l.b16 %v250
    %v1051 = vunpack.c.l.b16 %v251
    %v1052 = vunpack.c.l.b16 %v252
    %v1053 = vunpack.c.l.b16 %v253
    %v1054 = vunpack.c.l.b16 %v254
    %v1055 = vunpack.c.l.b16 %v255
    %v1056 = vunpack.c.l.b16 %v256
    %v1057 = vunpack.c.l.b16 %v257
    %v1058 = vunpack.c.l.b16 %v258
    %v1059 = vunpack.c.l.b16 %v259
    %v1060 = vunpack.c.l.b16 %v260
    %v1061 = vunpack.c.l.b16 %v261
    %v1062 = vunpack.c.l.b16 %v262
    %v1063 = vunpack.c.l.b16 %v263
    %v1064 = vunpack.c.l.b16 %v264
    %v1065 = vunpack.c.l.b16 %v265
    %v1066 = vunpack.c.l.b16 %v266
    %v1067 = vunpack.c.l.b16 %v267
    %v1068 = vunpack.c.l.b16 %v268
    %v1069 = vunpack.c.l.b16 %v269
    %v1070 = vunpack.c.l.b16 %v270
    %v1071 = vunpack.c.l.b16 %v271
    %v1072 = vunpack.c.l.b16 %v272
    %v1073 = vunpack.c.l.b16 %v273
    %v1074 = vunpack.c.l.b16 %v274
    %v1075 = vunpack.c.l.b16 %v275
    %v1076 = vunpack.c.l.b16 %v276
    %v1077 = vunpack.c.l.b16 %v277
    %v1078 = vunpack.c.l.b16 %v278
    %v1079 = vunpack.c.l.b16 %v279
    %v1080 = vunpack.c.l.b16 %v280
    %v1081 = vunpack.c.l.b16 %v281
    %v1082 = vunpack.c.l.b16 %v282
    %v1083 = vunpack.c.l.b16 %v283
    %v1084 = vunpack.c.l.b16 %v284
    %v1085 = vunpack.c.l.b16 %v285
    %v1086 = vunpack.c.l.b16 %v286
    %v1087 = vunpack.c.l.b16 %v287
    %v1088 = vunpack.c.l.b16 %v288
    %v1089 = vunpack.c.l.b16 %v289
    %v1090 = vunpack.c.l.b16 %v290
    %v1091 = vunpack.c.l.b16 %v291
    %v1092 = vunpack.c.l.b16 %v292
    %v1093 = vunpack.c.l.b16 %v293
    %v1094 = vunpack.c.l.b16 %v294
    %v1095 = vunpack.c.l.b16 %v295
    %v1096 = vunpack.c.l.b16 %v296
    %v1097 = vunpack.c.l.b16 %v297
    %v1098 = vunpack.c.l.b16 %v298
    %v1099 = vunpack.c.l.b16 %v299
    %v1100 = vunpack.c.l.b16 %v300
    %v1101 = vunpack.c.l.b16 %v301
    %v1102 = vunpack.c.l.b16 %v302
    %v1103 = vunpack.c.l.b16 %v303
    %v1104 = vunpack.c.l.b16 %v304
    %v1105 = vunpack.c.l.b16 %v305
    %v1106 = vunpack.c.l.b16 %v306
    %v1107 = vunpack.c.l.b16 %v307
    %v1108 = vunpack.c.l.b16 %v308
    %v1109 = vunpack.c.l.b16 %v309
    %v1110 = vunpack.c.l.b16 %v310
    %v1111 = vunpack.c.l.b16 %v311
    %v1112 = vunpack.c.l.b16 %v312
    %v1113 = vunpack.c.l.b16 %v313
    %v1114 = vunpack.c.l.b16 %v314
    %v1115 = vunpack.c.l.b16 %v315
    %v1116 = vunpack.c.l.b16 %v316
    %v1117 = vunpack.c.l.b16 %v317
    %v1118 = vunpack.c.l.b16 %v318
    %v1119 = vunpack.c.l.b16 %v319
    %v1120 = vpack.c.b16 %v1009, %v1008
    %v1121 = vpack.c.b16 %v1011, %v1010
    %v1122 = vpack.c.b16 %v1013, %v1012
    %v1123 = vpack.c.b16 %v1015, %v1014
    %v1124 = vpack.c.b16 %v1017, %v1016
    %v1125 = vpack.c.b16 %v1019, %v1018
    %v1126 = vpack.c.b16 %v1021, %v1020
    %v1127 = vpack.c.b16 %v1023, %v1022
    %v1128 = vpack.c.b16 %v1025, %v1024
    %v1129 = vpack.c.b16 %v1027, %v1026
    %v1130 = vpack.c.b16 %v1029, %v1028
    %v1131 = vpack.c.b16 %v1031, %v1030
    %v1132 = vpack.c.b16 %v1033, %v1032
    %v1133 = vpack.c.b16 %v1035, %v1034
    %v1134 = vpack.c.b16 %v1037, %v1036
    %v1135 = vpack.c.b16 %v1039, %v1038
    %v1136 = vpack.c.b16 %v1041, %v1040
    %v1137 = vpack.c.b16 %v1043, %v1042
    %v1138 = vpack.c.b16 %v1045, %v1044
    %v1139 = vpack.c.b16 %v1047, %v1046
    %v1140 = vpack.c.b16 %v1049, %v1048
    %v1141 = vpack.c.b16 %v1051, %v1050
    %v1142 = vpack.c.b16 %v1053, %v1052
    %v1143 = vpack.c.b16 %v1055, %v1054
    %v1144 = vpack.c.b16 %v1057, %v1056
    %v1145 = vpack.c.b16 %v1059, %v1058
    %v1146 = vpack.c.b16 %v1061, %v1060
    %v1147 = vpack.c.b16 %v1063, %v1062
    %v1148 = vpack.c.b16 %v1065, %v1064
    %v1149 = vpack.c.b16 %v1067, %v1066
    %v1150 = vpack.c.b16 %v1069, %v1068
    %v1151 = vpack.c.b16 %v1071, %v1070
    %v1152 = vpack.c.b16 %v1073, %v1072
    %v1153 = vpack.c.b16 %v1075, %v1074
    %v1154 = vpack.c.b16 %v1077, %v1076
    %v1155 = vpack.c.b16 %v1079, %v1078
    %v1156 = vpack.c.b16 %v1081, %v1080
    %v1157 = vpack.c.b16 %v1083, %v1082
    %v1158 = vpack.c.b16 %v1085, %v1084
    %v1159 = vpack.c.b16 %v1087, %v1086
    %v1160 = vpack.c.b16 %v1089, %v1088
    %v1161 = vpack.c.b16 %v1091, %v1090
    %v1162 = vpack.c.b16 %v1093, %v1092
    %v1163 = vpack.c.b16 %v1095, %v1094
    %v1164 = vpack.c.b16 %v1097, %v1096
    %v1165 = vpack.c.b16 %v1099, %v1098
    %v1166 = vpack.c.b16 %v1101, %v1100
    %v1167 = vpack.c.b16 %v1103, %v1102
    %v1168 = vpack.c.b16 %v1105, %v1104
    %v1169 = vpack.c.b16 %v1107, %v1106
    %v1170 = vpack.c.b16 %v1109, %v1108
    %v1171 = vpack.c.b16 %v1111, %v1110
    %v1172 = vpack.c.b16 %v1113, %v1112
    %v1173 = vpack.c.b16 %v1115, %v1114
    %v1174 = vpack.c.b16 %v1117, %v1116
    %v1175 = vpack.c.b16 %v1119, %v1118
    %1232 = vmatprep.subr.bf16.mxu0 0
    %1233 = vmatpush1.bf16.msra.mxu0 %v1120
    %1234 = vmatprep.subr.bf16.mxu0 0
    %1235 = vmatpush1.bf16.msra.mxu0 %v1121
    %1236 = vmatprep.subr.bf16.mxu0 0
    %1237 = vmatpush1.bf16.msra.mxu0 %v1122
    %1238 = vmatprep.subr.bf16.mxu0 0
    %1239 = vmatpush1.bf16.msra.mxu0 %v1123
    %1240 = vmatprep.subr.bf16.mxu0 0
    %1241 = vmatpush1.bf16.msra.mxu0 %v1124
    %1242 = vmatprep.subr.bf16.mxu0 0
    %1243 = vmatpush1.bf16.msra.mxu0 %v1125
    %1244 = vmatprep.subr.bf16.mxu0 0
    %1245 = vmatpush1.bf16.msra.mxu0 %v1126
    %1246 = vmatprep.subr.bf16.mxu0 0
    %1247 = vmatpush1.bf16.msra.mxu0 %v1127
    %1248 = vmatprep.subr.bf16.mxu0 0
    %1249 = vmatpush1.bf16.msra.mxu0 %v1128
    %1250 = vmatprep.subr.bf16.mxu0 0
    %1251 = vmatpush1.bf16.msra.mxu0 %v1129
    %1252 = vmatprep.subr.bf16.mxu0 0
    %1253 = vmatpush1.bf16.msra.mxu0 %v1130
    %1254 = vmatprep.subr.bf16.mxu0 0
    %1255 = vmatpush1.bf16.msra.mxu0 %v1131
    %1256 = vmatprep.subr.bf16.mxu0 0
    %1257 = vmatpush1.bf16.msra.mxu0 %v1132
    %1258 = vmatprep.subr.bf16.mxu0 0
    %1259 = vmatpush1.bf16.msra.mxu0 %v1133
    %1260 = vmatprep.subr.bf16.mxu0 0
    %1261 = vmatpush1.bf16.msra.mxu0 %v1134
    %1262 = vmatprep.subr.bf16.mxu0 0
    %1263 = vmatpush1.bf16.msra.mxu0 %v1135
    %1264 = vmatprep.mubr.bf16.mxu0 %v673
    %1265 = vmatmul.mubr.bf16.gmra.mrb[0].mxu0 %v672
    %v1266 = vpop.f32.mrb[0].mxu0
    %v1267 = vadd.f32 0.0, %v1266
    %v1268 = vpop.f32.mrb[0].mxu0
    %v1269 = vpop.f32.mrb[0].mxu0
    %v1270 = vadd.f32 0.0, %v1269
    %v1271 = vpop.f32.mrb[0].mxu0
    %1272 = vmatprep.mubr.bf16.mxu0 %v680
    %1273 = vmatmul.mubr.bf16.gmra.mrb[0].mxu0 %v679
    %v1274 = vpop.f32.mrb[0].mxu0
    %v1275 = vadd.f32 0.0, %v1274
    %v1276 = vpop.f32.mrb[0].mxu0
    %v1277 = vpop.f32.mrb[0].mxu0
    %v1278 = vadd.f32 0.0, %v1277
    %v1279 = vpop.f32.mrb[0].mxu0
    %1280 = vmatprep.mubr.bf16.mxu0 %v687
    %1281 = vmatmul.mubr.bf16.gmra.mrb[0].mxu0 %v686
    %v1282 = vpop.f32.mrb[0].mxu0
    %v1283 = vadd.f32 0.0, %v1282
    %v1284 = vpop.f32.mrb[0].mxu0
    %v1285 = vpop.f32.mrb[0].mxu0
    %v1286 = vadd.f32 0.0, %v1285
    %v1287 = vpop.f32.mrb[0].mxu0
    %1288 = vmatprep.mubr.bf16.mxu0 %v694
    %1289 = vmatmul.mubr.bf16.gmra.mrb[0].mxu0 %v693
    %v1290 = vpop.f32.mrb[0].mxu0
    %v1291 = vadd.f32 0.0, %v1290
    %v1292 = vpop.f32.mrb[0].mxu0
    %v1293 = vpop.f32.mrb[0].mxu0
    %v1294 = vadd.f32 0.0, %v1293
    %v1295 = vpop.f32.mrb[0].mxu0
    %1296 = vmatprep.mubr.bf16.mxu0 %v701
    %1297 = vmatmul.mubr.bf16.gmra.mrb[0].mxu0 %v700
    %v1298 = vpop.f32.mrb[0].mxu0
    %v1299 = vadd.f32 0.0, %v1298
    %v1300 = vpop.f32.mrb[0].mxu0
    %v1301 = vpop.f32.mrb[0].mxu0
    %v1302 = vadd.f32 0.0, %v1301
    %v1303 = vpop.f32.mrb[0].mxu0
    %1304 = vmatprep.mubr.bf16.mxu0 %v708
    %1305 = vmatmul.mubr.bf16.gmra.mrb[0].mxu0 %v707
    %v1306 = vpop.f32.mrb[0].mxu0
    %v1307 = vadd.f32 0.0, %v1306
    %v1308 = vpop.f32.mrb[0].mxu0
    %v1309 = vpop.f32.mrb[0].mxu0
    %v1310 = vadd.f32 0.0, %v1309
    %v1311 = vpop.f32.mrb[0].mxu0
    %1312 = vmatprep.mubr.bf16.mxu0 %v715
    %1313 = vmatmul.mubr.bf16.gmra.mrb[0].mxu0 %v714
    %v1314 = vpop.f32.mrb[0].mxu0
    %v1315 = vadd.f32 0.0, %v1314
    %v1316 = vpop.f32.mrb[0].mxu0
    %v1317 = vpop.f32.mrb[0].mxu0
    %v1318 = vadd.f32 0.0, %v1317
    %v1319 = vpop.f32.mrb[0].mxu0
    %1320 = vmatprep.mubr.bf16.mxu0 %v722
    %1321 = vmatmul.mubr.bf16.gmra.mrb[0].mxu0 %v721
    %v1322 = vpop.f32.mrb[0].mxu0
    %v1323 = vadd.f32 0.0, %v1322
    %v1324 = vpop.f32.mrb[0].mxu0
    %v1325 = vpop.f32.mrb[0].mxu0
    %v1326 = vadd.f32 0.0, %v1325
    %v1327 = vpop.f32.mrb[0].mxu0
    %1328 = vmatprep.mubr.bf16.mxu0 %v729
    %1329 = vmatmul.mubr.bf16.gmra.mrb[0].mxu0 %v728
    %v1330 = vpop.f32.mrb[0].mxu0
    %v1331 = vadd.f32 0.0, %v1330
    %v1332 = vpop.f32.mrb[0].mxu0
    %v1333 = vpop.f32.mrb[0].mxu0
    %v1334 = vadd.f32 0.0, %v1333
    %v1335 = vpop.f32.mrb[0].mxu0
    %1336 = vmatprep.mubr.bf16.mxu0 %v736
    %1337 = vmatmul.mubr.bf16.gmra.mrb[0].mxu0 %v735
    %v1338 = vpop.f32.mrb[0].mxu0
    %v1339 = vadd.f32 0.0, %v1338
    %v1340 = vpop.f32.mrb[0].mxu0
    %v1341 = vpop.f32.mrb[0].mxu0
    %v1342 = vadd.f32 0.0, %v1341
    %v1343 = vpop.f32.mrb[0].mxu0
    %1344 = vmatprep.mubr.bf16.mxu0 %v743
    %1345 = vmatmul.mubr.bf16.gmra.mrb[0].mxu0 %v742
    %v1346 = vpop.f32.mrb[0].mxu0
    %v1347 = vadd.f32 0.0, %v1346
    %v1348 = vpop.f32.mrb[0].mxu0
    %v1349 = vpop.f32.mrb[0].mxu0
    %v1350 = vadd.f32 0.0, %v1349
    %v1351 = vpop.f32.mrb[0].mxu0
    %1352 = vmatprep.mubr.bf16.mxu0 %v750
    %1353 = vmatmul.mubr.bf16.gmra.mrb[0].mxu0 %v749
    %v1354 = vpop.f32.mrb[0].mxu0
    %v1355 = vadd.f32 0.0, %v1354
    %v1356 = vpop.f32.mrb[0].mxu0
    %v1357 = vpop.f32.mrb[0].mxu0
    %v1358 = vadd.f32 0.0, %v1357
    %v1359 = vpop.f32.mrb[0].mxu0
    %1360 = vmatprep.mubr.bf16.mxu0 %v757
    %1361 = vmatmul.mubr.bf16.gmra.mrb[0].mxu0 %v756
    %v1362 = vpop.f32.mrb[0].mxu0
    %v1363 = vadd.f32 0.0, %v1362
    %v1364 = vpop.f32.mrb[0].mxu0
    %v1365 = vpop.f32.mrb[0].mxu0
    %v1366 = vadd.f32 0.0, %v1365
    %v1367 = vpop.f32.mrb[0].mxu0
    %1368 = vmatprep.mubr.bf16.mxu0 %v764
    %1369 = vmatmul.mubr.bf16.gmra.mrb[0].mxu0 %v763
    %v1370 = vpop.f32.mrb[0].mxu0
    %v1371 = vadd.f32 0.0, %v1370
    %v1372 = vpop.f32.mrb[0].mxu0
    %v1373 = vpop.f32.mrb[0].mxu0
    %v1374 = vadd.f32 0.0, %v1373
    %v1375 = vpop.f32.mrb[0].mxu0
    %1376 = vmatprep.mubr.bf16.mxu0 %v771
    %1377 = vmatmul.mubr.bf16.gmra.mrb[0].mxu0 %v770
    %v1378 = vpop.f32.mrb[0].mxu0
    %v1379 = vadd.f32 0.0, %v1378
    %v1380 = vpop.f32.mrb[0].mxu0
    %v1381 = vpop.f32.mrb[0].mxu0
    %v1382 = vadd.f32 0.0, %v1381
    %v1383 = vpop.f32.mrb[0].mxu0
    %1384 = vmatprep.mubr.bf16.mxu0 %v778
    %1385 = vmatmul.mubr.bf16.gmra.mrb[0].mxu0 %v777
    %v1386 = vpop.f32.mrb[0].mxu0
    %v1387 = vadd.f32 0.0, %v1386
    %v1388 = vpop.f32.mrb[0].mxu0
    %v1389 = vpop.f32.mrb[0].mxu0
    %v1390 = vadd.f32 0.0, %v1389
    %v1391 = vpop.f32.mrb[0].mxu0
    %1392 = vdwg.mxu0
    %1393 = vmatprep.subr.bf16.mxu0 0
    %1394 = vmatpush1.bf16.msra.mxu0 %v1136
    %1395 = vmatprep.subr.bf16.mxu0 0
    %1396 = vmatpush1.bf16.msra.mxu0 %v1137
    %1397 = vmatprep.subr.bf16.mxu0 0
    %1398 = vmatpush1.bf16.msra.mxu0 %v1138
    %1399 = vmatprep.subr.bf16.mxu0 0
    %1400 = vmatpush1.bf16.msra.mxu0 %v1139
    %1401 = vmatprep.subr.bf16.mxu0 0
    %1402 = vmatpush1.bf16.msra.mxu0 %v1140
    %1403 = vmatprep.subr.bf16.mxu0 0
    %1404 = vmatpush1.bf16.msra.mxu0 %v1141
    %1405 = vmatprep.subr.bf16.mxu0 0
    %1406 = vmatpush1.bf16.msra.mxu0 %v1142
    %1407 = vmatprep.subr.bf16.mxu0 0
    %1408 = vmatpush1.bf16.msra.mxu0 %v1143
    %1409 = vmatprep.subr.bf16.mxu0 0
    %1410 = vmatpush1.bf16.msra.mxu0 %v1144
    %1411 = vmatprep.subr.bf16.mxu0 0
    %1412 = vmatpush1.bf16.msra.mxu0 %v1145
    %1413 = vmatprep.subr.bf16.mxu0 0
    %1414 = vmatpush1.bf16.msra.mxu0 %v1146
    %1415 = vmatprep.subr.bf16.mxu0 0
    %1416 = vmatpush1.bf16.msra.mxu0 %v1147
    %1417 = vmatprep.subr.bf16.mxu0 0
    %1418 = vmatpush1.bf16.msra.mxu0 %v1148
    %1419 = vmatprep.subr.bf16.mxu0 0
    %1420 = vmatpush1.bf16.msra.mxu0 %v1149
    %1421 = vmatprep.subr.bf16.mxu0 0
    %1422 = vmatpush1.bf16.msra.mxu0 %v1150
    %1423 = vmatprep.subr.bf16.mxu0 0
    %1424 = vmatpush1.bf16.msra.mxu0 %v1151
    %1425 = vmatprep.mubr.bf16.mxu0 %v675
    %1426 = vmatmul.mubr.bf16.gmra.mrb[0].mxu0 %v674
    %v1427 = vpop.f32.mrb[0].mxu0
    %v1428 = vadd.f32 %v1267, %v1427
    %v1429 = vpop.f32.mrb[0].mxu0
    %v1430 = vpop.f32.mrb[0].mxu0
    %v1431 = vadd.f32 %v1270, %v1430
    %v1432 = vpop.f32.mrb[0].mxu0
    %1433 = vmatprep.mubr.bf16.mxu0 %v682
    %1434 = vmatmul.mubr.bf16.gmra.mrb[0].mxu0 %v681
    %v1435 = vpop.f32.mrb[0].mxu0
    %v1436 = vadd.f32 %v1275, %v1435
    %v1437 = vpop.f32.mrb[0].mxu0
    %v1438 = vpop.f32.mrb[0].mxu0
    %v1439 = vadd.f32 %v1278, %v1438
    %v1440 = vpop.f32.mrb[0].mxu0
    %1441 = vmatprep.mubr.bf16.mxu0 %v689
    %1442 = vmatmul.mubr.bf16.gmra.mrb[0].mxu0 %v688
    %v1443 = vpop.f32.mrb[0].mxu0
    %v1444 = vadd.f32 %v1283, %v1443
    %v1445 = vpop.f32.mrb[0].mxu0
    %v1446 = vpop.f32.mrb[0].mxu0
    %v1447 = vadd.f32 %v1286, %v1446
    %v1448 = vpop.f32.mrb[0].mxu0
    %1449 = vmatprep.mubr.bf16.mxu0 %v696
    %1450 = vmatmul.mubr.bf16.gmra.mrb[0].mxu0 %v695
    %v1451 = vpop.f32.mrb[0].mxu0
    %v1452 = vadd.f32 %v1291, %v1451
    %v1453 = vpop.f32.mrb[0].mxu0
    %v1454 = vpop.f32.mrb[0].mxu0
    %v1455 = vadd.f32 %v1294, %v1454
    %v1456 = vpop.f32.mrb[0].mxu0
    %1457 = vmatprep.mubr.bf16.mxu0 %v703
    %1458 = vmatmul.mubr.bf16.gmra.mrb[0].mxu0 %v702
    %v1459 = vpop.f32.mrb[0].mxu0
    %v1460 = vadd.f32 %v1299, %v1459
    %v1461 = vpop.f32.mrb[0].mxu0
    %v1462 = vpop.f32.mrb[0].mxu0
    %v1463 = vadd.f32 %v1302, %v1462
    %v1464 = vpop.f32.mrb[0].mxu0
    %1465 = vmatprep.mubr.bf16.mxu0 %v710
    %1466 = vmatmul.mubr.bf16.gmra.mrb[0].mxu0 %v709
    %v1467 = vpop.f32.mrb[0].mxu0
    %v1468 = vadd.f32 %v1307, %v1467
    %v1469 = vpop.f32.mrb[0].mxu0
    %v1470 = vpop.f32.mrb[0].mxu0
    %v1471 = vadd.f32 %v1310, %v1470
    %v1472 = vpop.f32.mrb[0].mxu0
    %1473 = vmatprep.mubr.bf16.mxu0 %v717
    %1474 = vmatmul.mubr.bf16.gmra.mrb[0].mxu0 %v716
    %v1475 = vpop.f32.mrb[0].mxu0
    %v1476 = vadd.f32 %v1315, %v1475
    %v1477 = vpop.f32.mrb[0].mxu0
    %v1478 = vpop.f32.mrb[0].mxu0
    %v1479 = vadd.f32 %v1318, %v1478
    %v1480 = vpop.f32.mrb[0].mxu0
    %1481 = vmatprep.mubr.bf16.mxu0 %v724
    %1482 = vmatmul.mubr.bf16.gmra.mrb[0].mxu0 %v723
    %v1483 = vpop.f32.mrb[0].mxu0
    %v1484 = vadd.f32 %v1323, %v1483
    %v1485 = vpop.f32.mrb[0].mxu0
    %v1486 = vpop.f32.mrb[0].mxu0
    %v1487 = vadd.f32 %v1326, %v1486
    %v1488 = vpop.f32.mrb[0].mxu0
    %1489 = vmatprep.mubr.bf16.mxu0 %v731
    %1490 = vmatmul.mubr.bf16.gmra.mrb[0].mxu0 %v730
    %v1491 = vpop.f32.mrb[0].mxu0
    %v1492 = vadd.f32 %v1331, %v1491
    %v1493 = vpop.f32.mrb[0].mxu0
    %v1494 = vpop.f32.mrb[0].mxu0
    %v1495 = vadd.f32 %v1334, %v1494
    %v1496 = vpop.f32.mrb[0].mxu0
    %1497 = vmatprep.mubr.bf16.mxu0 %v738
    %1498 = vmatmul.mubr.bf16.gmra.mrb[0].mxu0 %v737
    %v1499 = vpop.f32.mrb[0].mxu0
    %v1500 = vadd.f32 %v1339, %v1499
    %v1501 = vpop.f32.mrb[0].mxu0
    %v1502 = vpop.f32.mrb[0].mxu0
    %v1503 = vadd.f32 %v1342, %v1502
    %v1504 = vpop.f32.mrb[0].mxu0
    %1505 = vmatprep.mubr.bf16.mxu0 %v745
    %1506 = vmatmul.mubr.bf16.gmra.mrb[0].mxu0 %v744
    %v1507 = vpop.f32.mrb[0].mxu0
    %v1508 = vadd.f32 %v1347, %v1507
    %v1509 = vpop.f32.mrb[0].mxu0
    %v1510 = vpop.f32.mrb[0].mxu0
    %v1511 = vadd.f32 %v1350, %v1510
    %v1512 = vpop.f32.mrb[0].mxu0
    %1513 = vmatprep.mubr.bf16.mxu0 %v752
    %1514 = vmatmul.mubr.bf16.gmra.mrb[0].mxu0 %v751
    %v1515 = vpop.f32.mrb[0].mxu0
    %v1516 = vadd.f32 %v1355, %v1515
    %v1517 = vpop.f32.mrb[0].mxu0
    %v1518 = vpop.f32.mrb[0].mxu0
    %v1519 = vadd.f32 %v1358, %v1518
    %v1520 = vpop.f32.mrb[0].mxu0
    %1521 = vmatprep.mubr.bf16.mxu0 %v759
    %1522 = vmatmul.mubr.bf16.gmra.mrb[0].mxu0 %v758
    %v1523 = vpop.f32.mrb[0].mxu0
    %v1524 = vadd.f32 %v1363, %v1523
    %v1525 = vpop.f32.mrb[0].mxu0
    %v1526 = vpop.f32.mrb[0].mxu0
    %v1527 = vadd.f32 %v1366, %v1526
    %v1528 = vpop.f32.mrb[0].mxu0
    %1529 = vmatprep.mubr.bf16.mxu0 %v766
    %1530 = vmatmul.mubr.bf16.gmra.mrb[0].mxu0 %v765
    %v1531 = vpop.f32.mrb[0].mxu0
    %v1532 = vadd.f32 %v1371, %v1531
    %v1533 = vpop.f32.mrb[0].mxu0
    %v1534 = vpop.f32.mrb[0].mxu0
    %v1535 = vadd.f32 %v1374, %v1534
    %v1536 = vpop.f32.mrb[0].mxu0
    %1537 = vmatprep.mubr.bf16.mxu0 %v773
    %1538 = vmatmul.mubr.bf16.gmra.mrb[0].mxu0 %v772
    %v1539 = vpop.f32.mrb[0].mxu0
    %v1540 = vadd.f32 %v1379, %v1539
    %v1541 = vpop.f32.mrb[0].mxu0
    %v1542 = vpop.f32.mrb[0].mxu0
    %v1543 = vadd.f32 %v1382, %v1542
    %v1544 = vpop.f32.mrb[0].mxu0
    %1545 = vmatprep.mubr.bf16.mxu0 %v780
    %1546 = vmatmul.mubr.bf16.gmra.mrb[0].mxu0 %v779
    %v1547 = vpop.f32.mrb[0].mxu0
    %v1548 = vadd.f32 %v1387, %v1547
    %v1549 = vpop.f32.mrb[0].mxu0
    %v1550 = vpop.f32.mrb[0].mxu0
    %v1551 = vadd.f32 %v1390, %v1550
    %v1552 = vpop.f32.mrb[0].mxu0
    %1553 = vdwg.mxu0
    %1554 = vmatprep.subr.bf16.mxu0 0
    %1555 = vmatpush1.bf16.msra.mxu0 %v1152
    %1556 = vmatprep.subr.bf16.mxu0 0
    %1557 = vmatpush1.bf16.msra.mxu0 %v1153
    %1558 = vmatprep.subr.bf16.mxu0 0
    %1559 = vmatpush1.bf16.msra.mxu0 %v1154
    %1560 = vmatprep.subr.bf16.mxu0 0
    %1561 = vmatpush1.bf16.msra.mxu0 %v1155
    %1562 = vmatprep.subr.bf16.mxu0 0
    %1563 = vmatpush1.bf16.msra.mxu0 %v1156
    %1564 = vmatprep.subr.bf16.mxu0 0
    %1565 = vmatpush1.bf16.msra.mxu0 %v1157
    %1566 = vmatprep.subr.bf16.mxu0 0
    %1567 = vmatpush1.bf16.msra.mxu0 %v1158
    %1568 = vmatprep.subr.bf16.mxu0 0
    %1569 = vmatpush1.bf16.msra.mxu0 %v1159
    %1570 = vmatprep.subr.bf16.mxu0 0
    %1571 = vmatpush1.bf16.msra.mxu0 %v1160
    %1572 = vmatprep.subr.bf16.mxu0 0
    %1573 = vmatpush1.bf16.msra.mxu0 %v1161
    %1574 = vmatprep.subr.bf16.mxu0 0
    %1575 = vmatpush1.bf16.msra.mxu0 %v1162
    %1576 = vmatprep.subr.bf16.mxu0 0
    %1577 = vmatpush1.bf16.msra.mxu0 %v1163
    %1578 = vmatprep.subr.bf16.mxu0 0
    %1579 = vmatpush1.bf16.msra.mxu0 %v1164
    %1580 = vmatprep.subr.bf16.mxu0 0
    %1581 = vmatpush1.bf16.msra.mxu0 %v1165
    %1582 = vmatprep.subr.bf16.mxu0 0
    %1583 = vmatpush1.bf16.msra.mxu0 %v1166
    %1584 = vmatprep.subr.bf16.mxu0 0
    %1585 = vmatpush1.bf16.msra.mxu0 %v1167
    %1586 = vmatprep.mubr.bf16.mxu0 %v677
    %1587 = vmatmul.mubr.bf16.gmra.mrb[0].mxu0 %v676
    %v1588 = vpop.f32.mrb[0].mxu0
    %v1589 = vadd.f32 %v1428, %v1588
    %v1590 = vpop.f32.mrb[0].mxu0
    %v1591 = vpop.f32.mrb[0].mxu0
    %v1592 = vadd.f32 %v1431, %v1591
    %v1593 = vpop.f32.mrb[0].mxu0
    %1594 = vmatprep.mubr.bf16.mxu0 %v684
    %1595 = vmatmul.mubr.bf16.gmra.mrb[0].mxu0 %v683
    %v1596 = vpop.f32.mrb[0].mxu0
    %v1597 = vadd.f32 %v1436, %v1596
    %v1598 = vpop.f32.mrb[0].mxu0
    %v1599 = vpop.f32.mrb[0].mxu0
    %v1600 = vadd.f32 %v1439, %v1599
    %v1601 = vpop.f32.mrb[0].mxu0
    %1602 = vmatprep.mubr.bf16.mxu0 %v691
    %1603 = vmatmul.mubr.bf16.gmra.mrb[0].mxu0 %v690
    %v1604 = vpop.f32.mrb[0].mxu0
    %v1605 = vadd.f32 %v1444, %v1604
    %v1606 = vpop.f32.mrb[0].mxu0
    %v1607 = vpop.f32.mrb[0].mxu0
    %v1608 = vadd.f32 %v1447, %v1607
    %v1609 = vpop.f32.mrb[0].mxu0
    %1610 = vmatprep.mubr.bf16.mxu0 %v698
    %1611 = vmatmul.mubr.bf16.gmra.mrb[0].mxu0 %v697
    %v1612 = vpop.f32.mrb[0].mxu0
    %v1613 = vadd.f32 %v1452, %v1612
    %v1614 = vpop.f32.mrb[0].mxu0
    %v1615 = vpop.f32.mrb[0].mxu0
    %v1616 = vadd.f32 %v1455, %v1615
    %v1617 = vpop.f32.mrb[0].mxu0
    %1618 = vmatprep.mubr.bf16.mxu0 %v705
    %1619 = vmatmul.mubr.bf16.gmra.mrb[0].mxu0 %v704
    %v1620 = vpop.f32.mrb[0].mxu0
    %v1621 = vadd.f32 %v1460, %v1620
    %v1622 = vpop.f32.mrb[0].mxu0
    %v1623 = vpop.f32.mrb[0].mxu0
    %v1624 = vadd.f32 %v1463, %v1623
    %v1625 = vpop.f32.mrb[0].mxu0
    %1626 = vmatprep.mubr.bf16.mxu0 %v712
    %1627 = vmatmul.mubr.bf16.gmra.mrb[0].mxu0 %v711
    %v1628 = vpop.f32.mrb[0].mxu0
    %v1629 = vadd.f32 %v1468, %v1628
    %v1630 = vpop.f32.mrb[0].mxu0
    %v1631 = vpop.f32.mrb[0].mxu0
    %v1632 = vadd.f32 %v1471, %v1631
    %v1633 = vpop.f32.mrb[0].mxu0
    %1634 = vmatprep.mubr.bf16.mxu0 %v719
    %1635 = vmatmul.mubr.bf16.gmra.mrb[0].mxu0 %v718
    %v1636 = vpop.f32.mrb[0].mxu0
    %v1637 = vadd.f32 %v1476, %v1636
    %v1638 = vpop.f32.mrb[0].mxu0
    %v1639 = vpop.f32.mrb[0].mxu0
    %v1640 = vadd.f32 %v1479, %v1639
    %v1641 = vpop.f32.mrb[0].mxu0
    %1642 = vmatprep.mubr.bf16.mxu0 %v726
    %1643 = vmatmul.mubr.bf16.gmra.mrb[0].mxu0 %v725
    %v1644 = vpop.f32.mrb[0].mxu0
    %v1645 = vadd.f32 %v1484, %v1644
    %v1646 = vpop.f32.mrb[0].mxu0
    %v1647 = vpop.f32.mrb[0].mxu0
    %v1648 = vadd.f32 %v1487, %v1647
    %v1649 = vpop.f32.mrb[0].mxu0
    %1650 = vmatprep.mubr.bf16.mxu0 %v733
    %1651 = vmatmul.mubr.bf16.gmra.mrb[0].mxu0 %v732
    %v1652 = vpop.f32.mrb[0].mxu0
    %v1653 = vadd.f32 %v1492, %v1652
    %v1654 = vpop.f32.mrb[0].mxu0
    %v1655 = vpop.f32.mrb[0].mxu0
    %v1656 = vadd.f32 %v1495, %v1655
    %v1657 = vpop.f32.mrb[0].mxu0
    %1658 = vmatprep.mubr.bf16.mxu0 %v740
    %1659 = vmatmul.mubr.bf16.gmra.mrb[0].mxu0 %v739
    %v1660 = vpop.f32.mrb[0].mxu0
    %v1661 = vadd.f32 %v1500, %v1660
    %v1662 = vpop.f32.mrb[0].mxu0
    %v1663 = vpop.f32.mrb[0].mxu0
    %v1664 = vadd.f32 %v1503, %v1663
    %v1665 = vpop.f32.mrb[0].mxu0
    %1666 = vmatprep.mubr.bf16.mxu0 %v747
    %1667 = vmatmul.mubr.bf16.gmra.mrb[0].mxu0 %v746
    %v1668 = vpop.f32.mrb[0].mxu0
    %v1669 = vadd.f32 %v1508, %v1668
    %v1670 = vpop.f32.mrb[0].mxu0
    %v1671 = vpop.f32.mrb[0].mxu0
    %v1672 = vadd.f32 %v1511, %v1671
    %v1673 = vpop.f32.mrb[0].mxu0
    %1674 = vmatprep.mubr.bf16.mxu0 %v754
    %1675 = vmatmul.mubr.bf16.gmra.mrb[0].mxu0 %v753
    %v1676 = vpop.f32.mrb[0].mxu0
    %v1677 = vadd.f32 %v1516, %v1676
    %v1678 = vpop.f32.mrb[0].mxu0
    %v1679 = vpop.f32.mrb[0].mxu0
    %v1680 = vadd.f32 %v1519, %v1679
    %v1681 = vpop.f32.mrb[0].mxu0
    %1682 = vmatprep.mubr.bf16.mxu0 %v761
    %1683 = vmatmul.mubr.bf16.gmra.mrb[0].mxu0 %v760
    %v1684 = vpop.f32.mrb[0].mxu0
    %v1685 = vadd.f32 %v1524, %v1684
    %v1686 = vpop.f32.mrb[0].mxu0
    %v1687 = vpop.f32.mrb[0].mxu0
    %v1688 = vadd.f32 %v1527, %v1687
    %v1689 = vpop.f32.mrb[0].mxu0
    %1690 = vmatprep.mubr.bf16.mxu0 %v768
    %1691 = vmatmul.mubr.bf16.gmra.mrb[0].mxu0 %v767
    %v1692 = vpop.f32.mrb[0].mxu0
    %v1693 = vadd.f32 %v1532, %v1692
    %v1694 = vpop.f32.mrb[0].mxu0
    %v1695 = vpop.f32.mrb[0].mxu0
    %v1696 = vadd.f32 %v1535, %v1695
    %v1697 = vpop.f32.mrb[0].mxu0
    %1698 = vmatprep.mubr.bf16.mxu0 %v775
    %1699 = vmatmul.mubr.bf16.gmra.mrb[0].mxu0 %v774
    %v1700 = vpop.f32.mrb[0].mxu0
    %v1701 = vadd.f32 %v1540, %v1700
    %v1702 = vpop.f32.mrb[0].mxu0
    %v1703 = vpop.f32.mrb[0].mxu0
    %v1704 = vadd.f32 %v1543, %v1703
    %v1705 = vpop.f32.mrb[0].mxu0
    %1706 = vmatprep.mubr.bf16.mxu0 %v782
    %1707 = vmatmul.mubr.bf16.gmra.mrb[0].mxu0 %v781
    %v1708 = vpop.f32.mrb[0].mxu0
    %v1709 = vadd.f32 %v1548, %v1708
    %v1710 = vpop.f32.mrb[0].mxu0
    %v1711 = vpop.f32.mrb[0].mxu0
    %v1712 = vadd.f32 %v1551, %v1711
    %v1713 = vpop.f32.mrb[0].mxu0
    %1714 = vdwg.mxu0
    %1715 = vmatprep.subr.bf16.mxu0 0
    %1716 = vmatpush1.bf16.msra.mxu0 %v1168
    %1717 = vmatprep.subr.bf16.mxu0 0
    %1718 = vmatpush1.bf16.msra.mxu0 %v1169
    %1719 = vmatprep.subr.bf16.mxu0 0
    %1720 = vmatpush1.bf16.msra.mxu0 %v1170
    %1721 = vmatprep.subr.bf16.mxu0 0
    %1722 = vmatpush1.bf16.msra.mxu0 %v1171
    %1723 = vmatprep.subr.bf16.mxu0 0
    %1724 = vmatpush1.bf16.msra.mxu0 %v1172
    %1725 = vmatprep.subr.bf16.mxu0 0
    %1726 = vmatpush1.bf16.msra.mxu0 %v1173
    %1727 = vmatprep.subr.bf16.mxu0 0
    %1728 = vmatpush1.bf16.msra.mxu0 %v1174
    %1729 = vmatprep.subr.bf16.mxu0 0
    %1730 = vmatpush1.bf16.msra.mxu0 %v1175
    %1731 = vmatprep.subr.bf16.mxu0 0
    %1732 = vmatpush1.bf16.msra.mxu0 0
    %1733 = vmatprep.subr.bf16.mxu0 0
    %1734 = vmatpush1.bf16.msra.mxu0 0
    %1735 = vmatprep.subr.bf16.mxu0 0
    %1736 = vmatpush1.bf16.msra.mxu0 0
    %1737 = vmatprep.subr.bf16.mxu0 0
    %1738 = vmatpush1.bf16.msra.mxu0 0
    %1739 = vmatprep.subr.bf16.mxu0 0
    %1740 = vmatpush1.bf16.msra.mxu0 0
    %1741 = vmatprep.subr.bf16.mxu0 0
    %1742 = vmatpush1.bf16.msra.mxu0 0
    %1743 = vmatprep.subr.bf16.mxu0 0
    %1744 = vmatpush1.bf16.msra.mxu0 0
    %1745 = vmatprep.subr.bf16.mxu0 0
    %1746 = vmatpush1.bf16.msra.mxu0 0
    %1747 = vmatprep.mubr.bf16.mxu0 0
    %1748 = vmatmul.mubr.bf16.gmra.mrb[0].mxu0 %v678
    %v1749 = vpop.f32.mrb[0].mxu0
    %v1750 = vadd.f32 %v1589, %v1749
    %v1751 = vpop.f32.mrb[0].mxu0
    %v1752 = vpop.f32.mrb[0].mxu0
    %v1753 = vadd.f32 %v1592, %v1752
    %v1754 = vpop.f32.mrb[0].mxu0
    %1755 = vmatprep.mubr.bf16.mxu0 0
    %1756 = vmatmul.mubr.bf16.gmra.mrb[0].mxu0 %v685
    %v1757 = vpop.f32.mrb[0].mxu0
    %v1758 = vadd.f32 %v1597, %v1757
    %v1759 = vpop.f32.mrb[0].mxu0
    %v1760 = vpop.f32.mrb[0].mxu0
    %v1761 = vadd.f32 %v1600, %v1760
    %v1762 = vpop.f32.mrb[0].mxu0
    %1763 = vmatprep.mubr.bf16.mxu0 0
    %1764 = vmatmul.mubr.bf16.gmra.mrb[0].mxu0 %v692
    %v1765 = vpop.f32.mrb[0].mxu0
    %v1766 = vadd.f32 %v1605, %v1765
    %v1767 = vpop.f32.mrb[0].mxu0
    %v1768 = vpop.f32.mrb[0].mxu0
    %v1769 = vadd.f32 %v1608, %v1768
    %v1770 = vpop.f32.mrb[0].mxu0
    %1771 = vmatprep.mubr.bf16.mxu0 0
    %1772 = vmatmul.mubr.bf16.gmra.mrb[0].mxu0 %v699
    %v1773 = vpop.f32.mrb[0].mxu0
    %v1774 = vadd.f32 %v1613, %v1773
    %v1775 = vpop.f32.mrb[0].mxu0
    %v1776 = vpop.f32.mrb[0].mxu0
    %v1777 = vadd.f32 %v1616, %v1776
    %v1778 = vpop.f32.mrb[0].mxu0
    %1779 = vmatprep.mubr.bf16.mxu0 0
    %1780 = vmatmul.mubr.bf16.gmra.mrb[0].mxu0 %v706
    %v1781 = vpop.f32.mrb[0].mxu0
    %v1782 = vadd.f32 %v1621, %v1781
    %v1783 = vpop.f32.mrb[0].mxu0
    %v1784 = vpop.f32.mrb[0].mxu0
    %v1785 = vadd.f32 %v1624, %v1784
    %v1786 = vpop.f32.mrb[0].mxu0
    %1787 = vmatprep.mubr.bf16.mxu0 0
    %1788 = vmatmul.mubr.bf16.gmra.mrb[0].mxu0 %v713
    %v1789 = vpop.f32.mrb[0].mxu0
    %v1790 = vadd.f32 %v1629, %v1789
    %v1791 = vpop.f32.mrb[0].mxu0
    %v1792 = vpop.f32.mrb[0].mxu0
    %v1793 = vadd.f32 %v1632, %v1792
    %v1794 = vpop.f32.mrb[0].mxu0
    %1795 = vmatprep.mubr.bf16.mxu0 0
    %1796 = vmatmul.mubr.bf16.gmra.mrb[0].mxu0 %v720
    %v1797 = vpop.f32.mrb[0].mxu0
    %v1798 = vadd.f32 %v1637, %v1797
    %v1799 = vpop.f32.mrb[0].mxu0
    %v1800 = vpop.f32.mrb[0].mxu0
    %v1801 = vadd.f32 %v1640, %v1800
    %v1802 = vpop.f32.mrb[0].mxu0
    %1803 = vmatprep.mubr.bf16.mxu0 0
    %1804 = vmatmul.mubr.bf16.gmra.mrb[0].mxu0 %v727
    %v1805 = vpop.f32.mrb[0].mxu0
    %v1806 = vadd.f32 %v1645, %v1805
    %v1807 = vpop.f32.mrb[0].mxu0
    %v1808 = vpop.f32.mrb[0].mxu0
    %v1809 = vadd.f32 %v1648, %v1808
    %v1810 = vpop.f32.mrb[0].mxu0
    %1811 = vmatprep.mubr.bf16.mxu0 0
    %1812 = vmatmul.mubr.bf16.gmra.mrb[0].mxu0 %v734
    %v1813 = vpop.f32.mrb[0].mxu0
    %v1814 = vadd.f32 %v1653, %v1813
    %v1815 = vpop.f32.mrb[0].mxu0
    %v1816 = vpop.f32.mrb[0].mxu0
    %v1817 = vadd.f32 %v1656, %v1816
    %v1818 = vpop.f32.mrb[0].mxu0
    %1819 = vmatprep.mubr.bf16.mxu0 0
    %1820 = vmatmul.mubr.bf16.gmra.mrb[0].mxu0 %v741
    %v1821 = vpop.f32.mrb[0].mxu0
    %v1822 = vadd.f32 %v1661, %v1821
    %v1823 = vpop.f32.mrb[0].mxu0
    %v1824 = vpop.f32.mrb[0].mxu0
    %v1825 = vadd.f32 %v1664, %v1824
    %v1826 = vpop.f32.mrb[0].mxu0
    %1827 = vmatprep.mubr.bf16.mxu0 0
    %1828 = vmatmul.mubr.bf16.gmra.mrb[0].mxu0 %v748
    %v1829 = vpop.f32.mrb[0].mxu0
    %v1830 = vadd.f32 %v1669, %v1829
    %v1831 = vpop.f32.mrb[0].mxu0
    %v1832 = vpop.f32.mrb[0].mxu0
    %v1833 = vadd.f32 %v1672, %v1832
    %v1834 = vpop.f32.mrb[0].mxu0
    %1835 = vmatprep.mubr.bf16.mxu0 0
    %1836 = vmatmul.mubr.bf16.gmra.mrb[0].mxu0 %v755
    %v1837 = vpop.f32.mrb[0].mxu0
    %v1838 = vadd.f32 %v1677, %v1837
    %v1839 = vpop.f32.mrb[0].mxu0
    %v1840 = vpop.f32.mrb[0].mxu0
    %v1841 = vadd.f32 %v1680, %v1840
    %v1842 = vpop.f32.mrb[0].mxu0
    %1843 = vmatprep.mubr.bf16.mxu0 0
    %1844 = vmatmul.mubr.bf16.gmra.mrb[0].mxu0 %v762
    %v1845 = vpop.f32.mrb[0].mxu0
    %v1846 = vadd.f32 %v1685, %v1845
    %v1847 = vpop.f32.mrb[0].mxu0
    %v1848 = vpop.f32.mrb[0].mxu0
    %v1849 = vadd.f32 %v1688, %v1848
    %v1850 = vpop.f32.mrb[0].mxu0
    %1851 = vmatprep.mubr.bf16.mxu0 0
    %1852 = vmatmul.mubr.bf16.gmra.mrb[0].mxu0 %v769
    %v1853 = vpop.f32.mrb[0].mxu0
    %v1854 = vadd.f32 %v1693, %v1853
    %v1855 = vpop.f32.mrb[0].mxu0
    %v1856 = vpop.f32.mrb[0].mxu0
    %v1857 = vadd.f32 %v1696, %v1856
    %v1858 = vpop.f32.mrb[0].mxu0
    %1859 = vmatprep.mubr.bf16.mxu0 0
    %1860 = vmatmul.mubr.bf16.gmra.mrb[0].mxu0 %v776
    %v1861 = vpop.f32.mrb[0].mxu0
    %v1862 = vadd.f32 %v1701, %v1861
    %v1863 = vpop.f32.mrb[0].mxu0
    %v1864 = vpop.f32.mrb[0].mxu0
    %v1865 = vadd.f32 %v1704, %v1864
    %v1866 = vpop.f32.mrb[0].mxu0
    %1867 = vmatprep.mubr.bf16.mxu0 0
    %1868 = vmatmul.mubr.bf16.gmra.mrb[0].mxu0 %v783
    %v1869 = vpop.f32.mrb[0].mxu0
    %v1870 = vadd.f32 %v1709, %v1869
    %v1871 = vpop.f32.mrb[0].mxu0
    %v1872 = vpop.f32.mrb[0].mxu0
    %v1873 = vadd.f32 %v1712, %v1872
    %v1874 = vpop.f32.mrb[0].mxu0
    %1875 = vdwg.mxu0
    %v1876 = vld [vmem:[%s4] sm:$0x1]
    %v1877 = vld [vmem:[%s4 + $0x1] sm:$0x1]
    %v1878 = vadd.f32 %v1750, %v1753
    %v1879 = vadd.f32 %v1878, %v1758
    %v1880 = vadd.f32 %v1879, %v1761
    %v1881 = vadd.f32 %v1880, %v1766
    %v1882 = vadd.f32 %v1881, %v1769
    %v1883 = vadd.f32 %v1882, %v1774
    %v1884 = vadd.f32 %v1883, %v1777
    %v1885 = vadd.f32 %v1884, %v1782
    %v1886 = vadd.f32 %v1885, %v1785
    %v1887 = vadd.f32 %v1886, %v1790
    %v1888 = vadd.f32 %v1887, %v1793
    %v1889 = vadd.f32 %v1888, %v1798
    %v1890 = vadd.f32 %v1889, %v1801
    %v1891 = vadd.f32 %v1890, %v1806
    %v1892 = vadd.f32 %v1891, %v1809
    %v1893 = vadd.f32 %v1892, %v1814
    %v1894 = vadd.f32 %v1893, %v1817
    %v1895 = vadd.f32 %v1894, %v1822
    %v1896 = vadd.f32 %v1895, %v1825
    %v1897 = vadd.f32 %v1896, %v1830
    %v1898 = vadd.f32 %v1897, %v1833
    %v1899 = vadd.f32 %v1898, %v1838
    %v1900 = vadd.f32 %v1899, %v1841
    %v1901 = vadd.f32 %v1900, %v1846
    %v1902 = vadd.f32 %v1901, %v1849
    %v1903 = vadd.f32 %v1902, %v1854
    %v1904 = vadd.f32 %v1903, %v1857
    %v1905 = vadd.f32 %v1904, %v1862
    %v1906 = vadd.f32 %v1905, %v1865
    %v1907 = vadd.f32 %v1906, %v1870
    %v1908 = vadd.f32 %v1907, %v1873
    %v1909 = vrot.slane %v1908, 4
    %v1910 = vadd.f32 %v1908, %v1909
    %v1911 = vrot.slane %v1910, 2
    %v1912 = vadd.f32 %v1910, %v1911
    %v1913 = vrot.slane %v1912, 1
    %v1914 = vadd.f32 %v1912, %v1913
    %v1915 = vmul.f32 %v1750, %v1750
    %v1916 = vmul.f32 %v1753, %v1753
    %v1917 = vmul.f32 %v1758, %v1758
    %v1918 = vmul.f32 %v1761, %v1761
    %v1919 = vmul.f32 %v1766, %v1766
    %v1920 = vmul.f32 %v1769, %v1769
    %v1921 = vmul.f32 %v1774, %v1774
    %v1922 = vmul.f32 %v1777, %v1777
    %v1923 = vmul.f32 %v1782, %v1782
    %v1924 = vmul.f32 %v1785, %v1785
    %v1925 = vmul.f32 %v1790, %v1790
    %v1926 = vmul.f32 %v1793, %v1793
    %v1927 = vmul.f32 %v1798, %v1798
    %v1928 = vmul.f32 %v1801, %v1801
    %v1929 = vmul.f32 %v1806, %v1806
    %v1930 = vmul.f32 %v1809, %v1809
    %v1931 = vmul.f32 %v1814, %v1814
    %v1932 = vmul.f32 %v1817, %v1817
    %v1933 = vmul.f32 %v1822, %v1822
    %v1934 = vmul.f32 %v1825, %v1825
    %v1935 = vmul.f32 %v1830, %v1830
    %v1936 = vmul.f32 %v1833, %v1833
    %v1937 = vmul.f32 %v1838, %v1838
    %v1938 = vmul.f32 %v1841, %v1841
    %v1939 = vmul.f32 %v1846, %v1846
    %v1940 = vmul.f32 %v1849, %v1849
    %v1941 = vmul.f32 %v1854, %v1854
    %v1942 = vmul.f32 %v1857, %v1857
    %v1943 = vmul.f32 %v1862, %v1862
    %v1944 = vmul.f32 %v1865, %v1865
    %v1945 = vmul.f32 %v1870, %v1870
    %v1946 = vmul.f32 %v1873, %v1873
    %v1947 = vadd.f32 %v1915, %v1916
    %v1948 = vadd.f32 %v1947, %v1917
    %v1949 = vadd.f32 %v1948, %v1918
    %v1950 = vadd.f32 %v1949, %v1919
    %v1951 = vadd.f32 %v1950, %v1920
    %v1952 = vadd.f32 %v1951, %v1921
    %v1953 = vadd.f32 %v1952, %v1922
    %v1954 = vadd.f32 %v1953, %v1923
    %v1955 = vadd.f32 %v1954, %v1924
    %v1956 = vadd.f32 %v1955, %v1925
    %v1957 = vadd.f32 %v1956, %v1926
    %v1958 = vadd.f32 %v1957, %v1927
    %v1959 = vadd.f32 %v1958, %v1928
    %v1960 = vadd.f32 %v1959, %v1929
    %v1961 = vadd.f32 %v1960, %v1930
    %v1962 = vadd.f32 %v1961, %v1931
    %v1963 = vadd.f32 %v1962, %v1932
    %v1964 = vadd.f32 %v1963, %v1933
    %v1965 = vadd.f32 %v1964, %v1934
    %v1966 = vadd.f32 %v1965, %v1935
    %v1967 = vadd.f32 %v1966, %v1936
    %v1968 = vadd.f32 %v1967, %v1937
    %v1969 = vadd.f32 %v1968, %v1938
    %v1970 = vadd.f32 %v1969, %v1939
    %v1971 = vadd.f32 %v1970, %v1940
    %v1972 = vadd.f32 %v1971, %v1941
    %v1973 = vadd.f32 %v1972, %v1942
    %v1974 = vadd.f32 %v1973, %v1943
    %v1975 = vadd.f32 %v1974, %v1944
    %v1976 = vadd.f32 %v1975, %v1945
    %v1977 = vadd.f32 %v1976, %v1946
    %v1978 = vrot.slane %v1977, 4
    %v1979 = vadd.f32 %v1977, %v1978
    %v1980 = vrot.slane %v1979, 2
    %v1981 = vadd.f32 %v1979, %v1980
    %v1982 = vrot.slane %v1981, 1
    %v1983 = vadd.f32 %v1981, %v1982
    %v1984 = vmul.f32 %v1914, 0.00390625
    %v1985 = vmul.f32 %v1983, 0.00390625
    %v1986 = vmul.f32 %v1984, %v1984
    %v1987 = vsub.f32 %v1985, %v1986
    %v1988 = vmax.f32 %v1987, 0.0
    %v1989 = vadd.f32 %v1988, 1e-05
    %v1990 = vrsqrt.pop %v1989
    %v1991 = vmul.f32 %v1876, %v1990
    %v1992 = vmul.f32 %v1984, %v1991
    %v1993 = vsub.f32 %v1877, %v1992
    %v1994 = vlaneseq
    %v1995 = vshrl.u32 %v1994, 7
    %v1996 = vsub.s32 0, %v1995
    %v1997 = vrot.slane %v1991, %v1996
    %v1998 = vmul.f32 %v1750, %v1997
    %v1999 = vmul.f32 %v1753, %v1997
    %v2000 = vmul.f32 %v1758, %v1997
    %v2001 = vmul.f32 %v1761, %v1997
    %v2002 = vmul.f32 %v1766, %v1997
    %v2003 = vmul.f32 %v1769, %v1997
    %v2004 = vmul.f32 %v1774, %v1997
    %v2005 = vmul.f32 %v1777, %v1997
    %v2006 = vmul.f32 %v1782, %v1997
    %v2007 = vmul.f32 %v1785, %v1997
    %v2008 = vmul.f32 %v1790, %v1997
    %v2009 = vmul.f32 %v1793, %v1997
    %v2010 = vmul.f32 %v1798, %v1997
    %v2011 = vmul.f32 %v1801, %v1997
    %v2012 = vmul.f32 %v1806, %v1997
    %v2013 = vmul.f32 %v1809, %v1997
    %v2014 = vmul.f32 %v1814, %v1997
    %v2015 = vmul.f32 %v1817, %v1997
    %v2016 = vmul.f32 %v1822, %v1997
    %v2017 = vmul.f32 %v1825, %v1997
    %v2018 = vmul.f32 %v1830, %v1997
    %v2019 = vmul.f32 %v1833, %v1997
    %v2020 = vmul.f32 %v1838, %v1997
    %v2021 = vmul.f32 %v1841, %v1997
    %v2022 = vmul.f32 %v1846, %v1997
    %v2023 = vmul.f32 %v1849, %v1997
    %v2024 = vmul.f32 %v1854, %v1997
    %v2025 = vmul.f32 %v1857, %v1997
    %v2026 = vmul.f32 %v1862, %v1997
    %v2027 = vmul.f32 %v1865, %v1997
    %v2028 = vmul.f32 %v1870, %v1997
    %v2029 = vmul.f32 %v1873, %v1997
    %v2030 = vlaneseq
    %v2031 = vshrl.u32 %v2030, 7
    %v2032 = vsub.s32 0, %v2031
    %v2033 = vrot.slane %v1993, %v2032
    %v2034 = vadd.f32 %v1998, %v2033
    %v2035 = vadd.f32 %v1999, %v2033
    %v2036 = vadd.f32 %v2000, %v2033
    %v2037 = vadd.f32 %v2001, %v2033
    %v2038 = vadd.f32 %v2002, %v2033
    %v2039 = vadd.f32 %v2003, %v2033
    %v2040 = vadd.f32 %v2004, %v2033
    %v2041 = vadd.f32 %v2005, %v2033
    %v2042 = vadd.f32 %v2006, %v2033
    %v2043 = vadd.f32 %v2007, %v2033
    %v2044 = vadd.f32 %v2008, %v2033
    %v2045 = vadd.f32 %v2009, %v2033
    %v2046 = vadd.f32 %v2010, %v2033
    %v2047 = vadd.f32 %v2011, %v2033
    %v2048 = vadd.f32 %v2012, %v2033
    %v2049 = vadd.f32 %v2013, %v2033
    %v2050 = vadd.f32 %v2014, %v2033
    %v2051 = vadd.f32 %v2015, %v2033
    %v2052 = vadd.f32 %v2016, %v2033
    %v2053 = vadd.f32 %v2017, %v2033
    %v2054 = vadd.f32 %v2018, %v2033
    %v2055 = vadd.f32 %v2019, %v2033
    %v2056 = vadd.f32 %v2020, %v2033
    %v2057 = vadd.f32 %v2021, %v2033
    %v2058 = vadd.f32 %v2022, %v2033
    %v2059 = vadd.f32 %v2023, %v2033
    %v2060 = vadd.f32 %v2024, %v2033
    %v2061 = vadd.f32 %v2025, %v2033
    %v2062 = vadd.f32 %v2026, %v2033
    %v2063 = vadd.f32 %v2027, %v2033
    %v2064 = vadd.f32 %v2028, %v2033
    %v2065 = vadd.f32 %v2029, %v2033
    %v2066 = vmax.f32 %v2034, 0.0
    %v2067 = vmax.f32 %v2035, 0.0
    %v2068 = vmax.f32 %v2036, 0.0
    %v2069 = vmax.f32 %v2037, 0.0
    %v2070 = vmax.f32 %v2038, 0.0
    %v2071 = vmax.f32 %v2039, 0.0
    %v2072 = vmax.f32 %v2040, 0.0
    %v2073 = vmax.f32 %v2041, 0.0
    %v2074 = vmax.f32 %v2042, 0.0
    %v2075 = vmax.f32 %v2043, 0.0
    %v2076 = vmax.f32 %v2044, 0.0
    %v2077 = vmax.f32 %v2045, 0.0
    %v2078 = vmax.f32 %v2046, 0.0
    %v2079 = vmax.f32 %v2047, 0.0
    %v2080 = vmax.f32 %v2048, 0.0
    %v2081 = vmax.f32 %v2049, 0.0
    %v2082 = vmax.f32 %v2050, 0.0
    %v2083 = vmax.f32 %v2051, 0.0
    %v2084 = vmax.f32 %v2052, 0.0
    %v2085 = vmax.f32 %v2053, 0.0
    %v2086 = vmax.f32 %v2054, 0.0
    %v2087 = vmax.f32 %v2055, 0.0
    %v2088 = vmax.f32 %v2056, 0.0
    %v2089 = vmax.f32 %v2057, 0.0
    %v2090 = vmax.f32 %v2058, 0.0
    %v2091 = vmax.f32 %v2059, 0.0
    %v2092 = vmax.f32 %v2060, 0.0
    %v2093 = vmax.f32 %v2061, 0.0
    %v2094 = vmax.f32 %v2062, 0.0
    %v2095 = vmax.f32 %v2063, 0.0
    %v2096 = vmax.f32 %v2064, 0.0
    %v2097 = vmax.f32 %v2065, 0.0
    %v2098 = vpack.c.bf16 %v2067, %v2066
    %v2099 = vpack.c.bf16 %v2069, %v2068
    %v2100 = vpack.c.bf16 %v2071, %v2070
    %v2101 = vpack.c.bf16 %v2073, %v2072
    %v2102 = vpack.c.bf16 %v2075, %v2074
    %v2103 = vpack.c.bf16 %v2077, %v2076
    %v2104 = vpack.c.bf16 %v2079, %v2078
    %v2105 = vpack.c.bf16 %v2081, %v2080
    %v2106 = vpack.c.bf16 %v2083, %v2082
    %v2107 = vpack.c.bf16 %v2085, %v2084
    %v2108 = vpack.c.bf16 %v2087, %v2086
    %v2109 = vpack.c.bf16 %v2089, %v2088
    %v2110 = vpack.c.bf16 %v2091, %v2090
    %v2111 = vpack.c.bf16 %v2093, %v2092
    %v2112 = vpack.c.bf16 %v2095, %v2094
    %v2113 = vpack.c.bf16 %v2097, %v2096
    %v2114 = vld [vmem:[#allocation7] sm:$0xf]
    %v2115 = vld [vmem:[#allocation7 + $0x4] sm:$0xf]
    %v2116 = vld [vmem:[#allocation7 + $0x8] sm:$0xf]
    %v2117 = vld [vmem:[#allocation7 + $0xc] sm:$0xf]
    %v2118 = vld [vmem:[#allocation7 + $0x10] sm:$0xf]
    %v2119 = vld [vmem:[#allocation7 + $0x14] sm:$0xf]
    %v2120 = vld [vmem:[#allocation7 + $0x18] sm:$0xf]
    %v2121 = vld [vmem:[#allocation7 + $0x1c] sm:$0xf]
    %v2122 = vld [vmem:[#allocation7 + $0x20] sm:$0xf]
    %v2123 = vld [vmem:[#allocation7 + $0x24] sm:$0xf]
    %v2124 = vld [vmem:[#allocation7 + $0x28] sm:$0xf]
    %v2125 = vld [vmem:[#allocation7 + $0x2c] sm:$0xf]
    %v2126 = vld [vmem:[#allocation7 + $0x30] sm:$0xf]
    %v2127 = vld [vmem:[#allocation7 + $0x34] sm:$0xf]
    %v2128 = vld [vmem:[#allocation7 + $0x38] sm:$0xf]
    %v2129 = vld [vmem:[#allocation7 + $0x3c] sm:$0xf]
    %v2146 = vunpack.c.l.b16 %v2114
    %v2147 = vunpack.c.l.b16 %v2115
    %v2148 = vunpack.c.l.b16 %v2116
    %v2149 = vunpack.c.l.b16 %v2117
    %v2150 = vunpack.c.l.b16 %v2118
    %v2151 = vunpack.c.l.b16 %v2119
    %v2152 = vunpack.c.l.b16 %v2120
    %v2153 = vunpack.c.l.b16 %v2121
    %v2154 = vunpack.c.l.b16 %v2122
    %v2155 = vunpack.c.l.b16 %v2123
    %v2156 = vunpack.c.l.b16 %v2124
    %v2157 = vunpack.c.l.b16 %v2125
    %v2158 = vunpack.c.l.b16 %v2126
    %v2159 = vunpack.c.l.b16 %v2127
    %v2160 = vunpack.c.l.b16 %v2128
    %v2161 = vunpack.c.l.b16 %v2129
    %v2162 = vpack.c.b16 %v2147, %v2146
    %v2163 = vpack.c.b16 %v2149, %v2148
    %v2164 = vpack.c.b16 %v2151, %v2150
    %v2165 = vpack.c.b16 %v2153, %v2152
    %v2166 = vpack.c.b16 %v2155, %v2154
    %v2167 = vpack.c.b16 %v2157, %v2156
    %v2168 = vpack.c.b16 %v2159, %v2158
    %v2169 = vpack.c.b16 %v2161, %v2160
    %2178 = vmatprep.subr.bf16.mxu0 0
    %2179 = vmatpush1.bf16.msra.mxu0 %v2162
    %2180 = vmatprep.subr.bf16.mxu0 0
    %2181 = vmatpush1.bf16.msra.mxu0 %v2163
    %2182 = vmatprep.subr.bf16.mxu0 0
    %2183 = vmatpush1.bf16.msra.mxu0 %v2164
    %2184 = vmatprep.subr.bf16.mxu0 0
    %2185 = vmatpush1.bf16.msra.mxu0 %v2165
    %2186 = vmatprep.subr.bf16.mxu0 0
    %2187 = vmatpush1.bf16.msra.mxu0 %v2166
    %2188 = vmatprep.subr.bf16.mxu0 0
    %2189 = vmatpush1.bf16.msra.mxu0 %v2167
    %2190 = vmatprep.subr.bf16.mxu0 0
    %2191 = vmatpush1.bf16.msra.mxu0 %v2168
    %2192 = vmatprep.subr.bf16.mxu0 0
    %2193 = vmatpush1.bf16.msra.mxu0 %v2169
    %2194 = vmatprep.subr.bf16.mxu0 0
    %2195 = vmatpush1.bf16.msra.mxu0 0
    %2196 = vmatprep.subr.bf16.mxu0 0
    %2197 = vmatpush1.bf16.msra.mxu0 0
    %2198 = vmatprep.subr.bf16.mxu0 0
    %2199 = vmatpush1.bf16.msra.mxu0 0
    %2200 = vmatprep.subr.bf16.mxu0 0
    %2201 = vmatpush1.bf16.msra.mxu0 0
    %2202 = vmatprep.subr.bf16.mxu0 0
    %2203 = vmatpush1.bf16.msra.mxu0 0
    %2204 = vmatprep.subr.bf16.mxu0 0
    %2205 = vmatpush1.bf16.msra.mxu0 0
    %2206 = vmatprep.subr.bf16.mxu0 0
    %2207 = vmatpush1.bf16.msra.mxu0 0
    %2208 = vmatprep.subr.bf16.mxu0 0
    %2209 = vmatpush1.bf16.msra.mxu0 0
    %2210 = vmatprep.mubr.bf16.mxu0 0
    %2211 = vmatmul.mubr.bf16.gmra.mrb[0].mxu0 %v2098
    %v2212 = vpop.f32.mrb[0].mxu0
    %v2213 = vadd.f32 0.0, %v2212
    %v2214 = vpop.f32.mrb[0].mxu0
    %v2215 = vpop.f32.mrb[0].mxu0
    %v2216 = vadd.f32 0.0, %v2215
    %v2217 = vpop.f32.mrb[0].mxu0
    %2218 = vmatprep.mubr.bf16.mxu0 0
    %2219 = vmatmul.mubr.bf16.gmra.mrb[0].mxu0 %v2099
    %v2220 = vpop.f32.mrb[0].mxu0
    %v2221 = vadd.f32 0.0, %v2220
    %v2222 = vpop.f32.mrb[0].mxu0
    %v2223 = vpop.f32.mrb[0].mxu0
    %v2224 = vadd.f32 0.0, %v2223
    %v2225 = vpop.f32.mrb[0].mxu0
    %2226 = vmatprep.mubr.bf16.mxu0 0
    %2227 = vmatmul.mubr.bf16.gmra.mrb[0].mxu0 %v2100
    %v2228 = vpop.f32.mrb[0].mxu0
    %v2229 = vadd.f32 0.0, %v2228
    %v2230 = vpop.f32.mrb[0].mxu0
    %v2231 = vpop.f32.mrb[0].mxu0
    %v2232 = vadd.f32 0.0, %v2231
    %v2233 = vpop.f32.mrb[0].mxu0
    %2234 = vmatprep.mubr.bf16.mxu0 0
    %2235 = vmatmul.mubr.bf16.gmra.mrb[0].mxu0 %v2101
    %v2236 = vpop.f32.mrb[0].mxu0
    %v2237 = vadd.f32 0.0, %v2236
    %v2238 = vpop.f32.mrb[0].mxu0
    %v2239 = vpop.f32.mrb[0].mxu0
    %v2240 = vadd.f32 0.0, %v2239
    %v2241 = vpop.f32.mrb[0].mxu0
    %2242 = vmatprep.mubr.bf16.mxu0 0
    %2243 = vmatmul.mubr.bf16.gmra.mrb[0].mxu0 %v2102
    %v2244 = vpop.f32.mrb[0].mxu0
    %v2245 = vadd.f32 0.0, %v2244
    %v2246 = vpop.f32.mrb[0].mxu0
    %v2247 = vpop.f32.mrb[0].mxu0
    %v2248 = vadd.f32 0.0, %v2247
    %v2249 = vpop.f32.mrb[0].mxu0
    %2250 = vmatprep.mubr.bf16.mxu0 0
    %2251 = vmatmul.mubr.bf16.gmra.mrb[0].mxu0 %v2103
    %v2252 = vpop.f32.mrb[0].mxu0
    %v2253 = vadd.f32 0.0, %v2252
    %v2254 = vpop.f32.mrb[0].mxu0
    %v2255 = vpop.f32.mrb[0].mxu0
    %v2256 = vadd.f32 0.0, %v2255
    %v2257 = vpop.f32.mrb[0].mxu0
    %2258 = vmatprep.mubr.bf16.mxu0 0
    %2259 = vmatmul.mubr.bf16.gmra.mrb[0].mxu0 %v2104
    %v2260 = vpop.f32.mrb[0].mxu0
    %v2261 = vadd.f32 0.0, %v2260
    %v2262 = vpop.f32.mrb[0].mxu0
    %v2263 = vpop.f32.mrb[0].mxu0
    %v2264 = vadd.f32 0.0, %v2263
    %v2265 = vpop.f32.mrb[0].mxu0
    %2266 = vmatprep.mubr.bf16.mxu0 0
    %2267 = vmatmul.mubr.bf16.gmra.mrb[0].mxu0 %v2105
    %v2268 = vpop.f32.mrb[0].mxu0
    %v2269 = vadd.f32 0.0, %v2268
    %v2270 = vpop.f32.mrb[0].mxu0
    %v2271 = vpop.f32.mrb[0].mxu0
    %v2272 = vadd.f32 0.0, %v2271
    %v2273 = vpop.f32.mrb[0].mxu0
    %2274 = vmatprep.mubr.bf16.mxu0 0
    %2275 = vmatmul.mubr.bf16.gmra.mrb[0].mxu0 %v2106
    %v2276 = vpop.f32.mrb[0].mxu0
    %v2277 = vadd.f32 0.0, %v2276
    %v2278 = vpop.f32.mrb[0].mxu0
    %v2279 = vpop.f32.mrb[0].mxu0
    %v2280 = vadd.f32 0.0, %v2279
    %v2281 = vpop.f32.mrb[0].mxu0
    %2282 = vmatprep.mubr.bf16.mxu0 0
    %2283 = vmatmul.mubr.bf16.gmra.mrb[0].mxu0 %v2107
    %v2284 = vpop.f32.mrb[0].mxu0
    %v2285 = vadd.f32 0.0, %v2284
    %v2286 = vpop.f32.mrb[0].mxu0
    %v2287 = vpop.f32.mrb[0].mxu0
    %v2288 = vadd.f32 0.0, %v2287
    %v2289 = vpop.f32.mrb[0].mxu0
    %2290 = vmatprep.mubr.bf16.mxu0 0
    %2291 = vmatmul.mubr.bf16.gmra.mrb[0].mxu0 %v2108
    %v2292 = vpop.f32.mrb[0].mxu0
    %v2293 = vadd.f32 0.0, %v2292
    %v2294 = vpop.f32.mrb[0].mxu0
    %v2295 = vpop.f32.mrb[0].mxu0
    %v2296 = vadd.f32 0.0, %v2295
    %v2297 = vpop.f32.mrb[0].mxu0
    %2298 = vmatprep.mubr.bf16.mxu0 0
    %2299 = vmatmul.mubr.bf16.gmra.mrb[0].mxu0 %v2109
    %v2300 = vpop.f32.mrb[0].mxu0
    %v2301 = vadd.f32 0.0, %v2300
    %v2302 = vpop.f32.mrb[0].mxu0
    %v2303 = vpop.f32.mrb[0].mxu0
    %v2304 = vadd.f32 0.0, %v2303
    %v2305 = vpop.f32.mrb[0].mxu0
    %2306 = vmatprep.mubr.bf16.mxu0 0
    %2307 = vmatmul.mubr.bf16.gmra.mrb[0].mxu0 %v2110
    %v2308 = vpop.f32.mrb[0].mxu0
    %v2309 = vadd.f32 0.0, %v2308
    %v2310 = vpop.f32.mrb[0].mxu0
    %v2311 = vpop.f32.mrb[0].mxu0
    %v2312 = vadd.f32 0.0, %v2311
    %v2313 = vpop.f32.mrb[0].mxu0
    %2314 = vmatprep.mubr.bf16.mxu0 0
    %2315 = vmatmul.mubr.bf16.gmra.mrb[0].mxu0 %v2111
    %v2316 = vpop.f32.mrb[0].mxu0
    %v2317 = vadd.f32 0.0, %v2316
    %v2318 = vpop.f32.mrb[0].mxu0
    %v2319 = vpop.f32.mrb[0].mxu0
    %v2320 = vadd.f32 0.0, %v2319
    %v2321 = vpop.f32.mrb[0].mxu0
    %2322 = vmatprep.mubr.bf16.mxu0 0
    %2323 = vmatmul.mubr.bf16.gmra.mrb[0].mxu0 %v2112
    %v2324 = vpop.f32.mrb[0].mxu0
    %v2325 = vadd.f32 0.0, %v2324
    %v2326 = vpop.f32.mrb[0].mxu0
    %v2327 = vpop.f32.mrb[0].mxu0
    %v2328 = vadd.f32 0.0, %v2327
    %v2329 = vpop.f32.mrb[0].mxu0
    %2330 = vmatprep.mubr.bf16.mxu0 0
    %2331 = vmatmul.mubr.bf16.gmra.mrb[0].mxu0 %v2113
    %v2332 = vpop.f32.mrb[0].mxu0
    %v2333 = vadd.f32 0.0, %v2332
    %v2334 = vpop.f32.mrb[0].mxu0
    %v2335 = vpop.f32.mrb[0].mxu0
    %v2336 = vadd.f32 0.0, %v2335
    %v2337 = vpop.f32.mrb[0].mxu0
    %2338 = vdwg.mxu0
    %s2339 = scalar_lea.vmem %s4, 2
    %v2340 = vld [vmem:[%s2339] sm:$0x1]
    %v2341 = vld [vmem:[%s2339 + $0x1] sm:$0x1]
    %v2342 = vadd.f32 %v2213, %v2216
    %v2343 = vadd.f32 %v2342, %v2221
    %v2344 = vadd.f32 %v2343, %v2224
    %v2345 = vadd.f32 %v2344, %v2229
    %v2346 = vadd.f32 %v2345, %v2232
    %v2347 = vadd.f32 %v2346, %v2237
    %v2348 = vadd.f32 %v2347, %v2240
    %v2349 = vadd.f32 %v2348, %v2245
    %v2350 = vadd.f32 %v2349, %v2248
    %v2351 = vadd.f32 %v2350, %v2253
    %v2352 = vadd.f32 %v2351, %v2256
    %v2353 = vadd.f32 %v2352, %v2261
    %v2354 = vadd.f32 %v2353, %v2264
    %v2355 = vadd.f32 %v2354, %v2269
    %v2356 = vadd.f32 %v2355, %v2272
    %v2357 = vadd.f32 %v2356, %v2277
    %v2358 = vadd.f32 %v2357, %v2280
    %v2359 = vadd.f32 %v2358, %v2285
    %v2360 = vadd.f32 %v2359, %v2288
    %v2361 = vadd.f32 %v2360, %v2293
    %v2362 = vadd.f32 %v2361, %v2296
    %v2363 = vadd.f32 %v2362, %v2301
    %v2364 = vadd.f32 %v2363, %v2304
    %v2365 = vadd.f32 %v2364, %v2309
    %v2366 = vadd.f32 %v2365, %v2312
    %v2367 = vadd.f32 %v2366, %v2317
    %v2368 = vadd.f32 %v2367, %v2320
    %v2369 = vadd.f32 %v2368, %v2325
    %v2370 = vadd.f32 %v2369, %v2328
    %v2371 = vadd.f32 %v2370, %v2333
    %v2372 = vadd.f32 %v2371, %v2336
    %v2373 = vrot.slane %v2372, 4
    %v2374 = vadd.f32 %v2372, %v2373
    %v2375 = vrot.slane %v2374, 2
    %v2376 = vadd.f32 %v2374, %v2375
    %v2377 = vrot.slane %v2376, 1
    %v2378 = vadd.f32 %v2376, %v2377
    %v2379 = vmul.f32 %v2213, %v2213
    %v2380 = vmul.f32 %v2216, %v2216
    %v2381 = vmul.f32 %v2221, %v2221
    %v2382 = vmul.f32 %v2224, %v2224
    %v2383 = vmul.f32 %v2229, %v2229
    %v2384 = vmul.f32 %v2232, %v2232
    %v2385 = vmul.f32 %v2237, %v2237
    %v2386 = vmul.f32 %v2240, %v2240
    %v2387 = vmul.f32 %v2245, %v2245
    %v2388 = vmul.f32 %v2248, %v2248
    %v2389 = vmul.f32 %v2253, %v2253
    %v2390 = vmul.f32 %v2256, %v2256
    %v2391 = vmul.f32 %v2261, %v2261
    %v2392 = vmul.f32 %v2264, %v2264
    %v2393 = vmul.f32 %v2269, %v2269
    %v2394 = vmul.f32 %v2272, %v2272
    %v2395 = vmul.f32 %v2277, %v2277
    %v2396 = vmul.f32 %v2280, %v2280
    %v2397 = vmul.f32 %v2285, %v2285
    %v2398 = vmul.f32 %v2288, %v2288
    %v2399 = vmul.f32 %v2293, %v2293
    %v2400 = vmul.f32 %v2296, %v2296
    %v2401 = vmul.f32 %v2301, %v2301
    %v2402 = vmul.f32 %v2304, %v2304
    %v2403 = vmul.f32 %v2309, %v2309
    %v2404 = vmul.f32 %v2312, %v2312
    %v2405 = vmul.f32 %v2317, %v2317
    %v2406 = vmul.f32 %v2320, %v2320
    %v2407 = vmul.f32 %v2325, %v2325
    %v2408 = vmul.f32 %v2328, %v2328
    %v2409 = vmul.f32 %v2333, %v2333
    %v2410 = vmul.f32 %v2336, %v2336
    %v2411 = vadd.f32 %v2379, %v2380
    %v2412 = vadd.f32 %v2411, %v2381
    %v2413 = vadd.f32 %v2412, %v2382
    %v2414 = vadd.f32 %v2413, %v2383
    %v2415 = vadd.f32 %v2414, %v2384
    %v2416 = vadd.f32 %v2415, %v2385
    %v2417 = vadd.f32 %v2416, %v2386
    %v2418 = vadd.f32 %v2417, %v2387
    %v2419 = vadd.f32 %v2418, %v2388
    %v2420 = vadd.f32 %v2419, %v2389
    %v2421 = vadd.f32 %v2420, %v2390
    %v2422 = vadd.f32 %v2421, %v2391
    %v2423 = vadd.f32 %v2422, %v2392
    %v2424 = vadd.f32 %v2423, %v2393
    %v2425 = vadd.f32 %v2424, %v2394
    %v2426 = vadd.f32 %v2425, %v2395
    %v2427 = vadd.f32 %v2426, %v2396
    %v2428 = vadd.f32 %v2427, %v2397
    %v2429 = vadd.f32 %v2428, %v2398
    %v2430 = vadd.f32 %v2429, %v2399
    %v2431 = vadd.f32 %v2430, %v2400
    %v2432 = vadd.f32 %v2431, %v2401
    %v2433 = vadd.f32 %v2432, %v2402
    %v2434 = vadd.f32 %v2433, %v2403
    %v2435 = vadd.f32 %v2434, %v2404
    %v2436 = vadd.f32 %v2435, %v2405
    %v2437 = vadd.f32 %v2436, %v2406
    %v2438 = vadd.f32 %v2437, %v2407
    %v2439 = vadd.f32 %v2438, %v2408
    %v2440 = vadd.f32 %v2439, %v2409
    %v2441 = vadd.f32 %v2440, %v2410
    %v2442 = vrot.slane %v2441, 4
    %v2443 = vadd.f32 %v2441, %v2442
    %v2444 = vrot.slane %v2443, 2
    %v2445 = vadd.f32 %v2443, %v2444
    %v2446 = vrot.slane %v2445, 1
    %v2447 = vadd.f32 %v2445, %v2446
    %v2448 = vmul.f32 %v2378, 0.00390625
    %v2449 = vmul.f32 %v2447, 0.00390625
    %v2450 = vmul.f32 %v2448, %v2448
    %v2451 = vsub.f32 %v2449, %v2450
    %v2452 = vmax.f32 %v2451, 0.0
    %v2453 = vadd.f32 %v2452, 1e-05
    %v2454 = vrsqrt.pop %v2453
    %v2455 = vmul.f32 %v2340, %v2454
    %v2456 = vmul.f32 %v2448, %v2455
    %v2457 = vsub.f32 %v2341, %v2456
    %v2458 = vlaneseq
    %v2459 = vshrl.u32 %v2458, 7
    %v2460 = vsub.s32 0, %v2459
    %v2461 = vrot.slane %v2455, %v2460
    %v2462 = vmul.f32 %v2213, %v2461
    %v2463 = vmul.f32 %v2216, %v2461
    %v2464 = vmul.f32 %v2221, %v2461
    %v2465 = vmul.f32 %v2224, %v2461
    %v2466 = vmul.f32 %v2229, %v2461
    %v2467 = vmul.f32 %v2232, %v2461
    %v2468 = vmul.f32 %v2237, %v2461
    %v2469 = vmul.f32 %v2240, %v2461
    %v2470 = vmul.f32 %v2245, %v2461
    %v2471 = vmul.f32 %v2248, %v2461
    %v2472 = vmul.f32 %v2253, %v2461
    %v2473 = vmul.f32 %v2256, %v2461
    %v2474 = vmul.f32 %v2261, %v2461
    %v2475 = vmul.f32 %v2264, %v2461
    %v2476 = vmul.f32 %v2269, %v2461
    %v2477 = vmul.f32 %v2272, %v2461
    %v2478 = vmul.f32 %v2277, %v2461
    %v2479 = vmul.f32 %v2280, %v2461
    %v2480 = vmul.f32 %v2285, %v2461
    %v2481 = vmul.f32 %v2288, %v2461
    %v2482 = vmul.f32 %v2293, %v2461
    %v2483 = vmul.f32 %v2296, %v2461
    %v2484 = vmul.f32 %v2301, %v2461
    %v2485 = vmul.f32 %v2304, %v2461
    %v2486 = vmul.f32 %v2309, %v2461
    %v2487 = vmul.f32 %v2312, %v2461
    %v2488 = vmul.f32 %v2317, %v2461
    %v2489 = vmul.f32 %v2320, %v2461
    %v2490 = vmul.f32 %v2325, %v2461
    %v2491 = vmul.f32 %v2328, %v2461
    %v2492 = vmul.f32 %v2333, %v2461
    %v2493 = vmul.f32 %v2336, %v2461
    %v2494 = vlaneseq
    %v2495 = vshrl.u32 %v2494, 7
    %v2496 = vsub.s32 0, %v2495
    %v2497 = vrot.slane %v2457, %v2496
    %v2498 = vadd.f32 %v2462, %v2497
    %v2499 = vadd.f32 %v2463, %v2497
    %v2500 = vadd.f32 %v2464, %v2497
    %v2501 = vadd.f32 %v2465, %v2497
    %v2502 = vadd.f32 %v2466, %v2497
    %v2503 = vadd.f32 %v2467, %v2497
    %v2504 = vadd.f32 %v2468, %v2497
    %v2505 = vadd.f32 %v2469, %v2497
    %v2506 = vadd.f32 %v2470, %v2497
    %v2507 = vadd.f32 %v2471, %v2497
    %v2508 = vadd.f32 %v2472, %v2497
    %v2509 = vadd.f32 %v2473, %v2497
    %v2510 = vadd.f32 %v2474, %v2497
    %v2511 = vadd.f32 %v2475, %v2497
    %v2512 = vadd.f32 %v2476, %v2497
    %v2513 = vadd.f32 %v2477, %v2497
    %v2514 = vadd.f32 %v2478, %v2497
    %v2515 = vadd.f32 %v2479, %v2497
    %v2516 = vadd.f32 %v2480, %v2497
    %v2517 = vadd.f32 %v2481, %v2497
    %v2518 = vadd.f32 %v2482, %v2497
    %v2519 = vadd.f32 %v2483, %v2497
    %v2520 = vadd.f32 %v2484, %v2497
    %v2521 = vadd.f32 %v2485, %v2497
    %v2522 = vadd.f32 %v2486, %v2497
    %v2523 = vadd.f32 %v2487, %v2497
    %v2524 = vadd.f32 %v2488, %v2497
    %v2525 = vadd.f32 %v2489, %v2497
    %v2526 = vadd.f32 %v2490, %v2497
    %v2527 = vadd.f32 %v2491, %v2497
    %v2528 = vadd.f32 %v2492, %v2497
    %v2529 = vadd.f32 %v2493, %v2497
    %v2530 = vmax.f32 %v2498, 0.0
    %v2531 = vmax.f32 %v2499, 0.0
    %v2532 = vmax.f32 %v2500, 0.0
    %v2533 = vmax.f32 %v2501, 0.0
    %v2534 = vmax.f32 %v2502, 0.0
    %v2535 = vmax.f32 %v2503, 0.0
    %v2536 = vmax.f32 %v2504, 0.0
    %v2537 = vmax.f32 %v2505, 0.0
    %v2538 = vmax.f32 %v2506, 0.0
    %v2539 = vmax.f32 %v2507, 0.0
    %v2540 = vmax.f32 %v2508, 0.0
    %v2541 = vmax.f32 %v2509, 0.0
    %v2542 = vmax.f32 %v2510, 0.0
    %v2543 = vmax.f32 %v2511, 0.0
    %v2544 = vmax.f32 %v2512, 0.0
    %v2545 = vmax.f32 %v2513, 0.0
    %v2546 = vmax.f32 %v2514, 0.0
    %v2547 = vmax.f32 %v2515, 0.0
    %v2548 = vmax.f32 %v2516, 0.0
    %v2549 = vmax.f32 %v2517, 0.0
    %v2550 = vmax.f32 %v2518, 0.0
    %v2551 = vmax.f32 %v2519, 0.0
    %v2552 = vmax.f32 %v2520, 0.0
    %v2553 = vmax.f32 %v2521, 0.0
    %v2554 = vmax.f32 %v2522, 0.0
    %v2555 = vmax.f32 %v2523, 0.0
    %v2556 = vmax.f32 %v2524, 0.0
    %v2557 = vmax.f32 %v2525, 0.0
    %v2558 = vmax.f32 %v2526, 0.0
    %v2559 = vmax.f32 %v2527, 0.0
    %v2560 = vmax.f32 %v2528, 0.0
    %v2561 = vmax.f32 %v2529, 0.0
    %v2562 = vpack.c.bf16 %v2531, %v2530
    %v2563 = vpack.c.bf16 %v2533, %v2532
    %v2564 = vpack.c.bf16 %v2535, %v2534
    %v2565 = vpack.c.bf16 %v2537, %v2536
    %v2566 = vpack.c.bf16 %v2539, %v2538
    %v2567 = vpack.c.bf16 %v2541, %v2540
    %v2568 = vpack.c.bf16 %v2543, %v2542
    %v2569 = vpack.c.bf16 %v2545, %v2544
    %v2570 = vpack.c.bf16 %v2547, %v2546
    %v2571 = vpack.c.bf16 %v2549, %v2548
    %v2572 = vpack.c.bf16 %v2551, %v2550
    %v2573 = vpack.c.bf16 %v2553, %v2552
    %v2574 = vpack.c.bf16 %v2555, %v2554
    %v2575 = vpack.c.bf16 %v2557, %v2556
    %v2576 = vpack.c.bf16 %v2559, %v2558
    %v2577 = vpack.c.bf16 %v2561, %v2560
    %s2578 = scalar_lea.vmem [#allocation7], 64
    %v2579 = vld [vmem:[%s2578] sm:$0xf]
    %v2580 = vld [vmem:[%s2578 + $0x4] sm:$0xf]
    %v2581 = vld [vmem:[%s2578 + $0x8] sm:$0xf]
    %v2582 = vld [vmem:[%s2578 + $0xc] sm:$0xf]
    %v2583 = vld [vmem:[%s2578 + $0x10] sm:$0xf]
    %v2584 = vld [vmem:[%s2578 + $0x14] sm:$0xf]
    %v2585 = vld [vmem:[%s2578 + $0x18] sm:$0xf]
    %v2586 = vld [vmem:[%s2578 + $0x1c] sm:$0xf]
    %v2587 = vld [vmem:[%s2578 + $0x20] sm:$0xf]
    %v2588 = vld [vmem:[%s2578 + $0x24] sm:$0xf]
    %v2589 = vld [vmem:[%s2578 + $0x28] sm:$0xf]
    %v2590 = vld [vmem:[%s2578 + $0x2c] sm:$0xf]
    %v2591 = vld [vmem:[%s2578 + $0x30] sm:$0xf]
    %v2592 = vld [vmem:[%s2578 + $0x34] sm:$0xf]
    %v2593 = vld [vmem:[%s2578 + $0x38] sm:$0xf]
    %v2594 = vld [vmem:[%s2578 + $0x3c] sm:$0xf]
    %v2611 = vunpack.c.l.b16 %v2579
    %v2612 = vunpack.c.l.b16 %v2580
    %v2613 = vunpack.c.l.b16 %v2581
    %v2614 = vunpack.c.l.b16 %v2582
    %v2615 = vunpack.c.l.b16 %v2583
    %v2616 = vunpack.c.l.b16 %v2584
    %v2617 = vunpack.c.l.b16 %v2585
    %v2618 = vunpack.c.l.b16 %v2586
    %v2619 = vunpack.c.l.b16 %v2587
    %v2620 = vunpack.c.l.b16 %v2588
    %v2621 = vunpack.c.l.b16 %v2589
    %v2622 = vunpack.c.l.b16 %v2590
    %v2623 = vunpack.c.l.b16 %v2591
    %v2624 = vunpack.c.l.b16 %v2592
    %v2625 = vunpack.c.l.b16 %v2593
    %v2626 = vunpack.c.l.b16 %v2594
    %v2627 = vpack.c.b16 %v2612, %v2611
    %v2628 = vpack.c.b16 %v2614, %v2613
    %v2629 = vpack.c.b16 %v2616, %v2615
    %v2630 = vpack.c.b16 %v2618, %v2617
    %v2631 = vpack.c.b16 %v2620, %v2619
    %v2632 = vpack.c.b16 %v2622, %v2621
    %v2633 = vpack.c.b16 %v2624, %v2623
    %v2634 = vpack.c.b16 %v2626, %v2625
    %2643 = vmatprep.subr.bf16.mxu0 0
    %2644 = vmatpush1.bf16.msra.mxu0 %v2627
    %2645 = vmatprep.subr.bf16.mxu0 0
    %2646 = vmatpush1.bf16.msra.mxu0 %v2628
    %2647 = vmatprep.subr.bf16.mxu0 0
    %2648 = vmatpush1.bf16.msra.mxu0 %v2629
    %2649 = vmatprep.subr.bf16.mxu0 0
    %2650 = vmatpush1.bf16.msra.mxu0 %v2630
    %2651 = vmatprep.subr.bf16.mxu0 0
    %2652 = vmatpush1.bf16.msra.mxu0 %v2631
    %2653 = vmatprep.subr.bf16.mxu0 0
    %2654 = vmatpush1.bf16.msra.mxu0 %v2632
    %2655 = vmatprep.subr.bf16.mxu0 0
    %2656 = vmatpush1.bf16.msra.mxu0 %v2633
    %2657 = vmatprep.subr.bf16.mxu0 0
    %2658 = vmatpush1.bf16.msra.mxu0 %v2634
    %2659 = vmatprep.subr.bf16.mxu0 0
    %2660 = vmatpush1.bf16.msra.mxu0 0
    %2661 = vmatprep.subr.bf16.mxu0 0
    %2662 = vmatpush1.bf16.msra.mxu0 0
    %2663 = vmatprep.subr.bf16.mxu0 0
    %2664 = vmatpush1.bf16.msra.mxu0 0
    %2665 = vmatprep.subr.bf16.mxu0 0
    %2666 = vmatpush1.bf16.msra.mxu0 0
    %2667 = vmatprep.subr.bf16.mxu0 0
    %2668 = vmatpush1.bf16.msra.mxu0 0
    %2669 = vmatprep.subr.bf16.mxu0 0
    %2670 = vmatpush1.bf16.msra.mxu0 0
    %2671 = vmatprep.subr.bf16.mxu0 0
    %2672 = vmatpush1.bf16.msra.mxu0 0
    %2673 = vmatprep.subr.bf16.mxu0 0
    %2674 = vmatpush1.bf16.msra.mxu0 0
    %2675 = vmatprep.mubr.bf16.mxu0 0
    %2676 = vmatmul.mubr.bf16.gmra.mrb[0].mxu0 %v2562
    %v2677 = vpop.f32.mrb[0].mxu0
    %v2678 = vadd.f32 0.0, %v2677
    %v2679 = vpop.f32.mrb[0].mxu0
    %v2680 = vpop.f32.mrb[0].mxu0
    %v2681 = vadd.f32 0.0, %v2680
    %v2682 = vpop.f32.mrb[0].mxu0
    %2683 = vmatprep.mubr.bf16.mxu0 0
    %2684 = vmatmul.mubr.bf16.gmra.mrb[0].mxu0 %v2563
    %v2685 = vpop.f32.mrb[0].mxu0
    %v2686 = vadd.f32 0.0, %v2685
    %v2687 = vpop.f32.mrb[0].mxu0
    %v2688 = vpop.f32.mrb[0].mxu0
    %v2689 = vadd.f32 0.0, %v2688
    %v2690 = vpop.f32.mrb[0].mxu0
    %2691 = vmatprep.mubr.bf16.mxu0 0
    %2692 = vmatmul.mubr.bf16.gmra.mrb[0].mxu0 %v2564
    %v2693 = vpop.f32.mrb[0].mxu0
    %v2694 = vadd.f32 0.0, %v2693
    %v2695 = vpop.f32.mrb[0].mxu0
    %v2696 = vpop.f32.mrb[0].mxu0
    %v2697 = vadd.f32 0.0, %v2696
    %v2698 = vpop.f32.mrb[0].mxu0
    %2699 = vmatprep.mubr.bf16.mxu0 0
    %2700 = vmatmul.mubr.bf16.gmra.mrb[0].mxu0 %v2565
    %v2701 = vpop.f32.mrb[0].mxu0
    %v2702 = vadd.f32 0.0, %v2701
    %v2703 = vpop.f32.mrb[0].mxu0
    %v2704 = vpop.f32.mrb[0].mxu0
    %v2705 = vadd.f32 0.0, %v2704
    %v2706 = vpop.f32.mrb[0].mxu0
    %2707 = vmatprep.mubr.bf16.mxu0 0
    %2708 = vmatmul.mubr.bf16.gmra.mrb[0].mxu0 %v2566
    %v2709 = vpop.f32.mrb[0].mxu0
    %v2710 = vadd.f32 0.0, %v2709
    %v2711 = vpop.f32.mrb[0].mxu0
    %v2712 = vpop.f32.mrb[0].mxu0
    %v2713 = vadd.f32 0.0, %v2712
    %v2714 = vpop.f32.mrb[0].mxu0
    %2715 = vmatprep.mubr.bf16.mxu0 0
    %2716 = vmatmul.mubr.bf16.gmra.mrb[0].mxu0 %v2567
    %v2717 = vpop.f32.mrb[0].mxu0
    %v2718 = vadd.f32 0.0, %v2717
    %v2719 = vpop.f32.mrb[0].mxu0
    %v2720 = vpop.f32.mrb[0].mxu0
    %v2721 = vadd.f32 0.0, %v2720
    %v2722 = vpop.f32.mrb[0].mxu0
    %2723 = vmatprep.mubr.bf16.mxu0 0
    %2724 = vmatmul.mubr.bf16.gmra.mrb[0].mxu0 %v2568
    %v2725 = vpop.f32.mrb[0].mxu0
    %v2726 = vadd.f32 0.0, %v2725
    %v2727 = vpop.f32.mrb[0].mxu0
    %v2728 = vpop.f32.mrb[0].mxu0
    %v2729 = vadd.f32 0.0, %v2728
    %v2730 = vpop.f32.mrb[0].mxu0
    %2731 = vmatprep.mubr.bf16.mxu0 0
    %2732 = vmatmul.mubr.bf16.gmra.mrb[0].mxu0 %v2569
    %v2733 = vpop.f32.mrb[0].mxu0
    %v2734 = vadd.f32 0.0, %v2733
    %v2735 = vpop.f32.mrb[0].mxu0
    %v2736 = vpop.f32.mrb[0].mxu0
    %v2737 = vadd.f32 0.0, %v2736
    %v2738 = vpop.f32.mrb[0].mxu0
    %2739 = vmatprep.mubr.bf16.mxu0 0
    %2740 = vmatmul.mubr.bf16.gmra.mrb[0].mxu0 %v2570
    %v2741 = vpop.f32.mrb[0].mxu0
    %v2742 = vadd.f32 0.0, %v2741
    %v2743 = vpop.f32.mrb[0].mxu0
    %v2744 = vpop.f32.mrb[0].mxu0
    %v2745 = vadd.f32 0.0, %v2744
    %v2746 = vpop.f32.mrb[0].mxu0
    %2747 = vmatprep.mubr.bf16.mxu0 0
    %2748 = vmatmul.mubr.bf16.gmra.mrb[0].mxu0 %v2571
    %v2749 = vpop.f32.mrb[0].mxu0
    %v2750 = vadd.f32 0.0, %v2749
    %v2751 = vpop.f32.mrb[0].mxu0
    %v2752 = vpop.f32.mrb[0].mxu0
    %v2753 = vadd.f32 0.0, %v2752
    %v2754 = vpop.f32.mrb[0].mxu0
    %2755 = vmatprep.mubr.bf16.mxu0 0
    %2756 = vmatmul.mubr.bf16.gmra.mrb[0].mxu0 %v2572
    %v2757 = vpop.f32.mrb[0].mxu0
    %v2758 = vadd.f32 0.0, %v2757
    %v2759 = vpop.f32.mrb[0].mxu0
    %v2760 = vpop.f32.mrb[0].mxu0
    %v2761 = vadd.f32 0.0, %v2760
    %v2762 = vpop.f32.mrb[0].mxu0
    %2763 = vmatprep.mubr.bf16.mxu0 0
    %2764 = vmatmul.mubr.bf16.gmra.mrb[0].mxu0 %v2573
    %v2765 = vpop.f32.mrb[0].mxu0
    %v2766 = vadd.f32 0.0, %v2765
    %v2767 = vpop.f32.mrb[0].mxu0
    %v2768 = vpop.f32.mrb[0].mxu0
    %v2769 = vadd.f32 0.0, %v2768
    %v2770 = vpop.f32.mrb[0].mxu0
    %2771 = vmatprep.mubr.bf16.mxu0 0
    %2772 = vmatmul.mubr.bf16.gmra.mrb[0].mxu0 %v2574
    %v2773 = vpop.f32.mrb[0].mxu0
    %v2774 = vadd.f32 0.0, %v2773
    %v2775 = vpop.f32.mrb[0].mxu0
    %v2776 = vpop.f32.mrb[0].mxu0
    %v2777 = vadd.f32 0.0, %v2776
    %v2778 = vpop.f32.mrb[0].mxu0
    %2779 = vmatprep.mubr.bf16.mxu0 0
    %2780 = vmatmul.mubr.bf16.gmra.mrb[0].mxu0 %v2575
    %v2781 = vpop.f32.mrb[0].mxu0
    %v2782 = vadd.f32 0.0, %v2781
    %v2783 = vpop.f32.mrb[0].mxu0
    %v2784 = vpop.f32.mrb[0].mxu0
    %v2785 = vadd.f32 0.0, %v2784
    %v2786 = vpop.f32.mrb[0].mxu0
    %2787 = vmatprep.mubr.bf16.mxu0 0
    %2788 = vmatmul.mubr.bf16.gmra.mrb[0].mxu0 %v2576
    %v2789 = vpop.f32.mrb[0].mxu0
    %v2790 = vadd.f32 0.0, %v2789
    %v2791 = vpop.f32.mrb[0].mxu0
    %v2792 = vpop.f32.mrb[0].mxu0
    %v2793 = vadd.f32 0.0, %v2792
    %v2794 = vpop.f32.mrb[0].mxu0
    %2795 = vmatprep.mubr.bf16.mxu0 0
    %2796 = vmatmul.mubr.bf16.gmra.mrb[0].mxu0 %v2577
    %v2797 = vpop.f32.mrb[0].mxu0
    %v2798 = vadd.f32 0.0, %v2797
    %v2799 = vpop.f32.mrb[0].mxu0
    %v2800 = vpop.f32.mrb[0].mxu0
    %v2801 = vadd.f32 0.0, %v2800
    %v2802 = vpop.f32.mrb[0].mxu0
    %2803 = vdwg.mxu0
    %s2804 = scalar_lea.vmem %s4, 4
    %v2805 = vld [vmem:[%s2804] sm:$0x1]
    %v2806 = vld [vmem:[%s2804 + $0x1] sm:$0x1]
    %v2807 = vadd.f32 %v2678, %v2681
    %v2808 = vadd.f32 %v2807, %v2686
    %v2809 = vadd.f32 %v2808, %v2689
    %v2810 = vadd.f32 %v2809, %v2694
    %v2811 = vadd.f32 %v2810, %v2697
    %v2812 = vadd.f32 %v2811, %v2702
    %v2813 = vadd.f32 %v2812, %v2705
    %v2814 = vadd.f32 %v2813, %v2710
    %v2815 = vadd.f32 %v2814, %v2713
    %v2816 = vadd.f32 %v2815, %v2718
    %v2817 = vadd.f32 %v2816, %v2721
    %v2818 = vadd.f32 %v2817, %v2726
    %v2819 = vadd.f32 %v2818, %v2729
    %v2820 = vadd.f32 %v2819, %v2734
    %v2821 = vadd.f32 %v2820, %v2737
    %v2822 = vadd.f32 %v2821, %v2742
    %v2823 = vadd.f32 %v2822, %v2745
    %v2824 = vadd.f32 %v2823, %v2750
    %v2825 = vadd.f32 %v2824, %v2753
    %v2826 = vadd.f32 %v2825, %v2758
    %v2827 = vadd.f32 %v2826, %v2761
    %v2828 = vadd.f32 %v2827, %v2766
    %v2829 = vadd.f32 %v2828, %v2769
    %v2830 = vadd.f32 %v2829, %v2774
    %v2831 = vadd.f32 %v2830, %v2777
    %v2832 = vadd.f32 %v2831, %v2782
    %v2833 = vadd.f32 %v2832, %v2785
    %v2834 = vadd.f32 %v2833, %v2790
    %v2835 = vadd.f32 %v2834, %v2793
    %v2836 = vadd.f32 %v2835, %v2798
    %v2837 = vadd.f32 %v2836, %v2801
    %v2838 = vrot.slane %v2837, 4
    %v2839 = vadd.f32 %v2837, %v2838
    %v2840 = vrot.slane %v2839, 2
    %v2841 = vadd.f32 %v2839, %v2840
    %v2842 = vrot.slane %v2841, 1
    %v2843 = vadd.f32 %v2841, %v2842
    %v2844 = vmul.f32 %v2678, %v2678
    %v2845 = vmul.f32 %v2681, %v2681
    %v2846 = vmul.f32 %v2686, %v2686
    %v2847 = vmul.f32 %v2689, %v2689
    %v2848 = vmul.f32 %v2694, %v2694
    %v2849 = vmul.f32 %v2697, %v2697
    %v2850 = vmul.f32 %v2702, %v2702
    %v2851 = vmul.f32 %v2705, %v2705
    %v2852 = vmul.f32 %v2710, %v2710
    %v2853 = vmul.f32 %v2713, %v2713
    %v2854 = vmul.f32 %v2718, %v2718
    %v2855 = vmul.f32 %v2721, %v2721
    %v2856 = vmul.f32 %v2726, %v2726
    %v2857 = vmul.f32 %v2729, %v2729
    %v2858 = vmul.f32 %v2734, %v2734
    %v2859 = vmul.f32 %v2737, %v2737
    %v2860 = vmul.f32 %v2742, %v2742
    %v2861 = vmul.f32 %v2745, %v2745
    %v2862 = vmul.f32 %v2750, %v2750
    %v2863 = vmul.f32 %v2753, %v2753
    %v2864 = vmul.f32 %v2758, %v2758
    %v2865 = vmul.f32 %v2761, %v2761
    %v2866 = vmul.f32 %v2766, %v2766
    %v2867 = vmul.f32 %v2769, %v2769
    %v2868 = vmul.f32 %v2774, %v2774
    %v2869 = vmul.f32 %v2777, %v2777
    %v2870 = vmul.f32 %v2782, %v2782
    %v2871 = vmul.f32 %v2785, %v2785
    %v2872 = vmul.f32 %v2790, %v2790
    %v2873 = vmul.f32 %v2793, %v2793
    %v2874 = vmul.f32 %v2798, %v2798
    %v2875 = vmul.f32 %v2801, %v2801
    %v2876 = vadd.f32 %v2844, %v2845
    %v2877 = vadd.f32 %v2876, %v2846
    %v2878 = vadd.f32 %v2877, %v2847
    %v2879 = vadd.f32 %v2878, %v2848
    %v2880 = vadd.f32 %v2879, %v2849
    %v2881 = vadd.f32 %v2880, %v2850
    %v2882 = vadd.f32 %v2881, %v2851
    %v2883 = vadd.f32 %v2882, %v2852
    %v2884 = vadd.f32 %v2883, %v2853
    %v2885 = vadd.f32 %v2884, %v2854
    %v2886 = vadd.f32 %v2885, %v2855
    %v2887 = vadd.f32 %v2886, %v2856
    %v2888 = vadd.f32 %v2887, %v2857
    %v2889 = vadd.f32 %v2888, %v2858
    %v2890 = vadd.f32 %v2889, %v2859
    %v2891 = vadd.f32 %v2890, %v2860
    %v2892 = vadd.f32 %v2891, %v2861
    %v2893 = vadd.f32 %v2892, %v2862
    %v2894 = vadd.f32 %v2893, %v2863
    %v2895 = vadd.f32 %v2894, %v2864
    %v2896 = vadd.f32 %v2895, %v2865
    %v2897 = vadd.f32 %v2896, %v2866
    %v2898 = vadd.f32 %v2897, %v2867
    %v2899 = vadd.f32 %v2898, %v2868
    %v2900 = vadd.f32 %v2899, %v2869
    %v2901 = vadd.f32 %v2900, %v2870
    %v2902 = vadd.f32 %v2901, %v2871
    %v2903 = vadd.f32 %v2902, %v2872
    %v2904 = vadd.f32 %v2903, %v2873
    %v2905 = vadd.f32 %v2904, %v2874
    %v2906 = vadd.f32 %v2905, %v2875
    %v2907 = vrot.slane %v2906, 4
    %v2908 = vadd.f32 %v2906, %v2907
    %v2909 = vrot.slane %v2908, 2
    %v2910 = vadd.f32 %v2908, %v2909
    %v2911 = vrot.slane %v2910, 1
    %v2912 = vadd.f32 %v2910, %v2911
    %v2913 = vmul.f32 %v2843, 0.00390625
    %v2914 = vmul.f32 %v2912, 0.00390625
    %v2915 = vmul.f32 %v2913, %v2913
    %v2916 = vsub.f32 %v2914, %v2915
    %v2917 = vmax.f32 %v2916, 0.0
    %v2918 = vadd.f32 %v2917, 1e-05
    %v2919 = vrsqrt.pop %v2918
    %v2920 = vmul.f32 %v2805, %v2919
    %v2921 = vmul.f32 %v2913, %v2920
    %v2922 = vsub.f32 %v2806, %v2921
    %v2923 = vlaneseq
    %v2924 = vshrl.u32 %v2923, 7
    %v2925 = vsub.s32 0, %v2924
    %v2926 = vrot.slane %v2920, %v2925
    %v2927 = vmul.f32 %v2678, %v2926
    %v2928 = vmul.f32 %v2681, %v2926
    %v2929 = vmul.f32 %v2686, %v2926
    %v2930 = vmul.f32 %v2689, %v2926
    %v2931 = vmul.f32 %v2694, %v2926
    %v2932 = vmul.f32 %v2697, %v2926
    %v2933 = vmul.f32 %v2702, %v2926
    %v2934 = vmul.f32 %v2705, %v2926
    %v2935 = vmul.f32 %v2710, %v2926
    %v2936 = vmul.f32 %v2713, %v2926
    %v2937 = vmul.f32 %v2718, %v2926
    %v2938 = vmul.f32 %v2721, %v2926
    %v2939 = vmul.f32 %v2726, %v2926
    %v2940 = vmul.f32 %v2729, %v2926
    %v2941 = vmul.f32 %v2734, %v2926
    %v2942 = vmul.f32 %v2737, %v2926
    %v2943 = vmul.f32 %v2742, %v2926
    %v2944 = vmul.f32 %v2745, %v2926
    %v2945 = vmul.f32 %v2750, %v2926
    %v2946 = vmul.f32 %v2753, %v2926
    %v2947 = vmul.f32 %v2758, %v2926
    %v2948 = vmul.f32 %v2761, %v2926
    %v2949 = vmul.f32 %v2766, %v2926
    %v2950 = vmul.f32 %v2769, %v2926
    %v2951 = vmul.f32 %v2774, %v2926
    %v2952 = vmul.f32 %v2777, %v2926
    %v2953 = vmul.f32 %v2782, %v2926
    %v2954 = vmul.f32 %v2785, %v2926
    %v2955 = vmul.f32 %v2790, %v2926
    %v2956 = vmul.f32 %v2793, %v2926
    %v2957 = vmul.f32 %v2798, %v2926
    %v2958 = vmul.f32 %v2801, %v2926
    %v2959 = vlaneseq
    %v2960 = vshrl.u32 %v2959, 7
    %v2961 = vsub.s32 0, %v2960
    %v2962 = vrot.slane %v2922, %v2961
    %v2963 = vadd.f32 %v2927, %v2962
    %v2964 = vadd.f32 %v2928, %v2962
    %v2965 = vadd.f32 %v2929, %v2962
    %v2966 = vadd.f32 %v2930, %v2962
    %v2967 = vadd.f32 %v2931, %v2962
    %v2968 = vadd.f32 %v2932, %v2962
    %v2969 = vadd.f32 %v2933, %v2962
    %v2970 = vadd.f32 %v2934, %v2962
    %v2971 = vadd.f32 %v2935, %v2962
    %v2972 = vadd.f32 %v2936, %v2962
    %v2973 = vadd.f32 %v2937, %v2962
    %v2974 = vadd.f32 %v2938, %v2962
    %v2975 = vadd.f32 %v2939, %v2962
    %v2976 = vadd.f32 %v2940, %v2962
    %v2977 = vadd.f32 %v2941, %v2962
    %v2978 = vadd.f32 %v2942, %v2962
    %v2979 = vadd.f32 %v2943, %v2962
    %v2980 = vadd.f32 %v2944, %v2962
    %v2981 = vadd.f32 %v2945, %v2962
    %v2982 = vadd.f32 %v2946, %v2962
    %v2983 = vadd.f32 %v2947, %v2962
    %v2984 = vadd.f32 %v2948, %v2962
    %v2985 = vadd.f32 %v2949, %v2962
    %v2986 = vadd.f32 %v2950, %v2962
    %v2987 = vadd.f32 %v2951, %v2962
    %v2988 = vadd.f32 %v2952, %v2962
    %v2989 = vadd.f32 %v2953, %v2962
    %v2990 = vadd.f32 %v2954, %v2962
    %v2991 = vadd.f32 %v2955, %v2962
    %v2992 = vadd.f32 %v2956, %v2962
    %v2993 = vadd.f32 %v2957, %v2962
    %v2994 = vadd.f32 %v2958, %v2962
    %v2995 = vmax.f32 %v2963, 0.0
    %v2996 = vmax.f32 %v2964, 0.0
    %v2997 = vmax.f32 %v2965, 0.0
    %v2998 = vmax.f32 %v2966, 0.0
    %v2999 = vmax.f32 %v2967, 0.0
    %v3000 = vmax.f32 %v2968, 0.0
    %v3001 = vmax.f32 %v2969, 0.0
    %v3002 = vmax.f32 %v2970, 0.0
    %v3003 = vmax.f32 %v2971, 0.0
    %v3004 = vmax.f32 %v2972, 0.0
    %v3005 = vmax.f32 %v2973, 0.0
    %v3006 = vmax.f32 %v2974, 0.0
    %v3007 = vmax.f32 %v2975, 0.0
    %v3008 = vmax.f32 %v2976, 0.0
    %v3009 = vmax.f32 %v2977, 0.0
    %v3010 = vmax.f32 %v2978, 0.0
    %v3011 = vmax.f32 %v2979, 0.0
    %v3012 = vmax.f32 %v2980, 0.0
    %v3013 = vmax.f32 %v2981, 0.0
    %v3014 = vmax.f32 %v2982, 0.0
    %v3015 = vmax.f32 %v2983, 0.0
    %v3016 = vmax.f32 %v2984, 0.0
    %v3017 = vmax.f32 %v2985, 0.0
    %v3018 = vmax.f32 %v2986, 0.0
    %v3019 = vmax.f32 %v2987, 0.0
    %v3020 = vmax.f32 %v2988, 0.0
    %v3021 = vmax.f32 %v2989, 0.0
    %v3022 = vmax.f32 %v2990, 0.0
    %v3023 = vmax.f32 %v2991, 0.0
    %v3024 = vmax.f32 %v2992, 0.0
    %v3025 = vmax.f32 %v2993, 0.0
    %v3026 = vmax.f32 %v2994, 0.0
    %v3027 = vpack.c.bf16 %v2996, %v2995
    %v3028 = vpack.c.bf16 %v2998, %v2997
    %v3029 = vpack.c.bf16 %v3000, %v2999
    %v3030 = vpack.c.bf16 %v3002, %v3001
    %v3031 = vpack.c.bf16 %v3004, %v3003
    %v3032 = vpack.c.bf16 %v3006, %v3005
    %v3033 = vpack.c.bf16 %v3008, %v3007
    %v3034 = vpack.c.bf16 %v3010, %v3009
    %v3035 = vpack.c.bf16 %v3012, %v3011
    %v3036 = vpack.c.bf16 %v3014, %v3013
    %v3037 = vpack.c.bf16 %v3016, %v3015
    %v3038 = vpack.c.bf16 %v3018, %v3017
    %v3039 = vpack.c.bf16 %v3020, %v3019
    %v3040 = vpack.c.bf16 %v3022, %v3021
    %v3041 = vpack.c.bf16 %v3024, %v3023
    %v3042 = vpack.c.bf16 %v3026, %v3025
    %s3043 = scalar_lea.vmem [#allocation7], 128
    %v3044 = vld [vmem:[%s3043] sm:$0xf]
    %v3045 = vld [vmem:[%s3043 + $0x4] sm:$0xf]
    %v3046 = vld [vmem:[%s3043 + $0x8] sm:$0xf]
    %v3047 = vld [vmem:[%s3043 + $0xc] sm:$0xf]
    %v3048 = vld [vmem:[%s3043 + $0x10] sm:$0xf]
    %v3049 = vld [vmem:[%s3043 + $0x14] sm:$0xf]
    %v3050 = vld [vmem:[%s3043 + $0x18] sm:$0xf]
    %v3051 = vld [vmem:[%s3043 + $0x1c] sm:$0xf]
    %v3052 = vld [vmem:[%s3043 + $0x20] sm:$0xf]
    %v3053 = vld [vmem:[%s3043 + $0x24] sm:$0xf]
    %v3054 = vld [vmem:[%s3043 + $0x28] sm:$0xf]
    %v3055 = vld [vmem:[%s3043 + $0x2c] sm:$0xf]
    %v3056 = vld [vmem:[%s3043 + $0x30] sm:$0xf]
    %v3057 = vld [vmem:[%s3043 + $0x34] sm:$0xf]
    %v3058 = vld [vmem:[%s3043 + $0x38] sm:$0xf]
    %v3059 = vld [vmem:[%s3043 + $0x3c] sm:$0xf]
    %v3076 = vunpack.c.l.b16 %v3044
    %v3077 = vunpack.c.l.b16 %v3045
    %v3078 = vunpack.c.l.b16 %v3046
    %v3079 = vunpack.c.l.b16 %v3047
    %v3080 = vunpack.c.l.b16 %v3048
    %v3081 = vunpack.c.l.b16 %v3049
    %v3082 = vunpack.c.l.b16 %v3050
    %v3083 = vunpack.c.l.b16 %v3051
    %v3084 = vunpack.c.l.b16 %v3052
    %v3085 = vunpack.c.l.b16 %v3053
    %v3086 = vunpack.c.l.b16 %v3054
    %v3087 = vunpack.c.l.b16 %v3055
    %v3088 = vunpack.c.l.b16 %v3056
    %v3089 = vunpack.c.l.b16 %v3057
    %v3090 = vunpack.c.l.b16 %v3058
    %v3091 = vunpack.c.l.b16 %v3059
    %v3092 = vpack.c.b16 %v3077, %v3076
    %v3093 = vpack.c.b16 %v3079, %v3078
    %v3094 = vpack.c.b16 %v3081, %v3080
    %v3095 = vpack.c.b16 %v3083, %v3082
    %v3096 = vpack.c.b16 %v3085, %v3084
    %v3097 = vpack.c.b16 %v3087, %v3086
    %v3098 = vpack.c.b16 %v3089, %v3088
    %v3099 = vpack.c.b16 %v3091, %v3090
    %3108 = vmatprep.subr.bf16.mxu0 0
    %3109 = vmatpush1.bf16.msra.mxu0 %v3092
    %3110 = vmatprep.subr.bf16.mxu0 0
    %3111 = vmatpush1.bf16.msra.mxu0 %v3093
    %3112 = vmatprep.subr.bf16.mxu0 0
    %3113 = vmatpush1.bf16.msra.mxu0 %v3094
    %3114 = vmatprep.subr.bf16.mxu0 0
    %3115 = vmatpush1.bf16.msra.mxu0 %v3095
    %3116 = vmatprep.subr.bf16.mxu0 0
    %3117 = vmatpush1.bf16.msra.mxu0 %v3096
    %3118 = vmatprep.subr.bf16.mxu0 0
    %3119 = vmatpush1.bf16.msra.mxu0 %v3097
    %3120 = vmatprep.subr.bf16.mxu0 0
    %3121 = vmatpush1.bf16.msra.mxu0 %v3098
    %3122 = vmatprep.subr.bf16.mxu0 0
    %3123 = vmatpush1.bf16.msra.mxu0 %v3099
    %3124 = vmatprep.subr.bf16.mxu0 0
    %3125 = vmatpush1.bf16.msra.mxu0 0
    %3126 = vmatprep.subr.bf16.mxu0 0
    %3127 = vmatpush1.bf16.msra.mxu0 0
    %3128 = vmatprep.subr.bf16.mxu0 0
    %3129 = vmatpush1.bf16.msra.mxu0 0
    %3130 = vmatprep.subr.bf16.mxu0 0
    %3131 = vmatpush1.bf16.msra.mxu0 0
    %3132 = vmatprep.subr.bf16.mxu0 0
    %3133 = vmatpush1.bf16.msra.mxu0 0
    %3134 = vmatprep.subr.bf16.mxu0 0
    %3135 = vmatpush1.bf16.msra.mxu0 0
    %3136 = vmatprep.subr.bf16.mxu0 0
    %3137 = vmatpush1.bf16.msra.mxu0 0
    %3138 = vmatprep.subr.bf16.mxu0 0
    %3139 = vmatpush1.bf16.msra.mxu0 0
    %3140 = vmatprep.mubr.bf16.mxu0 0
    %3141 = vmatmul.mubr.bf16.gmra.mrb[0].mxu0 %v3027
    %v3142 = vpop.f32.mrb[0].mxu0
    %v3143 = vadd.f32 0.0, %v3142
    %v3144 = vpop.f32.mrb[0].mxu0
    %v3145 = vpop.f32.mrb[0].mxu0
    %v3146 = vadd.f32 0.0, %v3145
    %v3147 = vpop.f32.mrb[0].mxu0
    %3148 = vmatprep.mubr.bf16.mxu0 0
    %3149 = vmatmul.mubr.bf16.gmra.mrb[0].mxu0 %v3028
    %v3150 = vpop.f32.mrb[0].mxu0
    %v3151 = vadd.f32 0.0, %v3150
    %v3152 = vpop.f32.mrb[0].mxu0
    %v3153 = vpop.f32.mrb[0].mxu0
    %v3154 = vadd.f32 0.0, %v3153
    %v3155 = vpop.f32.mrb[0].mxu0
    %3156 = vmatprep.mubr.bf16.mxu0 0
    %3157 = vmatmul.mubr.bf16.gmra.mrb[0].mxu0 %v3029
    %v3158 = vpop.f32.mrb[0].mxu0
    %v3159 = vadd.f32 0.0, %v3158
    %v3160 = vpop.f32.mrb[0].mxu0
    %v3161 = vpop.f32.mrb[0].mxu0
    %v3162 = vadd.f32 0.0, %v3161
    %v3163 = vpop.f32.mrb[0].mxu0
    %3164 = vmatprep.mubr.bf16.mxu0 0
    %3165 = vmatmul.mubr.bf16.gmra.mrb[0].mxu0 %v3030
    %v3166 = vpop.f32.mrb[0].mxu0
    %v3167 = vadd.f32 0.0, %v3166
    %v3168 = vpop.f32.mrb[0].mxu0
    %v3169 = vpop.f32.mrb[0].mxu0
    %v3170 = vadd.f32 0.0, %v3169
    %v3171 = vpop.f32.mrb[0].mxu0
    %3172 = vmatprep.mubr.bf16.mxu0 0
    %3173 = vmatmul.mubr.bf16.gmra.mrb[0].mxu0 %v3031
    %v3174 = vpop.f32.mrb[0].mxu0
    %v3175 = vadd.f32 0.0, %v3174
    %v3176 = vpop.f32.mrb[0].mxu0
    %v3177 = vpop.f32.mrb[0].mxu0
    %v3178 = vadd.f32 0.0, %v3177
    %v3179 = vpop.f32.mrb[0].mxu0
    %3180 = vmatprep.mubr.bf16.mxu0 0
    %3181 = vmatmul.mubr.bf16.gmra.mrb[0].mxu0 %v3032
    %v3182 = vpop.f32.mrb[0].mxu0
    %v3183 = vadd.f32 0.0, %v3182
    %v3184 = vpop.f32.mrb[0].mxu0
    %v3185 = vpop.f32.mrb[0].mxu0
    %v3186 = vadd.f32 0.0, %v3185
    %v3187 = vpop.f32.mrb[0].mxu0
    %3188 = vmatprep.mubr.bf16.mxu0 0
    %3189 = vmatmul.mubr.bf16.gmra.mrb[0].mxu0 %v3033
    %v3190 = vpop.f32.mrb[0].mxu0
    %v3191 = vadd.f32 0.0, %v3190
    %v3192 = vpop.f32.mrb[0].mxu0
    %v3193 = vpop.f32.mrb[0].mxu0
    %v3194 = vadd.f32 0.0, %v3193
    %v3195 = vpop.f32.mrb[0].mxu0
    %3196 = vmatprep.mubr.bf16.mxu0 0
    %3197 = vmatmul.mubr.bf16.gmra.mrb[0].mxu0 %v3034
    %v3198 = vpop.f32.mrb[0].mxu0
    %v3199 = vadd.f32 0.0, %v3198
    %v3200 = vpop.f32.mrb[0].mxu0
    %v3201 = vpop.f32.mrb[0].mxu0
    %v3202 = vadd.f32 0.0, %v3201
    %v3203 = vpop.f32.mrb[0].mxu0
    %3204 = vmatprep.mubr.bf16.mxu0 0
    %3205 = vmatmul.mubr.bf16.gmra.mrb[0].mxu0 %v3035
    %v3206 = vpop.f32.mrb[0].mxu0
    %v3207 = vadd.f32 0.0, %v3206
    %v3208 = vpop.f32.mrb[0].mxu0
    %v3209 = vpop.f32.mrb[0].mxu0
    %v3210 = vadd.f32 0.0, %v3209
    %v3211 = vpop.f32.mrb[0].mxu0
    %3212 = vmatprep.mubr.bf16.mxu0 0
    %3213 = vmatmul.mubr.bf16.gmra.mrb[0].mxu0 %v3036
    %v3214 = vpop.f32.mrb[0].mxu0
    %v3215 = vadd.f32 0.0, %v3214
    %v3216 = vpop.f32.mrb[0].mxu0
    %v3217 = vpop.f32.mrb[0].mxu0
    %v3218 = vadd.f32 0.0, %v3217
    %v3219 = vpop.f32.mrb[0].mxu0
    %3220 = vmatprep.mubr.bf16.mxu0 0
    %3221 = vmatmul.mubr.bf16.gmra.mrb[0].mxu0 %v3037
    %v3222 = vpop.f32.mrb[0].mxu0
    %v3223 = vadd.f32 0.0, %v3222
    %v3224 = vpop.f32.mrb[0].mxu0
    %v3225 = vpop.f32.mrb[0].mxu0
    %v3226 = vadd.f32 0.0, %v3225
    %v3227 = vpop.f32.mrb[0].mxu0
    %3228 = vmatprep.mubr.bf16.mxu0 0
    %3229 = vmatmul.mubr.bf16.gmra.mrb[0].mxu0 %v3038
    %v3230 = vpop.f32.mrb[0].mxu0
    %v3231 = vadd.f32 0.0, %v3230
    %v3232 = vpop.f32.mrb[0].mxu0
    %v3233 = vpop.f32.mrb[0].mxu0
    %v3234 = vadd.f32 0.0, %v3233
    %v3235 = vpop.f32.mrb[0].mxu0
    %3236 = vmatprep.mubr.bf16.mxu0 0
    %3237 = vmatmul.mubr.bf16.gmra.mrb[0].mxu0 %v3039
    %v3238 = vpop.f32.mrb[0].mxu0
    %v3239 = vadd.f32 0.0, %v3238
    %v3240 = vpop.f32.mrb[0].mxu0
    %v3241 = vpop.f32.mrb[0].mxu0
    %v3242 = vadd.f32 0.0, %v3241
    %v3243 = vpop.f32.mrb[0].mxu0
    %3244 = vmatprep.mubr.bf16.mxu0 0
    %3245 = vmatmul.mubr.bf16.gmra.mrb[0].mxu0 %v3040
    %v3246 = vpop.f32.mrb[0].mxu0
    %v3247 = vadd.f32 0.0, %v3246
    %v3248 = vpop.f32.mrb[0].mxu0
    %v3249 = vpop.f32.mrb[0].mxu0
    %v3250 = vadd.f32 0.0, %v3249
    %v3251 = vpop.f32.mrb[0].mxu0
    %3252 = vmatprep.mubr.bf16.mxu0 0
    %3253 = vmatmul.mubr.bf16.gmra.mrb[0].mxu0 %v3041
    %v3254 = vpop.f32.mrb[0].mxu0
    %v3255 = vadd.f32 0.0, %v3254
    %v3256 = vpop.f32.mrb[0].mxu0
    %v3257 = vpop.f32.mrb[0].mxu0
    %v3258 = vadd.f32 0.0, %v3257
    %v3259 = vpop.f32.mrb[0].mxu0
    %3260 = vmatprep.mubr.bf16.mxu0 0
    %3261 = vmatmul.mubr.bf16.gmra.mrb[0].mxu0 %v3042
    %v3262 = vpop.f32.mrb[0].mxu0
    %v3263 = vadd.f32 0.0, %v3262
    %v3264 = vpop.f32.mrb[0].mxu0
    %v3265 = vpop.f32.mrb[0].mxu0
    %v3266 = vadd.f32 0.0, %v3265
    %v3267 = vpop.f32.mrb[0].mxu0
    %3268 = vdwg.mxu0
    %s3269 = scalar_lea.vmem %s4, 6
    %v3270 = vld [vmem:[%s3269] sm:$0x1]
    %v3271 = vld [vmem:[%s3269 + $0x1] sm:$0x1]
    %v3272 = vadd.f32 %v3143, %v3146
    %v3273 = vadd.f32 %v3272, %v3151
    %v3274 = vadd.f32 %v3273, %v3154
    %v3275 = vadd.f32 %v3274, %v3159
    %v3276 = vadd.f32 %v3275, %v3162
    %v3277 = vadd.f32 %v3276, %v3167
    %v3278 = vadd.f32 %v3277, %v3170
    %v3279 = vadd.f32 %v3278, %v3175
    %v3280 = vadd.f32 %v3279, %v3178
    %v3281 = vadd.f32 %v3280, %v3183
    %v3282 = vadd.f32 %v3281, %v3186
    %v3283 = vadd.f32 %v3282, %v3191
    %v3284 = vadd.f32 %v3283, %v3194
    %v3285 = vadd.f32 %v3284, %v3199
    %v3286 = vadd.f32 %v3285, %v3202
    %v3287 = vadd.f32 %v3286, %v3207
    %v3288 = vadd.f32 %v3287, %v3210
    %v3289 = vadd.f32 %v3288, %v3215
    %v3290 = vadd.f32 %v3289, %v3218
    %v3291 = vadd.f32 %v3290, %v3223
    %v3292 = vadd.f32 %v3291, %v3226
    %v3293 = vadd.f32 %v3292, %v3231
    %v3294 = vadd.f32 %v3293, %v3234
    %v3295 = vadd.f32 %v3294, %v3239
    %v3296 = vadd.f32 %v3295, %v3242
    %v3297 = vadd.f32 %v3296, %v3247
    %v3298 = vadd.f32 %v3297, %v3250
    %v3299 = vadd.f32 %v3298, %v3255
    %v3300 = vadd.f32 %v3299, %v3258
    %v3301 = vadd.f32 %v3300, %v3263
    %v3302 = vadd.f32 %v3301, %v3266
    %v3303 = vrot.slane %v3302, 4
    %v3304 = vadd.f32 %v3302, %v3303
    %v3305 = vrot.slane %v3304, 2
    %v3306 = vadd.f32 %v3304, %v3305
    %v3307 = vrot.slane %v3306, 1
    %v3308 = vadd.f32 %v3306, %v3307
    %v3309 = vmul.f32 %v3143, %v3143
    %v3310 = vmul.f32 %v3146, %v3146
    %v3311 = vmul.f32 %v3151, %v3151
    %v3312 = vmul.f32 %v3154, %v3154
    %v3313 = vmul.f32 %v3159, %v3159
    %v3314 = vmul.f32 %v3162, %v3162
    %v3315 = vmul.f32 %v3167, %v3167
    %v3316 = vmul.f32 %v3170, %v3170
    %v3317 = vmul.f32 %v3175, %v3175
    %v3318 = vmul.f32 %v3178, %v3178
    %v3319 = vmul.f32 %v3183, %v3183
    %v3320 = vmul.f32 %v3186, %v3186
    %v3321 = vmul.f32 %v3191, %v3191
    %v3322 = vmul.f32 %v3194, %v3194
    %v3323 = vmul.f32 %v3199, %v3199
    %v3324 = vmul.f32 %v3202, %v3202
    %v3325 = vmul.f32 %v3207, %v3207
    %v3326 = vmul.f32 %v3210, %v3210
    %v3327 = vmul.f32 %v3215, %v3215
    %v3328 = vmul.f32 %v3218, %v3218
    %v3329 = vmul.f32 %v3223, %v3223
    %v3330 = vmul.f32 %v3226, %v3226
    %v3331 = vmul.f32 %v3231, %v3231
    %v3332 = vmul.f32 %v3234, %v3234
    %v3333 = vmul.f32 %v3239, %v3239
    %v3334 = vmul.f32 %v3242, %v3242
    %v3335 = vmul.f32 %v3247, %v3247
    %v3336 = vmul.f32 %v3250, %v3250
    %v3337 = vmul.f32 %v3255, %v3255
    %v3338 = vmul.f32 %v3258, %v3258
    %v3339 = vmul.f32 %v3263, %v3263
    %v3340 = vmul.f32 %v3266, %v3266
    %v3341 = vadd.f32 %v3309, %v3310
    %v3342 = vadd.f32 %v3341, %v3311
    %v3343 = vadd.f32 %v3342, %v3312
    %v3344 = vadd.f32 %v3343, %v3313
    %v3345 = vadd.f32 %v3344, %v3314
    %v3346 = vadd.f32 %v3345, %v3315
    %v3347 = vadd.f32 %v3346, %v3316
    %v3348 = vadd.f32 %v3347, %v3317
    %v3349 = vadd.f32 %v3348, %v3318
    %v3350 = vadd.f32 %v3349, %v3319
    %v3351 = vadd.f32 %v3350, %v3320
    %v3352 = vadd.f32 %v3351, %v3321
    %v3353 = vadd.f32 %v3352, %v3322
    %v3354 = vadd.f32 %v3353, %v3323
    %v3355 = vadd.f32 %v3354, %v3324
    %v3356 = vadd.f32 %v3355, %v3325
    %v3357 = vadd.f32 %v3356, %v3326
    %v3358 = vadd.f32 %v3357, %v3327
    %v3359 = vadd.f32 %v3358, %v3328
    %v3360 = vadd.f32 %v3359, %v3329
    %v3361 = vadd.f32 %v3360, %v3330
    %v3362 = vadd.f32 %v3361, %v3331
    %v3363 = vadd.f32 %v3362, %v3332
    %v3364 = vadd.f32 %v3363, %v3333
    %v3365 = vadd.f32 %v3364, %v3334
    %v3366 = vadd.f32 %v3365, %v3335
    %v3367 = vadd.f32 %v3366, %v3336
    %v3368 = vadd.f32 %v3367, %v3337
    %v3369 = vadd.f32 %v3368, %v3338
    %v3370 = vadd.f32 %v3369, %v3339
    %v3371 = vadd.f32 %v3370, %v3340
    %v3372 = vrot.slane %v3371, 4
    %v3373 = vadd.f32 %v3371, %v3372
    %v3374 = vrot.slane %v3373, 2
    %v3375 = vadd.f32 %v3373, %v3374
    %v3376 = vrot.slane %v3375, 1
    %v3377 = vadd.f32 %v3375, %v3376
    %v3378 = vmul.f32 %v3308, 0.00390625
    %v3379 = vmul.f32 %v3377, 0.00390625
    %v3380 = vmul.f32 %v3378, %v3378
    %v3381 = vsub.f32 %v3379, %v3380
    %v3382 = vmax.f32 %v3381, 0.0
    %v3383 = vadd.f32 %v3382, 1e-05
    %v3384 = vrsqrt.pop %v3383
    %v3385 = vmul.f32 %v3270, %v3384
    %v3386 = vmul.f32 %v3378, %v3385
    %v3387 = vsub.f32 %v3271, %v3386
    %v3388 = vlaneseq
    %v3389 = vshrl.u32 %v3388, 7
    %v3390 = vsub.s32 0, %v3389
    %v3391 = vrot.slane %v3385, %v3390
    %v3392 = vmul.f32 %v3143, %v3391
    %v3393 = vmul.f32 %v3146, %v3391
    %v3394 = vmul.f32 %v3151, %v3391
    %v3395 = vmul.f32 %v3154, %v3391
    %v3396 = vmul.f32 %v3159, %v3391
    %v3397 = vmul.f32 %v3162, %v3391
    %v3398 = vmul.f32 %v3167, %v3391
    %v3399 = vmul.f32 %v3170, %v3391
    %v3400 = vmul.f32 %v3175, %v3391
    %v3401 = vmul.f32 %v3178, %v3391
    %v3402 = vmul.f32 %v3183, %v3391
    %v3403 = vmul.f32 %v3186, %v3391
    %v3404 = vmul.f32 %v3191, %v3391
    %v3405 = vmul.f32 %v3194, %v3391
    %v3406 = vmul.f32 %v3199, %v3391
    %v3407 = vmul.f32 %v3202, %v3391
    %v3408 = vmul.f32 %v3207, %v3391
    %v3409 = vmul.f32 %v3210, %v3391
    %v3410 = vmul.f32 %v3215, %v3391
    %v3411 = vmul.f32 %v3218, %v3391
    %v3412 = vmul.f32 %v3223, %v3391
    %v3413 = vmul.f32 %v3226, %v3391
    %v3414 = vmul.f32 %v3231, %v3391
    %v3415 = vmul.f32 %v3234, %v3391
    %v3416 = vmul.f32 %v3239, %v3391
    %v3417 = vmul.f32 %v3242, %v3391
    %v3418 = vmul.f32 %v3247, %v3391
    %v3419 = vmul.f32 %v3250, %v3391
    %v3420 = vmul.f32 %v3255, %v3391
    %v3421 = vmul.f32 %v3258, %v3391
    %v3422 = vmul.f32 %v3263, %v3391
    %v3423 = vmul.f32 %v3266, %v3391
    %v3424 = vlaneseq
    %v3425 = vshrl.u32 %v3424, 7
    %v3426 = vsub.s32 0, %v3425
    %v3427 = vrot.slane %v3387, %v3426
    %v3428 = vadd.f32 %v3392, %v3427
    %v3429 = vadd.f32 %v3393, %v3427
    %v3430 = vadd.f32 %v3394, %v3427
    %v3431 = vadd.f32 %v3395, %v3427
    %v3432 = vadd.f32 %v3396, %v3427
    %v3433 = vadd.f32 %v3397, %v3427
    %v3434 = vadd.f32 %v3398, %v3427
    %v3435 = vadd.f32 %v3399, %v3427
    %v3436 = vadd.f32 %v3400, %v3427
    %v3437 = vadd.f32 %v3401, %v3427
    %v3438 = vadd.f32 %v3402, %v3427
    %v3439 = vadd.f32 %v3403, %v3427
    %v3440 = vadd.f32 %v3404, %v3427
    %v3441 = vadd.f32 %v3405, %v3427
    %v3442 = vadd.f32 %v3406, %v3427
    %v3443 = vadd.f32 %v3407, %v3427
    %v3444 = vadd.f32 %v3408, %v3427
    %v3445 = vadd.f32 %v3409, %v3427
    %v3446 = vadd.f32 %v3410, %v3427
    %v3447 = vadd.f32 %v3411, %v3427
    %v3448 = vadd.f32 %v3412, %v3427
    %v3449 = vadd.f32 %v3413, %v3427
    %v3450 = vadd.f32 %v3414, %v3427
    %v3451 = vadd.f32 %v3415, %v3427
    %v3452 = vadd.f32 %v3416, %v3427
    %v3453 = vadd.f32 %v3417, %v3427
    %v3454 = vadd.f32 %v3418, %v3427
    %v3455 = vadd.f32 %v3419, %v3427
    %v3456 = vadd.f32 %v3420, %v3427
    %v3457 = vadd.f32 %v3421, %v3427
    %v3458 = vadd.f32 %v3422, %v3427
    %v3459 = vadd.f32 %v3423, %v3427
    %v3460 = vmax.f32 %v3428, 0.0
    %v3461 = vmax.f32 %v3429, 0.0
    %v3462 = vmax.f32 %v3430, 0.0
    %v3463 = vmax.f32 %v3431, 0.0
    %v3464 = vmax.f32 %v3432, 0.0
    %v3465 = vmax.f32 %v3433, 0.0
    %v3466 = vmax.f32 %v3434, 0.0
    %v3467 = vmax.f32 %v3435, 0.0
    %v3468 = vmax.f32 %v3436, 0.0
    %v3469 = vmax.f32 %v3437, 0.0
    %v3470 = vmax.f32 %v3438, 0.0
    %v3471 = vmax.f32 %v3439, 0.0
    %v3472 = vmax.f32 %v3440, 0.0
    %v3473 = vmax.f32 %v3441, 0.0
    %v3474 = vmax.f32 %v3442, 0.0
    %v3475 = vmax.f32 %v3443, 0.0
    %v3476 = vmax.f32 %v3444, 0.0
    %v3477 = vmax.f32 %v3445, 0.0
    %v3478 = vmax.f32 %v3446, 0.0
    %v3479 = vmax.f32 %v3447, 0.0
    %v3480 = vmax.f32 %v3448, 0.0
    %v3481 = vmax.f32 %v3449, 0.0
    %v3482 = vmax.f32 %v3450, 0.0
    %v3483 = vmax.f32 %v3451, 0.0
    %v3484 = vmax.f32 %v3452, 0.0
    %v3485 = vmax.f32 %v3453, 0.0
    %v3486 = vmax.f32 %v3454, 0.0
    %v3487 = vmax.f32 %v3455, 0.0
    %v3488 = vmax.f32 %v3456, 0.0
    %v3489 = vmax.f32 %v3457, 0.0
    %v3490 = vmax.f32 %v3458, 0.0
    %v3491 = vmax.f32 %v3459, 0.0
    %v3492 = vpack.c.bf16 %v3461, %v3460
    %v3493 = vpack.c.bf16 %v3463, %v3462
    %v3494 = vpack.c.bf16 %v3465, %v3464
    %v3495 = vpack.c.bf16 %v3467, %v3466
    %v3496 = vpack.c.bf16 %v3469, %v3468
    %v3497 = vpack.c.bf16 %v3471, %v3470
    %v3498 = vpack.c.bf16 %v3473, %v3472
    %v3499 = vpack.c.bf16 %v3475, %v3474
    %v3500 = vpack.c.bf16 %v3477, %v3476
    %v3501 = vpack.c.bf16 %v3479, %v3478
    %v3502 = vpack.c.bf16 %v3481, %v3480
    %v3503 = vpack.c.bf16 %v3483, %v3482
    %v3504 = vpack.c.bf16 %v3485, %v3484
    %v3505 = vpack.c.bf16 %v3487, %v3486
    %v3506 = vpack.c.bf16 %v3489, %v3488
    %v3507 = vpack.c.bf16 %v3491, %v3490
    %s3508 = scalar_lea.vmem [#allocation7], 192
    %v3509 = vld [vmem:[%s3508] sm:$0xf]
    %v3510 = vld [vmem:[%s3508 + $0x4] sm:$0xf]
    %v3511 = vld [vmem:[%s3508 + $0x8] sm:$0xf]
    %v3512 = vld [vmem:[%s3508 + $0xc] sm:$0xf]
    %v3513 = vld [vmem:[%s3508 + $0x10] sm:$0xf]
    %v3514 = vld [vmem:[%s3508 + $0x14] sm:$0xf]
    %v3515 = vld [vmem:[%s3508 + $0x18] sm:$0xf]
    %v3516 = vld [vmem:[%s3508 + $0x1c] sm:$0xf]
    %v3517 = vld [vmem:[%s3508 + $0x20] sm:$0xf]
    %v3518 = vld [vmem:[%s3508 + $0x24] sm:$0xf]
    %v3519 = vld [vmem:[%s3508 + $0x28] sm:$0xf]
    %v3520 = vld [vmem:[%s3508 + $0x2c] sm:$0xf]
    %v3521 = vld [vmem:[%s3508 + $0x30] sm:$0xf]
    %v3522 = vld [vmem:[%s3508 + $0x34] sm:$0xf]
    %v3523 = vld [vmem:[%s3508 + $0x38] sm:$0xf]
    %v3524 = vld [vmem:[%s3508 + $0x3c] sm:$0xf]
    %v3541 = vunpack.c.l.b16 %v3509
    %v3542 = vunpack.c.l.b16 %v3510
    %v3543 = vunpack.c.l.b16 %v3511
    %v3544 = vunpack.c.l.b16 %v3512
    %v3545 = vunpack.c.l.b16 %v3513
    %v3546 = vunpack.c.l.b16 %v3514
    %v3547 = vunpack.c.l.b16 %v3515
    %v3548 = vunpack.c.l.b16 %v3516
    %v3549 = vunpack.c.l.b16 %v3517
    %v3550 = vunpack.c.l.b16 %v3518
    %v3551 = vunpack.c.l.b16 %v3519
    %v3552 = vunpack.c.l.b16 %v3520
    %v3553 = vunpack.c.l.b16 %v3521
    %v3554 = vunpack.c.l.b16 %v3522
    %v3555 = vunpack.c.l.b16 %v3523
    %v3556 = vunpack.c.l.b16 %v3524
    %v3557 = vpack.c.b16 %v3542, %v3541
    %v3558 = vpack.c.b16 %v3544, %v3543
    %v3559 = vpack.c.b16 %v3546, %v3545
    %v3560 = vpack.c.b16 %v3548, %v3547
    %v3561 = vpack.c.b16 %v3550, %v3549
    %v3562 = vpack.c.b16 %v3552, %v3551
    %v3563 = vpack.c.b16 %v3554, %v3553
    %v3564 = vpack.c.b16 %v3556, %v3555
    %3573 = vmatprep.subr.bf16.mxu0 0
    %3574 = vmatpush1.bf16.msra.mxu0 %v3557
    %3575 = vmatprep.subr.bf16.mxu0 0
    %3576 = vmatpush1.bf16.msra.mxu0 %v3558
    %3577 = vmatprep.subr.bf16.mxu0 0
    %3578 = vmatpush1.bf16.msra.mxu0 %v3559
    %3579 = vmatprep.subr.bf16.mxu0 0
    %3580 = vmatpush1.bf16.msra.mxu0 %v3560
    %3581 = vmatprep.subr.bf16.mxu0 0
    %3582 = vmatpush1.bf16.msra.mxu0 %v3561
    %3583 = vmatprep.subr.bf16.mxu0 0
    %3584 = vmatpush1.bf16.msra.mxu0 %v3562
    %3585 = vmatprep.subr.bf16.mxu0 0
    %3586 = vmatpush1.bf16.msra.mxu0 %v3563
    %3587 = vmatprep.subr.bf16.mxu0 0
    %3588 = vmatpush1.bf16.msra.mxu0 %v3564
    %3589 = vmatprep.subr.bf16.mxu0 0
    %3590 = vmatpush1.bf16.msra.mxu0 0
    %3591 = vmatprep.subr.bf16.mxu0 0
    %3592 = vmatpush1.bf16.msra.mxu0 0
    %3593 = vmatprep.subr.bf16.mxu0 0
    %3594 = vmatpush1.bf16.msra.mxu0 0
    %3595 = vmatprep.subr.bf16.mxu0 0
    %3596 = vmatpush1.bf16.msra.mxu0 0
    %3597 = vmatprep.subr.bf16.mxu0 0
    %3598 = vmatpush1.bf16.msra.mxu0 0
    %3599 = vmatprep.subr.bf16.mxu0 0
    %3600 = vmatpush1.bf16.msra.mxu0 0
    %3601 = vmatprep.subr.bf16.mxu0 0
    %3602 = vmatpush1.bf16.msra.mxu0 0
    %3603 = vmatprep.subr.bf16.mxu0 0
    %3604 = vmatpush1.bf16.msra.mxu0 0
    %3605 = vmatprep.mubr.bf16.mxu0 0
    %3606 = vmatmul.mubr.bf16.gmra.mrb[0].mxu0 %v3492
    %v3607 = vpop.f32.mrb[0].mxu0
    %v3608 = vadd.f32 0.0, %v3607
    %v3609 = vpop.f32.mrb[0].mxu0
    %v3610 = vpop.f32.mrb[0].mxu0
    %v3611 = vadd.f32 0.0, %v3610
    %v3612 = vpop.f32.mrb[0].mxu0
    %3613 = vmatprep.mubr.bf16.mxu0 0
    %3614 = vmatmul.mubr.bf16.gmra.mrb[0].mxu0 %v3493
    %v3615 = vpop.f32.mrb[0].mxu0
    %v3616 = vadd.f32 0.0, %v3615
    %v3617 = vpop.f32.mrb[0].mxu0
    %v3618 = vpop.f32.mrb[0].mxu0
    %v3619 = vadd.f32 0.0, %v3618
    %v3620 = vpop.f32.mrb[0].mxu0
    %3621 = vmatprep.mubr.bf16.mxu0 0
    %3622 = vmatmul.mubr.bf16.gmra.mrb[0].mxu0 %v3494
    %v3623 = vpop.f32.mrb[0].mxu0
    %v3624 = vadd.f32 0.0, %v3623
    %v3625 = vpop.f32.mrb[0].mxu0
    %v3626 = vpop.f32.mrb[0].mxu0
    %v3627 = vadd.f32 0.0, %v3626
    %v3628 = vpop.f32.mrb[0].mxu0
    %3629 = vmatprep.mubr.bf16.mxu0 0
    %3630 = vmatmul.mubr.bf16.gmra.mrb[0].mxu0 %v3495
    %v3631 = vpop.f32.mrb[0].mxu0
    %v3632 = vadd.f32 0.0, %v3631
    %v3633 = vpop.f32.mrb[0].mxu0
    %v3634 = vpop.f32.mrb[0].mxu0
    %v3635 = vadd.f32 0.0, %v3634
    %v3636 = vpop.f32.mrb[0].mxu0
    %3637 = vmatprep.mubr.bf16.mxu0 0
    %3638 = vmatmul.mubr.bf16.gmra.mrb[0].mxu0 %v3496
    %v3639 = vpop.f32.mrb[0].mxu0
    %v3640 = vadd.f32 0.0, %v3639
    %v3641 = vpop.f32.mrb[0].mxu0
    %v3642 = vpop.f32.mrb[0].mxu0
    %v3643 = vadd.f32 0.0, %v3642
    %v3644 = vpop.f32.mrb[0].mxu0
    %3645 = vmatprep.mubr.bf16.mxu0 0
    %3646 = vmatmul.mubr.bf16.gmra.mrb[0].mxu0 %v3497
    %v3647 = vpop.f32.mrb[0].mxu0
    %v3648 = vadd.f32 0.0, %v3647
    %v3649 = vpop.f32.mrb[0].mxu0
    %v3650 = vpop.f32.mrb[0].mxu0
    %v3651 = vadd.f32 0.0, %v3650
    %v3652 = vpop.f32.mrb[0].mxu0
    %3653 = vmatprep.mubr.bf16.mxu0 0
    %3654 = vmatmul.mubr.bf16.gmra.mrb[0].mxu0 %v3498
    %v3655 = vpop.f32.mrb[0].mxu0
    %v3656 = vadd.f32 0.0, %v3655
    %v3657 = vpop.f32.mrb[0].mxu0
    %v3658 = vpop.f32.mrb[0].mxu0
    %v3659 = vadd.f32 0.0, %v3658
    %v3660 = vpop.f32.mrb[0].mxu0
    %3661 = vmatprep.mubr.bf16.mxu0 0
    %3662 = vmatmul.mubr.bf16.gmra.mrb[0].mxu0 %v3499
    %v3663 = vpop.f32.mrb[0].mxu0
    %v3664 = vadd.f32 0.0, %v3663
    %v3665 = vpop.f32.mrb[0].mxu0
    %v3666 = vpop.f32.mrb[0].mxu0
    %v3667 = vadd.f32 0.0, %v3666
    %v3668 = vpop.f32.mrb[0].mxu0
    %3669 = vmatprep.mubr.bf16.mxu0 0
    %3670 = vmatmul.mubr.bf16.gmra.mrb[0].mxu0 %v3500
    %v3671 = vpop.f32.mrb[0].mxu0
    %v3672 = vadd.f32 0.0, %v3671
    %v3673 = vpop.f32.mrb[0].mxu0
    %v3674 = vpop.f32.mrb[0].mxu0
    %v3675 = vadd.f32 0.0, %v3674
    %v3676 = vpop.f32.mrb[0].mxu0
    %3677 = vmatprep.mubr.bf16.mxu0 0
    %3678 = vmatmul.mubr.bf16.gmra.mrb[0].mxu0 %v3501
    %v3679 = vpop.f32.mrb[0].mxu0
    %v3680 = vadd.f32 0.0, %v3679
    %v3681 = vpop.f32.mrb[0].mxu0
    %v3682 = vpop.f32.mrb[0].mxu0
    %v3683 = vadd.f32 0.0, %v3682
    %v3684 = vpop.f32.mrb[0].mxu0
    %3685 = vmatprep.mubr.bf16.mxu0 0
    %3686 = vmatmul.mubr.bf16.gmra.mrb[0].mxu0 %v3502
    %v3687 = vpop.f32.mrb[0].mxu0
    %v3688 = vadd.f32 0.0, %v3687
    %v3689 = vpop.f32.mrb[0].mxu0
    %v3690 = vpop.f32.mrb[0].mxu0
    %v3691 = vadd.f32 0.0, %v3690
    %v3692 = vpop.f32.mrb[0].mxu0
    %3693 = vmatprep.mubr.bf16.mxu0 0
    %3694 = vmatmul.mubr.bf16.gmra.mrb[0].mxu0 %v3503
    %v3695 = vpop.f32.mrb[0].mxu0
    %v3696 = vadd.f32 0.0, %v3695
    %v3697 = vpop.f32.mrb[0].mxu0
    %v3698 = vpop.f32.mrb[0].mxu0
    %v3699 = vadd.f32 0.0, %v3698
    %v3700 = vpop.f32.mrb[0].mxu0
    %3701 = vmatprep.mubr.bf16.mxu0 0
    %3702 = vmatmul.mubr.bf16.gmra.mrb[0].mxu0 %v3504
    %v3703 = vpop.f32.mrb[0].mxu0
    %v3704 = vadd.f32 0.0, %v3703
    %v3705 = vpop.f32.mrb[0].mxu0
    %v3706 = vpop.f32.mrb[0].mxu0
    %v3707 = vadd.f32 0.0, %v3706
    %v3708 = vpop.f32.mrb[0].mxu0
    %3709 = vmatprep.mubr.bf16.mxu0 0
    %3710 = vmatmul.mubr.bf16.gmra.mrb[0].mxu0 %v3505
    %v3711 = vpop.f32.mrb[0].mxu0
    %v3712 = vadd.f32 0.0, %v3711
    %v3713 = vpop.f32.mrb[0].mxu0
    %v3714 = vpop.f32.mrb[0].mxu0
    %v3715 = vadd.f32 0.0, %v3714
    %v3716 = vpop.f32.mrb[0].mxu0
    %3717 = vmatprep.mubr.bf16.mxu0 0
    %3718 = vmatmul.mubr.bf16.gmra.mrb[0].mxu0 %v3506
    %v3719 = vpop.f32.mrb[0].mxu0
    %v3720 = vadd.f32 0.0, %v3719
    %v3721 = vpop.f32.mrb[0].mxu0
    %v3722 = vpop.f32.mrb[0].mxu0
    %v3723 = vadd.f32 0.0, %v3722
    %v3724 = vpop.f32.mrb[0].mxu0
    %3725 = vmatprep.mubr.bf16.mxu0 0
    %3726 = vmatmul.mubr.bf16.gmra.mrb[0].mxu0 %v3507
    %v3727 = vpop.f32.mrb[0].mxu0
    %v3728 = vadd.f32 0.0, %v3727
    %v3729 = vpop.f32.mrb[0].mxu0
    %v3730 = vpop.f32.mrb[0].mxu0
    %v3731 = vadd.f32 0.0, %v3730
    %v3732 = vpop.f32.mrb[0].mxu0
    %3733 = vdwg.mxu0
    %s3734 = scalar_lea.vmem %s4, 8
    %v3735 = vld [vmem:[%s3734] sm:$0x1]
    %v3736 = vld [vmem:[%s3734 + $0x1] sm:$0x1]
    %v3737 = vadd.f32 %v3608, %v3611
    %v3738 = vadd.f32 %v3737, %v3616
    %v3739 = vadd.f32 %v3738, %v3619
    %v3740 = vadd.f32 %v3739, %v3624
    %v3741 = vadd.f32 %v3740, %v3627
    %v3742 = vadd.f32 %v3741, %v3632
    %v3743 = vadd.f32 %v3742, %v3635
    %v3744 = vadd.f32 %v3743, %v3640
    %v3745 = vadd.f32 %v3744, %v3643
    %v3746 = vadd.f32 %v3745, %v3648
    %v3747 = vadd.f32 %v3746, %v3651
    %v3748 = vadd.f32 %v3747, %v3656
    %v3749 = vadd.f32 %v3748, %v3659
    %v3750 = vadd.f32 %v3749, %v3664
    %v3751 = vadd.f32 %v3750, %v3667
    %v3752 = vadd.f32 %v3751, %v3672
    %v3753 = vadd.f32 %v3752, %v3675
    %v3754 = vadd.f32 %v3753, %v3680
    %v3755 = vadd.f32 %v3754, %v3683
    %v3756 = vadd.f32 %v3755, %v3688
    %v3757 = vadd.f32 %v3756, %v3691
    %v3758 = vadd.f32 %v3757, %v3696
    %v3759 = vadd.f32 %v3758, %v3699
    %v3760 = vadd.f32 %v3759, %v3704
    %v3761 = vadd.f32 %v3760, %v3707
    %v3762 = vadd.f32 %v3761, %v3712
    %v3763 = vadd.f32 %v3762, %v3715
    %v3764 = vadd.f32 %v3763, %v3720
    %v3765 = vadd.f32 %v3764, %v3723
    %v3766 = vadd.f32 %v3765, %v3728
    %v3767 = vadd.f32 %v3766, %v3731
    %v3768 = vrot.slane %v3767, 4
    %v3769 = vadd.f32 %v3767, %v3768
    %v3770 = vrot.slane %v3769, 2
    %v3771 = vadd.f32 %v3769, %v3770
    %v3772 = vrot.slane %v3771, 1
    %v3773 = vadd.f32 %v3771, %v3772
    %v3774 = vmul.f32 %v3608, %v3608
    %v3775 = vmul.f32 %v3611, %v3611
    %v3776 = vmul.f32 %v3616, %v3616
    %v3777 = vmul.f32 %v3619, %v3619
    %v3778 = vmul.f32 %v3624, %v3624
    %v3779 = vmul.f32 %v3627, %v3627
    %v3780 = vmul.f32 %v3632, %v3632
    %v3781 = vmul.f32 %v3635, %v3635
    %v3782 = vmul.f32 %v3640, %v3640
    %v3783 = vmul.f32 %v3643, %v3643
    %v3784 = vmul.f32 %v3648, %v3648
    %v3785 = vmul.f32 %v3651, %v3651
    %v3786 = vmul.f32 %v3656, %v3656
    %v3787 = vmul.f32 %v3659, %v3659
    %v3788 = vmul.f32 %v3664, %v3664
    %v3789 = vmul.f32 %v3667, %v3667
    %v3790 = vmul.f32 %v3672, %v3672
    %v3791 = vmul.f32 %v3675, %v3675
    %v3792 = vmul.f32 %v3680, %v3680
    %v3793 = vmul.f32 %v3683, %v3683
    %v3794 = vmul.f32 %v3688, %v3688
    %v3795 = vmul.f32 %v3691, %v3691
    %v3796 = vmul.f32 %v3696, %v3696
    %v3797 = vmul.f32 %v3699, %v3699
    %v3798 = vmul.f32 %v3704, %v3704
    %v3799 = vmul.f32 %v3707, %v3707
    %v3800 = vmul.f32 %v3712, %v3712
    %v3801 = vmul.f32 %v3715, %v3715
    %v3802 = vmul.f32 %v3720, %v3720
    %v3803 = vmul.f32 %v3723, %v3723
    %v3804 = vmul.f32 %v3728, %v3728
    %v3805 = vmul.f32 %v3731, %v3731
    %v3806 = vadd.f32 %v3774, %v3775
    %v3807 = vadd.f32 %v3806, %v3776
    %v3808 = vadd.f32 %v3807, %v3777
    %v3809 = vadd.f32 %v3808, %v3778
    %v3810 = vadd.f32 %v3809, %v3779
    %v3811 = vadd.f32 %v3810, %v3780
    %v3812 = vadd.f32 %v3811, %v3781
    %v3813 = vadd.f32 %v3812, %v3782
    %v3814 = vadd.f32 %v3813, %v3783
    %v3815 = vadd.f32 %v3814, %v3784
    %v3816 = vadd.f32 %v3815, %v3785
    %v3817 = vadd.f32 %v3816, %v3786
    %v3818 = vadd.f32 %v3817, %v3787
    %v3819 = vadd.f32 %v3818, %v3788
    %v3820 = vadd.f32 %v3819, %v3789
    %v3821 = vadd.f32 %v3820, %v3790
    %v3822 = vadd.f32 %v3821, %v3791
    %v3823 = vadd.f32 %v3822, %v3792
    %v3824 = vadd.f32 %v3823, %v3793
    %v3825 = vadd.f32 %v3824, %v3794
    %v3826 = vadd.f32 %v3825, %v3795
    %v3827 = vadd.f32 %v3826, %v3796
    %v3828 = vadd.f32 %v3827, %v3797
    %v3829 = vadd.f32 %v3828, %v3798
    %v3830 = vadd.f32 %v3829, %v3799
    %v3831 = vadd.f32 %v3830, %v3800
    %v3832 = vadd.f32 %v3831, %v3801
    %v3833 = vadd.f32 %v3832, %v3802
    %v3834 = vadd.f32 %v3833, %v3803
    %v3835 = vadd.f32 %v3834, %v3804
    %v3836 = vadd.f32 %v3835, %v3805
    %v3837 = vrot.slane %v3836, 4
    %v3838 = vadd.f32 %v3836, %v3837
    %v3839 = vrot.slane %v3838, 2
    %v3840 = vadd.f32 %v3838, %v3839
    %v3841 = vrot.slane %v3840, 1
    %v3842 = vadd.f32 %v3840, %v3841
    %v3843 = vmul.f32 %v3773, 0.00390625
    %v3844 = vmul.f32 %v3842, 0.00390625
    %v3845 = vmul.f32 %v3843, %v3843
    %v3846 = vsub.f32 %v3844, %v3845
    %v3847 = vmax.f32 %v3846, 0.0
    %v3848 = vadd.f32 %v3847, 1e-05
    %v3849 = vrsqrt.pop %v3848
    %v3850 = vmul.f32 %v3735, %v3849
    %v3851 = vmul.f32 %v3843, %v3850
    %v3852 = vsub.f32 %v3736, %v3851
    %v3853 = vlaneseq
    %v3854 = vshrl.u32 %v3853, 7
    %v3855 = vsub.s32 0, %v3854
    %v3856 = vrot.slane %v3850, %v3855
    %v3857 = vmul.f32 %v3608, %v3856
    %v3858 = vmul.f32 %v3611, %v3856
    %v3859 = vmul.f32 %v3616, %v3856
    %v3860 = vmul.f32 %v3619, %v3856
    %v3861 = vmul.f32 %v3624, %v3856
    %v3862 = vmul.f32 %v3627, %v3856
    %v3863 = vmul.f32 %v3632, %v3856
    %v3864 = vmul.f32 %v3635, %v3856
    %v3865 = vmul.f32 %v3640, %v3856
    %v3866 = vmul.f32 %v3643, %v3856
    %v3867 = vmul.f32 %v3648, %v3856
    %v3868 = vmul.f32 %v3651, %v3856
    %v3869 = vmul.f32 %v3656, %v3856
    %v3870 = vmul.f32 %v3659, %v3856
    %v3871 = vmul.f32 %v3664, %v3856
    %v3872 = vmul.f32 %v3667, %v3856
    %v3873 = vmul.f32 %v3672, %v3856
    %v3874 = vmul.f32 %v3675, %v3856
    %v3875 = vmul.f32 %v3680, %v3856
    %v3876 = vmul.f32 %v3683, %v3856
    %v3877 = vmul.f32 %v3688, %v3856
    %v3878 = vmul.f32 %v3691, %v3856
    %v3879 = vmul.f32 %v3696, %v3856
    %v3880 = vmul.f32 %v3699, %v3856
    %v3881 = vmul.f32 %v3704, %v3856
    %v3882 = vmul.f32 %v3707, %v3856
    %v3883 = vmul.f32 %v3712, %v3856
    %v3884 = vmul.f32 %v3715, %v3856
    %v3885 = vmul.f32 %v3720, %v3856
    %v3886 = vmul.f32 %v3723, %v3856
    %v3887 = vmul.f32 %v3728, %v3856
    %v3888 = vmul.f32 %v3731, %v3856
    %v3889 = vlaneseq
    %v3890 = vshrl.u32 %v3889, 7
    %v3891 = vsub.s32 0, %v3890
    %v3892 = vrot.slane %v3852, %v3891
    %v3893 = vadd.f32 %v3857, %v3892
    %v3894 = vadd.f32 %v3858, %v3892
    %v3895 = vadd.f32 %v3859, %v3892
    %v3896 = vadd.f32 %v3860, %v3892
    %v3897 = vadd.f32 %v3861, %v3892
    %v3898 = vadd.f32 %v3862, %v3892
    %v3899 = vadd.f32 %v3863, %v3892
    %v3900 = vadd.f32 %v3864, %v3892
    %v3901 = vadd.f32 %v3865, %v3892
    %v3902 = vadd.f32 %v3866, %v3892
    %v3903 = vadd.f32 %v3867, %v3892
    %v3904 = vadd.f32 %v3868, %v3892
    %v3905 = vadd.f32 %v3869, %v3892
    %v3906 = vadd.f32 %v3870, %v3892
    %v3907 = vadd.f32 %v3871, %v3892
    %v3908 = vadd.f32 %v3872, %v3892
    %v3909 = vadd.f32 %v3873, %v3892
    %v3910 = vadd.f32 %v3874, %v3892
    %v3911 = vadd.f32 %v3875, %v3892
    %v3912 = vadd.f32 %v3876, %v3892
    %v3913 = vadd.f32 %v3877, %v3892
    %v3914 = vadd.f32 %v3878, %v3892
    %v3915 = vadd.f32 %v3879, %v3892
    %v3916 = vadd.f32 %v3880, %v3892
    %v3917 = vadd.f32 %v3881, %v3892
    %v3918 = vadd.f32 %v3882, %v3892
    %v3919 = vadd.f32 %v3883, %v3892
    %v3920 = vadd.f32 %v3884, %v3892
    %v3921 = vadd.f32 %v3885, %v3892
    %v3922 = vadd.f32 %v3886, %v3892
    %v3923 = vadd.f32 %v3887, %v3892
    %v3924 = vadd.f32 %v3888, %v3892
    %v3925 = vmax.f32 %v3893, 0.0
    %v3926 = vmax.f32 %v3894, 0.0
    %v3927 = vmax.f32 %v3895, 0.0
    %v3928 = vmax.f32 %v3896, 0.0
    %v3929 = vmax.f32 %v3897, 0.0
    %v3930 = vmax.f32 %v3898, 0.0
    %v3931 = vmax.f32 %v3899, 0.0
    %v3932 = vmax.f32 %v3900, 0.0
    %v3933 = vmax.f32 %v3901, 0.0
    %v3934 = vmax.f32 %v3902, 0.0
    %v3935 = vmax.f32 %v3903, 0.0
    %v3936 = vmax.f32 %v3904, 0.0
    %v3937 = vmax.f32 %v3905, 0.0
    %v3938 = vmax.f32 %v3906, 0.0
    %v3939 = vmax.f32 %v3907, 0.0
    %v3940 = vmax.f32 %v3908, 0.0
    %v3941 = vmax.f32 %v3909, 0.0
    %v3942 = vmax.f32 %v3910, 0.0
    %v3943 = vmax.f32 %v3911, 0.0
    %v3944 = vmax.f32 %v3912, 0.0
    %v3945 = vmax.f32 %v3913, 0.0
    %v3946 = vmax.f32 %v3914, 0.0
    %v3947 = vmax.f32 %v3915, 0.0
    %v3948 = vmax.f32 %v3916, 0.0
    %v3949 = vmax.f32 %v3917, 0.0
    %v3950 = vmax.f32 %v3918, 0.0
    %v3951 = vmax.f32 %v3919, 0.0
    %v3952 = vmax.f32 %v3920, 0.0
    %v3953 = vmax.f32 %v3921, 0.0
    %v3954 = vmax.f32 %v3922, 0.0
    %v3955 = vmax.f32 %v3923, 0.0
    %v3956 = vmax.f32 %v3924, 0.0
    %v3957 = vpack.c.bf16 %v3926, %v3925
    %v3958 = vpack.c.bf16 %v3928, %v3927
    %v3959 = vpack.c.bf16 %v3930, %v3929
    %v3960 = vpack.c.bf16 %v3932, %v3931
    %v3961 = vpack.c.bf16 %v3934, %v3933
    %v3962 = vpack.c.bf16 %v3936, %v3935
    %v3963 = vpack.c.bf16 %v3938, %v3937
    %v3964 = vpack.c.bf16 %v3940, %v3939
    %v3965 = vpack.c.bf16 %v3942, %v3941
    %v3966 = vpack.c.bf16 %v3944, %v3943
    %v3967 = vpack.c.bf16 %v3946, %v3945
    %v3968 = vpack.c.bf16 %v3948, %v3947
    %v3969 = vpack.c.bf16 %v3950, %v3949
    %v3970 = vpack.c.bf16 %v3952, %v3951
    %v3971 = vpack.c.bf16 %v3954, %v3953
    %v3972 = vpack.c.bf16 %v3956, %v3955
    %s3973 = scalar_lea.vmem [#allocation7], 256
    %v3974 = vld [vmem:[%s3973] sm:$0xf]
    %v3975 = vld [vmem:[%s3973 + $0x4] sm:$0xf]
    %v3976 = vld [vmem:[%s3973 + $0x8] sm:$0xf]
    %v3977 = vld [vmem:[%s3973 + $0xc] sm:$0xf]
    %v3978 = vld [vmem:[%s3973 + $0x10] sm:$0xf]
    %v3979 = vld [vmem:[%s3973 + $0x14] sm:$0xf]
    %v3980 = vld [vmem:[%s3973 + $0x18] sm:$0xf]
    %v3981 = vld [vmem:[%s3973 + $0x1c] sm:$0xf]
    %v3982 = vld [vmem:[%s3973 + $0x20] sm:$0xf]
    %v3983 = vld [vmem:[%s3973 + $0x24] sm:$0xf]
    %v3984 = vld [vmem:[%s3973 + $0x28] sm:$0xf]
    %v3985 = vld [vmem:[%s3973 + $0x2c] sm:$0xf]
    %v3986 = vld [vmem:[%s3973 + $0x30] sm:$0xf]
    %v3987 = vld [vmem:[%s3973 + $0x34] sm:$0xf]
    %v3988 = vld [vmem:[%s3973 + $0x38] sm:$0xf]
    %v3989 = vld [vmem:[%s3973 + $0x3c] sm:$0xf]
    %v4006 = vunpack.c.l.b16 %v3974
    %v4007 = vunpack.c.l.b16 %v3975
    %v4008 = vunpack.c.l.b16 %v3976
    %v4009 = vunpack.c.l.b16 %v3977
    %v4010 = vunpack.c.l.b16 %v3978
    %v4011 = vunpack.c.l.b16 %v3979
    %v4012 = vunpack.c.l.b16 %v3980
    %v4013 = vunpack.c.l.b16 %v3981
    %v4014 = vunpack.c.l.b16 %v3982
    %v4015 = vunpack.c.l.b16 %v3983
    %v4016 = vunpack.c.l.b16 %v3984
    %v4017 = vunpack.c.l.b16 %v3985
    %v4018 = vunpack.c.l.b16 %v3986
    %v4019 = vunpack.c.l.b16 %v3987
    %v4020 = vunpack.c.l.b16 %v3988
    %v4021 = vunpack.c.l.b16 %v3989
    %v4022 = vpack.c.b16 %v4007, %v4006
    %v4023 = vpack.c.b16 %v4009, %v4008
    %v4024 = vpack.c.b16 %v4011, %v4010
    %v4025 = vpack.c.b16 %v4013, %v4012
    %v4026 = vpack.c.b16 %v4015, %v4014
    %v4027 = vpack.c.b16 %v4017, %v4016
    %v4028 = vpack.c.b16 %v4019, %v4018
    %v4029 = vpack.c.b16 %v4021, %v4020
    %4038 = vmatprep.subr.bf16.mxu0 0
    %4039 = vmatpush1.bf16.msra.mxu0 %v4022
    %4040 = vmatprep.subr.bf16.mxu0 0
    %4041 = vmatpush1.bf16.msra.mxu0 %v4023
    %4042 = vmatprep.subr.bf16.mxu0 0
    %4043 = vmatpush1.bf16.msra.mxu0 %v4024
    %4044 = vmatprep.subr.bf16.mxu0 0
    %4045 = vmatpush1.bf16.msra.mxu0 %v4025
    %4046 = vmatprep.subr.bf16.mxu0 0
    %4047 = vmatpush1.bf16.msra.mxu0 %v4026
    %4048 = vmatprep.subr.bf16.mxu0 0
    %4049 = vmatpush1.bf16.msra.mxu0 %v4027
    %4050 = vmatprep.subr.bf16.mxu0 0
    %4051 = vmatpush1.bf16.msra.mxu0 %v4028
    %4052 = vmatprep.subr.bf16.mxu0 0
    %4053 = vmatpush1.bf16.msra.mxu0 %v4029
    %4054 = vmatprep.subr.bf16.mxu0 0
    %4055 = vmatpush1.bf16.msra.mxu0 0
    %4056 = vmatprep.subr.bf16.mxu0 0
    %4057 = vmatpush1.bf16.msra.mxu0 0
    %4058 = vmatprep.subr.bf16.mxu0 0
    %4059 = vmatpush1.bf16.msra.mxu0 0
    %4060 = vmatprep.subr.bf16.mxu0 0
    %4061 = vmatpush1.bf16.msra.mxu0 0
    %4062 = vmatprep.subr.bf16.mxu0 0
    %4063 = vmatpush1.bf16.msra.mxu0 0
    %4064 = vmatprep.subr.bf16.mxu0 0
    %4065 = vmatpush1.bf16.msra.mxu0 0
    %4066 = vmatprep.subr.bf16.mxu0 0
    %4067 = vmatpush1.bf16.msra.mxu0 0
    %4068 = vmatprep.subr.bf16.mxu0 0
    %4069 = vmatpush1.bf16.msra.mxu0 0
    %4070 = vmatprep.mubr.bf16.mxu0 0
    %4071 = vmatmul.mubr.bf16.gmra.mrb[0].mxu0 %v3957
    %v4072 = vpop.f32.mrb[0].mxu0
    %v4073 = vadd.f32 0.0, %v4072
    %v4074 = vpop.f32.mrb[0].mxu0
    %v4075 = vpop.f32.mrb[0].mxu0
    %v4076 = vadd.f32 0.0, %v4075
    %v4077 = vpop.f32.mrb[0].mxu0
    %4078 = vmatprep.mubr.bf16.mxu0 0
    %4079 = vmatmul.mubr.bf16.gmra.mrb[0].mxu0 %v3958
    %v4080 = vpop.f32.mrb[0].mxu0
    %v4081 = vadd.f32 0.0, %v4080
    %v4082 = vpop.f32.mrb[0].mxu0
    %v4083 = vpop.f32.mrb[0].mxu0
    %v4084 = vadd.f32 0.0, %v4083
    %v4085 = vpop.f32.mrb[0].mxu0
    %4086 = vmatprep.mubr.bf16.mxu0 0
    %4087 = vmatmul.mubr.bf16.gmra.mrb[0].mxu0 %v3959
    %v4088 = vpop.f32.mrb[0].mxu0
    %v4089 = vadd.f32 0.0, %v4088
    %v4090 = vpop.f32.mrb[0].mxu0
    %v4091 = vpop.f32.mrb[0].mxu0
    %v4092 = vadd.f32 0.0, %v4091
    %v4093 = vpop.f32.mrb[0].mxu0
    %4094 = vmatprep.mubr.bf16.mxu0 0
    %4095 = vmatmul.mubr.bf16.gmra.mrb[0].mxu0 %v3960
    %v4096 = vpop.f32.mrb[0].mxu0
    %v4097 = vadd.f32 0.0, %v4096
    %v4098 = vpop.f32.mrb[0].mxu0
    %v4099 = vpop.f32.mrb[0].mxu0
    %v4100 = vadd.f32 0.0, %v4099
    %v4101 = vpop.f32.mrb[0].mxu0
    %4102 = vmatprep.mubr.bf16.mxu0 0
    %4103 = vmatmul.mubr.bf16.gmra.mrb[0].mxu0 %v3961
    %v4104 = vpop.f32.mrb[0].mxu0
    %v4105 = vadd.f32 0.0, %v4104
    %v4106 = vpop.f32.mrb[0].mxu0
    %v4107 = vpop.f32.mrb[0].mxu0
    %v4108 = vadd.f32 0.0, %v4107
    %v4109 = vpop.f32.mrb[0].mxu0
    %4110 = vmatprep.mubr.bf16.mxu0 0
    %4111 = vmatmul.mubr.bf16.gmra.mrb[0].mxu0 %v3962
    %v4112 = vpop.f32.mrb[0].mxu0
    %v4113 = vadd.f32 0.0, %v4112
    %v4114 = vpop.f32.mrb[0].mxu0
    %v4115 = vpop.f32.mrb[0].mxu0
    %v4116 = vadd.f32 0.0, %v4115
    %v4117 = vpop.f32.mrb[0].mxu0
    %4118 = vmatprep.mubr.bf16.mxu0 0
    %4119 = vmatmul.mubr.bf16.gmra.mrb[0].mxu0 %v3963
    %v4120 = vpop.f32.mrb[0].mxu0
    %v4121 = vadd.f32 0.0, %v4120
    %v4122 = vpop.f32.mrb[0].mxu0
    %v4123 = vpop.f32.mrb[0].mxu0
    %v4124 = vadd.f32 0.0, %v4123
    %v4125 = vpop.f32.mrb[0].mxu0
    %4126 = vmatprep.mubr.bf16.mxu0 0
    %4127 = vmatmul.mubr.bf16.gmra.mrb[0].mxu0 %v3964
    %v4128 = vpop.f32.mrb[0].mxu0
    %v4129 = vadd.f32 0.0, %v4128
    %v4130 = vpop.f32.mrb[0].mxu0
    %v4131 = vpop.f32.mrb[0].mxu0
    %v4132 = vadd.f32 0.0, %v4131
    %v4133 = vpop.f32.mrb[0].mxu0
    %4134 = vmatprep.mubr.bf16.mxu0 0
    %4135 = vmatmul.mubr.bf16.gmra.mrb[0].mxu0 %v3965
    %v4136 = vpop.f32.mrb[0].mxu0
    %v4137 = vadd.f32 0.0, %v4136
    %v4138 = vpop.f32.mrb[0].mxu0
    %v4139 = vpop.f32.mrb[0].mxu0
    %v4140 = vadd.f32 0.0, %v4139
    %v4141 = vpop.f32.mrb[0].mxu0
    %4142 = vmatprep.mubr.bf16.mxu0 0
    %4143 = vmatmul.mubr.bf16.gmra.mrb[0].mxu0 %v3966
    %v4144 = vpop.f32.mrb[0].mxu0
    %v4145 = vadd.f32 0.0, %v4144
    %v4146 = vpop.f32.mrb[0].mxu0
    %v4147 = vpop.f32.mrb[0].mxu0
    %v4148 = vadd.f32 0.0, %v4147
    %v4149 = vpop.f32.mrb[0].mxu0
    %4150 = vmatprep.mubr.bf16.mxu0 0
    %4151 = vmatmul.mubr.bf16.gmra.mrb[0].mxu0 %v3967
    %v4152 = vpop.f32.mrb[0].mxu0
    %v4153 = vadd.f32 0.0, %v4152
    %v4154 = vpop.f32.mrb[0].mxu0
    %v4155 = vpop.f32.mrb[0].mxu0
    %v4156 = vadd.f32 0.0, %v4155
    %v4157 = vpop.f32.mrb[0].mxu0
    %4158 = vmatprep.mubr.bf16.mxu0 0
    %4159 = vmatmul.mubr.bf16.gmra.mrb[0].mxu0 %v3968
    %v4160 = vpop.f32.mrb[0].mxu0
    %v4161 = vadd.f32 0.0, %v4160
    %v4162 = vpop.f32.mrb[0].mxu0
    %v4163 = vpop.f32.mrb[0].mxu0
    %v4164 = vadd.f32 0.0, %v4163
    %v4165 = vpop.f32.mrb[0].mxu0
    %4166 = vmatprep.mubr.bf16.mxu0 0
    %4167 = vmatmul.mubr.bf16.gmra.mrb[0].mxu0 %v3969
    %v4168 = vpop.f32.mrb[0].mxu0
    %v4169 = vadd.f32 0.0, %v4168
    %v4170 = vpop.f32.mrb[0].mxu0
    %v4171 = vpop.f32.mrb[0].mxu0
    %v4172 = vadd.f32 0.0, %v4171
    %v4173 = vpop.f32.mrb[0].mxu0
    %4174 = vmatprep.mubr.bf16.mxu0 0
    %4175 = vmatmul.mubr.bf16.gmra.mrb[0].mxu0 %v3970
    %v4176 = vpop.f32.mrb[0].mxu0
    %v4177 = vadd.f32 0.0, %v4176
    %v4178 = vpop.f32.mrb[0].mxu0
    %v4179 = vpop.f32.mrb[0].mxu0
    %v4180 = vadd.f32 0.0, %v4179
    %v4181 = vpop.f32.mrb[0].mxu0
    %4182 = vmatprep.mubr.bf16.mxu0 0
    %4183 = vmatmul.mubr.bf16.gmra.mrb[0].mxu0 %v3971
    %v4184 = vpop.f32.mrb[0].mxu0
    %v4185 = vadd.f32 0.0, %v4184
    %v4186 = vpop.f32.mrb[0].mxu0
    %v4187 = vpop.f32.mrb[0].mxu0
    %v4188 = vadd.f32 0.0, %v4187
    %v4189 = vpop.f32.mrb[0].mxu0
    %4190 = vmatprep.mubr.bf16.mxu0 0
    %4191 = vmatmul.mubr.bf16.gmra.mrb[0].mxu0 %v3972
    %v4192 = vpop.f32.mrb[0].mxu0
    %v4193 = vadd.f32 0.0, %v4192
    %v4194 = vpop.f32.mrb[0].mxu0
    %v4195 = vpop.f32.mrb[0].mxu0
    %v4196 = vadd.f32 0.0, %v4195
    %v4197 = vpop.f32.mrb[0].mxu0
    %4198 = vdwg.mxu0
    %s4199 = scalar_lea.vmem %s4, 10
    %v4200 = vld [vmem:[%s4199] sm:$0x1]
    %v4201 = vld [vmem:[%s4199 + $0x1] sm:$0x1]
    %v4202 = vadd.f32 %v4073, %v4076
    %v4203 = vadd.f32 %v4202, %v4081
    %v4204 = vadd.f32 %v4203, %v4084
    %v4205 = vadd.f32 %v4204, %v4089
    %v4206 = vadd.f32 %v4205, %v4092
    %v4207 = vadd.f32 %v4206, %v4097
    %v4208 = vadd.f32 %v4207, %v4100
    %v4209 = vadd.f32 %v4208, %v4105
    %v4210 = vadd.f32 %v4209, %v4108
    %v4211 = vadd.f32 %v4210, %v4113
    %v4212 = vadd.f32 %v4211, %v4116
    %v4213 = vadd.f32 %v4212, %v4121
    %v4214 = vadd.f32 %v4213, %v4124
    %v4215 = vadd.f32 %v4214, %v4129
    %v4216 = vadd.f32 %v4215, %v4132
    %v4217 = vadd.f32 %v4216, %v4137
    %v4218 = vadd.f32 %v4217, %v4140
    %v4219 = vadd.f32 %v4218, %v4145
    %v4220 = vadd.f32 %v4219, %v4148
    %v4221 = vadd.f32 %v4220, %v4153
    %v4222 = vadd.f32 %v4221, %v4156
    %v4223 = vadd.f32 %v4222, %v4161
    %v4224 = vadd.f32 %v4223, %v4164
    %v4225 = vadd.f32 %v4224, %v4169
    %v4226 = vadd.f32 %v4225, %v4172
    %v4227 = vadd.f32 %v4226, %v4177
    %v4228 = vadd.f32 %v4227, %v4180
    %v4229 = vadd.f32 %v4228, %v4185
    %v4230 = vadd.f32 %v4229, %v4188
    %v4231 = vadd.f32 %v4230, %v4193
    %v4232 = vadd.f32 %v4231, %v4196
    %v4233 = vrot.slane %v4232, 4
    %v4234 = vadd.f32 %v4232, %v4233
    %v4235 = vrot.slane %v4234, 2
    %v4236 = vadd.f32 %v4234, %v4235
    %v4237 = vrot.slane %v4236, 1
    %v4238 = vadd.f32 %v4236, %v4237
    %v4239 = vmul.f32 %v4073, %v4073
    %v4240 = vmul.f32 %v4076, %v4076
    %v4241 = vmul.f32 %v4081, %v4081
    %v4242 = vmul.f32 %v4084, %v4084
    %v4243 = vmul.f32 %v4089, %v4089
    %v4244 = vmul.f32 %v4092, %v4092
    %v4245 = vmul.f32 %v4097, %v4097
    %v4246 = vmul.f32 %v4100, %v4100
    %v4247 = vmul.f32 %v4105, %v4105
    %v4248 = vmul.f32 %v4108, %v4108
    %v4249 = vmul.f32 %v4113, %v4113
    %v4250 = vmul.f32 %v4116, %v4116
    %v4251 = vmul.f32 %v4121, %v4121
    %v4252 = vmul.f32 %v4124, %v4124
    %v4253 = vmul.f32 %v4129, %v4129
    %v4254 = vmul.f32 %v4132, %v4132
    %v4255 = vmul.f32 %v4137, %v4137
    %v4256 = vmul.f32 %v4140, %v4140
    %v4257 = vmul.f32 %v4145, %v4145
    %v4258 = vmul.f32 %v4148, %v4148
    %v4259 = vmul.f32 %v4153, %v4153
    %v4260 = vmul.f32 %v4156, %v4156
    %v4261 = vmul.f32 %v4161, %v4161
    %v4262 = vmul.f32 %v4164, %v4164
    %v4263 = vmul.f32 %v4169, %v4169
    %v4264 = vmul.f32 %v4172, %v4172
    %v4265 = vmul.f32 %v4177, %v4177
    %v4266 = vmul.f32 %v4180, %v4180
    %v4267 = vmul.f32 %v4185, %v4185
    %v4268 = vmul.f32 %v4188, %v4188
    %v4269 = vmul.f32 %v4193, %v4193
    %v4270 = vmul.f32 %v4196, %v4196
    %v4271 = vadd.f32 %v4239, %v4240
    %v4272 = vadd.f32 %v4271, %v4241
    %v4273 = vadd.f32 %v4272, %v4242
    %v4274 = vadd.f32 %v4273, %v4243
    %v4275 = vadd.f32 %v4274, %v4244
    %v4276 = vadd.f32 %v4275, %v4245
    %v4277 = vadd.f32 %v4276, %v4246
    %v4278 = vadd.f32 %v4277, %v4247
    %v4279 = vadd.f32 %v4278, %v4248
    %v4280 = vadd.f32 %v4279, %v4249
    %v4281 = vadd.f32 %v4280, %v4250
    %v4282 = vadd.f32 %v4281, %v4251
    %v4283 = vadd.f32 %v4282, %v4252
    %v4284 = vadd.f32 %v4283, %v4253
    %v4285 = vadd.f32 %v4284, %v4254
    %v4286 = vadd.f32 %v4285, %v4255
    %v4287 = vadd.f32 %v4286, %v4256
    %v4288 = vadd.f32 %v4287, %v4257
    %v4289 = vadd.f32 %v4288, %v4258
    %v4290 = vadd.f32 %v4289, %v4259
    %v4291 = vadd.f32 %v4290, %v4260
    %v4292 = vadd.f32 %v4291, %v4261
    %v4293 = vadd.f32 %v4292, %v4262
    %v4294 = vadd.f32 %v4293, %v4263
    %v4295 = vadd.f32 %v4294, %v4264
    %v4296 = vadd.f32 %v4295, %v4265
    %v4297 = vadd.f32 %v4296, %v4266
    %v4298 = vadd.f32 %v4297, %v4267
    %v4299 = vadd.f32 %v4298, %v4268
    %v4300 = vadd.f32 %v4299, %v4269
    %v4301 = vadd.f32 %v4300, %v4270
    %v4302 = vrot.slane %v4301, 4
    %v4303 = vadd.f32 %v4301, %v4302
    %v4304 = vrot.slane %v4303, 2
    %v4305 = vadd.f32 %v4303, %v4304
    %v4306 = vrot.slane %v4305, 1
    %v4307 = vadd.f32 %v4305, %v4306
    %v4308 = vmul.f32 %v4238, 0.00390625
    %v4309 = vmul.f32 %v4307, 0.00390625
    %v4310 = vmul.f32 %v4308, %v4308
    %v4311 = vsub.f32 %v4309, %v4310
    %v4312 = vmax.f32 %v4311, 0.0
    %v4313 = vadd.f32 %v4312, 1e-05
    %v4314 = vrsqrt.pop %v4313
    %v4315 = vmul.f32 %v4200, %v4314
    %v4316 = vmul.f32 %v4308, %v4315
    %v4317 = vsub.f32 %v4201, %v4316
    %v4318 = vlaneseq
    %v4319 = vshrl.u32 %v4318, 7
    %v4320 = vsub.s32 0, %v4319
    %v4321 = vrot.slane %v4315, %v4320
    %v4322 = vmul.f32 %v4073, %v4321
    %v4323 = vmul.f32 %v4076, %v4321
    %v4324 = vmul.f32 %v4081, %v4321
    %v4325 = vmul.f32 %v4084, %v4321
    %v4326 = vmul.f32 %v4089, %v4321
    %v4327 = vmul.f32 %v4092, %v4321
    %v4328 = vmul.f32 %v4097, %v4321
    %v4329 = vmul.f32 %v4100, %v4321
    %v4330 = vmul.f32 %v4105, %v4321
    %v4331 = vmul.f32 %v4108, %v4321
    %v4332 = vmul.f32 %v4113, %v4321
    %v4333 = vmul.f32 %v4116, %v4321
    %v4334 = vmul.f32 %v4121, %v4321
    %v4335 = vmul.f32 %v4124, %v4321
    %v4336 = vmul.f32 %v4129, %v4321
    %v4337 = vmul.f32 %v4132, %v4321
    %v4338 = vmul.f32 %v4137, %v4321
    %v4339 = vmul.f32 %v4140, %v4321
    %v4340 = vmul.f32 %v4145, %v4321
    %v4341 = vmul.f32 %v4148, %v4321
    %v4342 = vmul.f32 %v4153, %v4321
    %v4343 = vmul.f32 %v4156, %v4321
    %v4344 = vmul.f32 %v4161, %v4321
    %v4345 = vmul.f32 %v4164, %v4321
    %v4346 = vmul.f32 %v4169, %v4321
    %v4347 = vmul.f32 %v4172, %v4321
    %v4348 = vmul.f32 %v4177, %v4321
    %v4349 = vmul.f32 %v4180, %v4321
    %v4350 = vmul.f32 %v4185, %v4321
    %v4351 = vmul.f32 %v4188, %v4321
    %v4352 = vmul.f32 %v4193, %v4321
    %v4353 = vmul.f32 %v4196, %v4321
    %v4354 = vlaneseq
    %v4355 = vshrl.u32 %v4354, 7
    %v4356 = vsub.s32 0, %v4355
    %v4357 = vrot.slane %v4317, %v4356
    %v4358 = vadd.f32 %v4322, %v4357
    %v4359 = vadd.f32 %v4323, %v4357
    %v4360 = vadd.f32 %v4324, %v4357
    %v4361 = vadd.f32 %v4325, %v4357
    %v4362 = vadd.f32 %v4326, %v4357
    %v4363 = vadd.f32 %v4327, %v4357
    %v4364 = vadd.f32 %v4328, %v4357
    %v4365 = vadd.f32 %v4329, %v4357
    %v4366 = vadd.f32 %v4330, %v4357
    %v4367 = vadd.f32 %v4331, %v4357
    %v4368 = vadd.f32 %v4332, %v4357
    %v4369 = vadd.f32 %v4333, %v4357
    %v4370 = vadd.f32 %v4334, %v4357
    %v4371 = vadd.f32 %v4335, %v4357
    %v4372 = vadd.f32 %v4336, %v4357
    %v4373 = vadd.f32 %v4337, %v4357
    %v4374 = vadd.f32 %v4338, %v4357
    %v4375 = vadd.f32 %v4339, %v4357
    %v4376 = vadd.f32 %v4340, %v4357
    %v4377 = vadd.f32 %v4341, %v4357
    %v4378 = vadd.f32 %v4342, %v4357
    %v4379 = vadd.f32 %v4343, %v4357
    %v4380 = vadd.f32 %v4344, %v4357
    %v4381 = vadd.f32 %v4345, %v4357
    %v4382 = vadd.f32 %v4346, %v4357
    %v4383 = vadd.f32 %v4347, %v4357
    %v4384 = vadd.f32 %v4348, %v4357
    %v4385 = vadd.f32 %v4349, %v4357
    %v4386 = vadd.f32 %v4350, %v4357
    %v4387 = vadd.f32 %v4351, %v4357
    %v4388 = vadd.f32 %v4352, %v4357
    %v4389 = vadd.f32 %v4353, %v4357
    %v4390 = vmax.f32 %v4358, 0.0
    %v4391 = vmax.f32 %v4359, 0.0
    %v4392 = vmax.f32 %v4360, 0.0
    %v4393 = vmax.f32 %v4361, 0.0
    %v4394 = vmax.f32 %v4362, 0.0
    %v4395 = vmax.f32 %v4363, 0.0
    %v4396 = vmax.f32 %v4364, 0.0
    %v4397 = vmax.f32 %v4365, 0.0
    %v4398 = vmax.f32 %v4366, 0.0
    %v4399 = vmax.f32 %v4367, 0.0
    %v4400 = vmax.f32 %v4368, 0.0
    %v4401 = vmax.f32 %v4369, 0.0
    %v4402 = vmax.f32 %v4370, 0.0
    %v4403 = vmax.f32 %v4371, 0.0
    %v4404 = vmax.f32 %v4372, 0.0
    %v4405 = vmax.f32 %v4373, 0.0
    %v4406 = vmax.f32 %v4374, 0.0
    %v4407 = vmax.f32 %v4375, 0.0
    %v4408 = vmax.f32 %v4376, 0.0
    %v4409 = vmax.f32 %v4377, 0.0
    %v4410 = vmax.f32 %v4378, 0.0
    %v4411 = vmax.f32 %v4379, 0.0
    %v4412 = vmax.f32 %v4380, 0.0
    %v4413 = vmax.f32 %v4381, 0.0
    %v4414 = vmax.f32 %v4382, 0.0
    %v4415 = vmax.f32 %v4383, 0.0
    %v4416 = vmax.f32 %v4384, 0.0
    %v4417 = vmax.f32 %v4385, 0.0
    %v4418 = vmax.f32 %v4386, 0.0
    %v4419 = vmax.f32 %v4387, 0.0
    %v4420 = vmax.f32 %v4388, 0.0
    %v4421 = vmax.f32 %v4389, 0.0
    %v4422 = vpack.c.bf16 %v4391, %v4390
    %v4423 = vpack.c.bf16 %v4393, %v4392
    %v4424 = vpack.c.bf16 %v4395, %v4394
    %v4425 = vpack.c.bf16 %v4397, %v4396
    %v4426 = vpack.c.bf16 %v4399, %v4398
    %v4427 = vpack.c.bf16 %v4401, %v4400
    %v4428 = vpack.c.bf16 %v4403, %v4402
    %v4429 = vpack.c.bf16 %v4405, %v4404
    %v4430 = vpack.c.bf16 %v4407, %v4406
    %v4431 = vpack.c.bf16 %v4409, %v4408
    %v4432 = vpack.c.bf16 %v4411, %v4410
    %v4433 = vpack.c.bf16 %v4413, %v4412
    %v4434 = vpack.c.bf16 %v4415, %v4414
    %v4435 = vpack.c.bf16 %v4417, %v4416
    %v4436 = vpack.c.bf16 %v4419, %v4418
    %v4437 = vpack.c.bf16 %v4421, %v4420
    %s4438 = scalar_lea.vmem [#allocation7], 320
    %v4439 = vld [vmem:[%s4438] sm:$0xf]
    %v4440 = vld [vmem:[%s4438 + $0x4] sm:$0xf]
    %v4441 = vld [vmem:[%s4438 + $0x8] sm:$0xf]
    %v4442 = vld [vmem:[%s4438 + $0xc] sm:$0xf]
    %v4443 = vld [vmem:[%s4438 + $0x10] sm:$0xf]
    %v4444 = vld [vmem:[%s4438 + $0x14] sm:$0xf]
    %v4445 = vld [vmem:[%s4438 + $0x18] sm:$0xf]
    %v4446 = vld [vmem:[%s4438 + $0x1c] sm:$0xf]
    %v4447 = vld [vmem:[%s4438 + $0x20] sm:$0xf]
    %v4448 = vld [vmem:[%s4438 + $0x24] sm:$0xf]
    %v4449 = vld [vmem:[%s4438 + $0x28] sm:$0xf]
    %v4450 = vld [vmem:[%s4438 + $0x2c] sm:$0xf]
    %v4451 = vld [vmem:[%s4438 + $0x30] sm:$0xf]
    %v4452 = vld [vmem:[%s4438 + $0x34] sm:$0xf]
    %v4453 = vld [vmem:[%s4438 + $0x38] sm:$0xf]
    %v4454 = vld [vmem:[%s4438 + $0x3c] sm:$0xf]
    %v4471 = vunpack.c.l.b16 %v4439
    %v4472 = vunpack.c.l.b16 %v4440
    %v4473 = vunpack.c.l.b16 %v4441
    %v4474 = vunpack.c.l.b16 %v4442
    %v4475 = vunpack.c.l.b16 %v4443
    %v4476 = vunpack.c.l.b16 %v4444
    %v4477 = vunpack.c.l.b16 %v4445
    %v4478 = vunpack.c.l.b16 %v4446
    %v4479 = vunpack.c.l.b16 %v4447
    %v4480 = vunpack.c.l.b16 %v4448
    %v4481 = vunpack.c.l.b16 %v4449
    %v4482 = vunpack.c.l.b16 %v4450
    %v4483 = vunpack.c.l.b16 %v4451
    %v4484 = vunpack.c.l.b16 %v4452
    %v4485 = vunpack.c.l.b16 %v4453
    %v4486 = vunpack.c.l.b16 %v4454
    %v4487 = vpack.c.b16 %v4472, %v4471
    %v4488 = vpack.c.b16 %v4474, %v4473
    %v4489 = vpack.c.b16 %v4476, %v4475
    %v4490 = vpack.c.b16 %v4478, %v4477
    %v4491 = vpack.c.b16 %v4480, %v4479
    %v4492 = vpack.c.b16 %v4482, %v4481
    %v4493 = vpack.c.b16 %v4484, %v4483
    %v4494 = vpack.c.b16 %v4486, %v4485
    %4503 = vmatprep.subr.bf16.mxu0 0
    %4504 = vmatpush1.bf16.msra.mxu0 %v4487
    %4505 = vmatprep.subr.bf16.mxu0 0
    %4506 = vmatpush1.bf16.msra.mxu0 %v4488
    %4507 = vmatprep.subr.bf16.mxu0 0
    %4508 = vmatpush1.bf16.msra.mxu0 %v4489
    %4509 = vmatprep.subr.bf16.mxu0 0
    %4510 = vmatpush1.bf16.msra.mxu0 %v4490
    %4511 = vmatprep.subr.bf16.mxu0 0
    %4512 = vmatpush1.bf16.msra.mxu0 %v4491
    %4513 = vmatprep.subr.bf16.mxu0 0
    %4514 = vmatpush1.bf16.msra.mxu0 %v4492
    %4515 = vmatprep.subr.bf16.mxu0 0
    %4516 = vmatpush1.bf16.msra.mxu0 %v4493
    %4517 = vmatprep.subr.bf16.mxu0 0
    %4518 = vmatpush1.bf16.msra.mxu0 %v4494
    %4519 = vmatprep.subr.bf16.mxu0 0
    %4520 = vmatpush1.bf16.msra.mxu0 0
    %4521 = vmatprep.subr.bf16.mxu0 0
    %4522 = vmatpush1.bf16.msra.mxu0 0
    %4523 = vmatprep.subr.bf16.mxu0 0
    %4524 = vmatpush1.bf16.msra.mxu0 0
    %4525 = vmatprep.subr.bf16.mxu0 0
    %4526 = vmatpush1.bf16.msra.mxu0 0
    %4527 = vmatprep.subr.bf16.mxu0 0
    %4528 = vmatpush1.bf16.msra.mxu0 0
    %4529 = vmatprep.subr.bf16.mxu0 0
    %4530 = vmatpush1.bf16.msra.mxu0 0
    %4531 = vmatprep.subr.bf16.mxu0 0
    %4532 = vmatpush1.bf16.msra.mxu0 0
    %4533 = vmatprep.subr.bf16.mxu0 0
    %4534 = vmatpush1.bf16.msra.mxu0 0
    %4535 = vmatprep.mubr.bf16.mxu0 0
    %4536 = vmatmul.mubr.bf16.gmra.mrb[0].mxu0 %v4422
    %v4537 = vpop.f32.mrb[0].mxu0
    %v4538 = vadd.f32 0.0, %v4537
    %v4539 = vpop.f32.mrb[0].mxu0
    %v4540 = vpop.f32.mrb[0].mxu0
    %v4541 = vadd.f32 0.0, %v4540
    %v4542 = vpop.f32.mrb[0].mxu0
    %4543 = vmatprep.mubr.bf16.mxu0 0
    %4544 = vmatmul.mubr.bf16.gmra.mrb[0].mxu0 %v4423
    %v4545 = vpop.f32.mrb[0].mxu0
    %v4546 = vadd.f32 0.0, %v4545
    %v4547 = vpop.f32.mrb[0].mxu0
    %v4548 = vpop.f32.mrb[0].mxu0
    %v4549 = vadd.f32 0.0, %v4548
    %v4550 = vpop.f32.mrb[0].mxu0
    %4551 = vmatprep.mubr.bf16.mxu0 0
    %4552 = vmatmul.mubr.bf16.gmra.mrb[0].mxu0 %v4424
    %v4553 = vpop.f32.mrb[0].mxu0
    %v4554 = vadd.f32 0.0, %v4553
    %v4555 = vpop.f32.mrb[0].mxu0
    %v4556 = vpop.f32.mrb[0].mxu0
    %v4557 = vadd.f32 0.0, %v4556
    %v4558 = vpop.f32.mrb[0].mxu0
    %4559 = vmatprep.mubr.bf16.mxu0 0
    %4560 = vmatmul.mubr.bf16.gmra.mrb[0].mxu0 %v4425
    %v4561 = vpop.f32.mrb[0].mxu0
    %v4562 = vadd.f32 0.0, %v4561
    %v4563 = vpop.f32.mrb[0].mxu0
    %v4564 = vpop.f32.mrb[0].mxu0
    %v4565 = vadd.f32 0.0, %v4564
    %v4566 = vpop.f32.mrb[0].mxu0
    %4567 = vmatprep.mubr.bf16.mxu0 0
    %4568 = vmatmul.mubr.bf16.gmra.mrb[0].mxu0 %v4426
    %v4569 = vpop.f32.mrb[0].mxu0
    %v4570 = vadd.f32 0.0, %v4569
    %v4571 = vpop.f32.mrb[0].mxu0
    %v4572 = vpop.f32.mrb[0].mxu0
    %v4573 = vadd.f32 0.0, %v4572
    %v4574 = vpop.f32.mrb[0].mxu0
    %4575 = vmatprep.mubr.bf16.mxu0 0
    %4576 = vmatmul.mubr.bf16.gmra.mrb[0].mxu0 %v4427
    %v4577 = vpop.f32.mrb[0].mxu0
    %v4578 = vadd.f32 0.0, %v4577
    %v4579 = vpop.f32.mrb[0].mxu0
    %v4580 = vpop.f32.mrb[0].mxu0
    %v4581 = vadd.f32 0.0, %v4580
    %v4582 = vpop.f32.mrb[0].mxu0
    %4583 = vmatprep.mubr.bf16.mxu0 0
    %4584 = vmatmul.mubr.bf16.gmra.mrb[0].mxu0 %v4428
    %v4585 = vpop.f32.mrb[0].mxu0
    %v4586 = vadd.f32 0.0, %v4585
    %v4587 = vpop.f32.mrb[0].mxu0
    %v4588 = vpop.f32.mrb[0].mxu0
    %v4589 = vadd.f32 0.0, %v4588
    %v4590 = vpop.f32.mrb[0].mxu0
    %4591 = vmatprep.mubr.bf16.mxu0 0
    %4592 = vmatmul.mubr.bf16.gmra.mrb[0].mxu0 %v4429
    %v4593 = vpop.f32.mrb[0].mxu0
    %v4594 = vadd.f32 0.0, %v4593
    %v4595 = vpop.f32.mrb[0].mxu0
    %v4596 = vpop.f32.mrb[0].mxu0
    %v4597 = vadd.f32 0.0, %v4596
    %v4598 = vpop.f32.mrb[0].mxu0
    %4599 = vmatprep.mubr.bf16.mxu0 0
    %4600 = vmatmul.mubr.bf16.gmra.mrb[0].mxu0 %v4430
    %v4601 = vpop.f32.mrb[0].mxu0
    %v4602 = vadd.f32 0.0, %v4601
    %v4603 = vpop.f32.mrb[0].mxu0
    %v4604 = vpop.f32.mrb[0].mxu0
    %v4605 = vadd.f32 0.0, %v4604
    %v4606 = vpop.f32.mrb[0].mxu0
    %4607 = vmatprep.mubr.bf16.mxu0 0
    %4608 = vmatmul.mubr.bf16.gmra.mrb[0].mxu0 %v4431
    %v4609 = vpop.f32.mrb[0].mxu0
    %v4610 = vadd.f32 0.0, %v4609
    %v4611 = vpop.f32.mrb[0].mxu0
    %v4612 = vpop.f32.mrb[0].mxu0
    %v4613 = vadd.f32 0.0, %v4612
    %v4614 = vpop.f32.mrb[0].mxu0
    %4615 = vmatprep.mubr.bf16.mxu0 0
    %4616 = vmatmul.mubr.bf16.gmra.mrb[0].mxu0 %v4432
    %v4617 = vpop.f32.mrb[0].mxu0
    %v4618 = vadd.f32 0.0, %v4617
    %v4619 = vpop.f32.mrb[0].mxu0
    %v4620 = vpop.f32.mrb[0].mxu0
    %v4621 = vadd.f32 0.0, %v4620
    %v4622 = vpop.f32.mrb[0].mxu0
    %4623 = vmatprep.mubr.bf16.mxu0 0
    %4624 = vmatmul.mubr.bf16.gmra.mrb[0].mxu0 %v4433
    %v4625 = vpop.f32.mrb[0].mxu0
    %v4626 = vadd.f32 0.0, %v4625
    %v4627 = vpop.f32.mrb[0].mxu0
    %v4628 = vpop.f32.mrb[0].mxu0
    %v4629 = vadd.f32 0.0, %v4628
    %v4630 = vpop.f32.mrb[0].mxu0
    %4631 = vmatprep.mubr.bf16.mxu0 0
    %4632 = vmatmul.mubr.bf16.gmra.mrb[0].mxu0 %v4434
    %v4633 = vpop.f32.mrb[0].mxu0
    %v4634 = vadd.f32 0.0, %v4633
    %v4635 = vpop.f32.mrb[0].mxu0
    %v4636 = vpop.f32.mrb[0].mxu0
    %v4637 = vadd.f32 0.0, %v4636
    %v4638 = vpop.f32.mrb[0].mxu0
    %4639 = vmatprep.mubr.bf16.mxu0 0
    %4640 = vmatmul.mubr.bf16.gmra.mrb[0].mxu0 %v4435
    %v4641 = vpop.f32.mrb[0].mxu0
    %v4642 = vadd.f32 0.0, %v4641
    %v4643 = vpop.f32.mrb[0].mxu0
    %v4644 = vpop.f32.mrb[0].mxu0
    %v4645 = vadd.f32 0.0, %v4644
    %v4646 = vpop.f32.mrb[0].mxu0
    %4647 = vmatprep.mubr.bf16.mxu0 0
    %4648 = vmatmul.mubr.bf16.gmra.mrb[0].mxu0 %v4436
    %v4649 = vpop.f32.mrb[0].mxu0
    %v4650 = vadd.f32 0.0, %v4649
    %v4651 = vpop.f32.mrb[0].mxu0
    %v4652 = vpop.f32.mrb[0].mxu0
    %v4653 = vadd.f32 0.0, %v4652
    %v4654 = vpop.f32.mrb[0].mxu0
    %4655 = vmatprep.mubr.bf16.mxu0 0
    %4656 = vmatmul.mubr.bf16.gmra.mrb[0].mxu0 %v4437
    %v4657 = vpop.f32.mrb[0].mxu0
    %v4658 = vadd.f32 0.0, %v4657
    %v4659 = vpop.f32.mrb[0].mxu0
    %v4660 = vpop.f32.mrb[0].mxu0
    %v4661 = vadd.f32 0.0, %v4660
    %v4662 = vpop.f32.mrb[0].mxu0
    %4663 = vdwg.mxu0
    %s4664 = scalar_lea.vmem %s4, 12
    %v4665 = vld [vmem:[%s4664] sm:$0x1]
    %v4666 = vld [vmem:[%s4664 + $0x1] sm:$0x1]
    %v4667 = vadd.f32 %v4538, %v4541
    %v4668 = vadd.f32 %v4667, %v4546
    %v4669 = vadd.f32 %v4668, %v4549
    %v4670 = vadd.f32 %v4669, %v4554
    %v4671 = vadd.f32 %v4670, %v4557
    %v4672 = vadd.f32 %v4671, %v4562
    %v4673 = vadd.f32 %v4672, %v4565
    %v4674 = vadd.f32 %v4673, %v4570
    %v4675 = vadd.f32 %v4674, %v4573
    %v4676 = vadd.f32 %v4675, %v4578
    %v4677 = vadd.f32 %v4676, %v4581
    %v4678 = vadd.f32 %v4677, %v4586
    %v4679 = vadd.f32 %v4678, %v4589
    %v4680 = vadd.f32 %v4679, %v4594
    %v4681 = vadd.f32 %v4680, %v4597
    %v4682 = vadd.f32 %v4681, %v4602
    %v4683 = vadd.f32 %v4682, %v4605
    %v4684 = vadd.f32 %v4683, %v4610
    %v4685 = vadd.f32 %v4684, %v4613
    %v4686 = vadd.f32 %v4685, %v4618
    %v4687 = vadd.f32 %v4686, %v4621
    %v4688 = vadd.f32 %v4687, %v4626
    %v4689 = vadd.f32 %v4688, %v4629
    %v4690 = vadd.f32 %v4689, %v4634
    %v4691 = vadd.f32 %v4690, %v4637
    %v4692 = vadd.f32 %v4691, %v4642
    %v4693 = vadd.f32 %v4692, %v4645
    %v4694 = vadd.f32 %v4693, %v4650
    %v4695 = vadd.f32 %v4694, %v4653
    %v4696 = vadd.f32 %v4695, %v4658
    %v4697 = vadd.f32 %v4696, %v4661
    %v4698 = vrot.slane %v4697, 4
    %v4699 = vadd.f32 %v4697, %v4698
    %v4700 = vrot.slane %v4699, 2
    %v4701 = vadd.f32 %v4699, %v4700
    %v4702 = vrot.slane %v4701, 1
    %v4703 = vadd.f32 %v4701, %v4702
    %v4704 = vmul.f32 %v4538, %v4538
    %v4705 = vmul.f32 %v4541, %v4541
    %v4706 = vmul.f32 %v4546, %v4546
    %v4707 = vmul.f32 %v4549, %v4549
    %v4708 = vmul.f32 %v4554, %v4554
    %v4709 = vmul.f32 %v4557, %v4557
    %v4710 = vmul.f32 %v4562, %v4562
    %v4711 = vmul.f32 %v4565, %v4565
    %v4712 = vmul.f32 %v4570, %v4570
    %v4713 = vmul.f32 %v4573, %v4573
    %v4714 = vmul.f32 %v4578, %v4578
    %v4715 = vmul.f32 %v4581, %v4581
    %v4716 = vmul.f32 %v4586, %v4586
    %v4717 = vmul.f32 %v4589, %v4589
    %v4718 = vmul.f32 %v4594, %v4594
    %v4719 = vmul.f32 %v4597, %v4597
    %v4720 = vmul.f32 %v4602, %v4602
    %v4721 = vmul.f32 %v4605, %v4605
    %v4722 = vmul.f32 %v4610, %v4610
    %v4723 = vmul.f32 %v4613, %v4613
    %v4724 = vmul.f32 %v4618, %v4618
    %v4725 = vmul.f32 %v4621, %v4621
    %v4726 = vmul.f32 %v4626, %v4626
    %v4727 = vmul.f32 %v4629, %v4629
    %v4728 = vmul.f32 %v4634, %v4634
    %v4729 = vmul.f32 %v4637, %v4637
    %v4730 = vmul.f32 %v4642, %v4642
    %v4731 = vmul.f32 %v4645, %v4645
    %v4732 = vmul.f32 %v4650, %v4650
    %v4733 = vmul.f32 %v4653, %v4653
    %v4734 = vmul.f32 %v4658, %v4658
    %v4735 = vmul.f32 %v4661, %v4661
    %v4736 = vadd.f32 %v4704, %v4705
    %v4737 = vadd.f32 %v4736, %v4706
    %v4738 = vadd.f32 %v4737, %v4707
    %v4739 = vadd.f32 %v4738, %v4708
    %v4740 = vadd.f32 %v4739, %v4709
    %v4741 = vadd.f32 %v4740, %v4710
    %v4742 = vadd.f32 %v4741, %v4711
    %v4743 = vadd.f32 %v4742, %v4712
    %v4744 = vadd.f32 %v4743, %v4713
    %v4745 = vadd.f32 %v4744, %v4714
    %v4746 = vadd.f32 %v4745, %v4715
    %v4747 = vadd.f32 %v4746, %v4716
    %v4748 = vadd.f32 %v4747, %v4717
    %v4749 = vadd.f32 %v4748, %v4718
    %v4750 = vadd.f32 %v4749, %v4719
    %v4751 = vadd.f32 %v4750, %v4720
    %v4752 = vadd.f32 %v4751, %v4721
    %v4753 = vadd.f32 %v4752, %v4722
    %v4754 = vadd.f32 %v4753, %v4723
    %v4755 = vadd.f32 %v4754, %v4724
    %v4756 = vadd.f32 %v4755, %v4725
    %v4757 = vadd.f32 %v4756, %v4726
    %v4758 = vadd.f32 %v4757, %v4727
    %v4759 = vadd.f32 %v4758, %v4728
    %v4760 = vadd.f32 %v4759, %v4729
    %v4761 = vadd.f32 %v4760, %v4730
    %v4762 = vadd.f32 %v4761, %v4731
    %v4763 = vadd.f32 %v4762, %v4732
    %v4764 = vadd.f32 %v4763, %v4733
    %v4765 = vadd.f32 %v4764, %v4734
    %v4766 = vadd.f32 %v4765, %v4735
    %v4767 = vrot.slane %v4766, 4
    %v4768 = vadd.f32 %v4766, %v4767
    %v4769 = vrot.slane %v4768, 2
    %v4770 = vadd.f32 %v4768, %v4769
    %v4771 = vrot.slane %v4770, 1
    %v4772 = vadd.f32 %v4770, %v4771
    %v4773 = vmul.f32 %v4703, 0.00390625
    %v4774 = vmul.f32 %v4772, 0.00390625
    %v4775 = vmul.f32 %v4773, %v4773
    %v4776 = vsub.f32 %v4774, %v4775
    %v4777 = vmax.f32 %v4776, 0.0
    %v4778 = vadd.f32 %v4777, 1e-05
    %v4779 = vrsqrt.pop %v4778
    %v4780 = vmul.f32 %v4665, %v4779
    %v4781 = vmul.f32 %v4773, %v4780
    %v4782 = vsub.f32 %v4666, %v4781
    %v4783 = vlaneseq
    %v4784 = vshrl.u32 %v4783, 7
    %v4785 = vsub.s32 0, %v4784
    %v4786 = vrot.slane %v4780, %v4785
    %v4787 = vmul.f32 %v4538, %v4786
    %v4788 = vmul.f32 %v4541, %v4786
    %v4789 = vmul.f32 %v4546, %v4786
    %v4790 = vmul.f32 %v4549, %v4786
    %v4791 = vmul.f32 %v4554, %v4786
    %v4792 = vmul.f32 %v4557, %v4786
    %v4793 = vmul.f32 %v4562, %v4786
    %v4794 = vmul.f32 %v4565, %v4786
    %v4795 = vmul.f32 %v4570, %v4786
    %v4796 = vmul.f32 %v4573, %v4786
    %v4797 = vmul.f32 %v4578, %v4786
    %v4798 = vmul.f32 %v4581, %v4786
    %v4799 = vmul.f32 %v4586, %v4786
    %v4800 = vmul.f32 %v4589, %v4786
    %v4801 = vmul.f32 %v4594, %v4786
    %v4802 = vmul.f32 %v4597, %v4786
    %v4803 = vmul.f32 %v4602, %v4786
    %v4804 = vmul.f32 %v4605, %v4786
    %v4805 = vmul.f32 %v4610, %v4786
    %v4806 = vmul.f32 %v4613, %v4786
    %v4807 = vmul.f32 %v4618, %v4786
    %v4808 = vmul.f32 %v4621, %v4786
    %v4809 = vmul.f32 %v4626, %v4786
    %v4810 = vmul.f32 %v4629, %v4786
    %v4811 = vmul.f32 %v4634, %v4786
    %v4812 = vmul.f32 %v4637, %v4786
    %v4813 = vmul.f32 %v4642, %v4786
    %v4814 = vmul.f32 %v4645, %v4786
    %v4815 = vmul.f32 %v4650, %v4786
    %v4816 = vmul.f32 %v4653, %v4786
    %v4817 = vmul.f32 %v4658, %v4786
    %v4818 = vmul.f32 %v4661, %v4786
    %v4819 = vlaneseq
    %v4820 = vshrl.u32 %v4819, 7
    %v4821 = vsub.s32 0, %v4820
    %v4822 = vrot.slane %v4782, %v4821
    %v4823 = vadd.f32 %v4787, %v4822
    %v4824 = vadd.f32 %v4788, %v4822
    %v4825 = vadd.f32 %v4789, %v4822
    %v4826 = vadd.f32 %v4790, %v4822
    %v4827 = vadd.f32 %v4791, %v4822
    %v4828 = vadd.f32 %v4792, %v4822
    %v4829 = vadd.f32 %v4793, %v4822
    %v4830 = vadd.f32 %v4794, %v4822
    %v4831 = vadd.f32 %v4795, %v4822
    %v4832 = vadd.f32 %v4796, %v4822
    %v4833 = vadd.f32 %v4797, %v4822
    %v4834 = vadd.f32 %v4798, %v4822
    %v4835 = vadd.f32 %v4799, %v4822
    %v4836 = vadd.f32 %v4800, %v4822
    %v4837 = vadd.f32 %v4801, %v4822
    %v4838 = vadd.f32 %v4802, %v4822
    %v4839 = vadd.f32 %v4803, %v4822
    %v4840 = vadd.f32 %v4804, %v4822
    %v4841 = vadd.f32 %v4805, %v4822
    %v4842 = vadd.f32 %v4806, %v4822
    %v4843 = vadd.f32 %v4807, %v4822
    %v4844 = vadd.f32 %v4808, %v4822
    %v4845 = vadd.f32 %v4809, %v4822
    %v4846 = vadd.f32 %v4810, %v4822
    %v4847 = vadd.f32 %v4811, %v4822
    %v4848 = vadd.f32 %v4812, %v4822
    %v4849 = vadd.f32 %v4813, %v4822
    %v4850 = vadd.f32 %v4814, %v4822
    %v4851 = vadd.f32 %v4815, %v4822
    %v4852 = vadd.f32 %v4816, %v4822
    %v4853 = vadd.f32 %v4817, %v4822
    %v4854 = vadd.f32 %v4818, %v4822
    %v4855 = vmax.f32 %v4823, 0.0
    %v4856 = vmax.f32 %v4824, 0.0
    %v4857 = vmax.f32 %v4825, 0.0
    %v4858 = vmax.f32 %v4826, 0.0
    %v4859 = vmax.f32 %v4827, 0.0
    %v4860 = vmax.f32 %v4828, 0.0
    %v4861 = vmax.f32 %v4829, 0.0
    %v4862 = vmax.f32 %v4830, 0.0
    %v4863 = vmax.f32 %v4831, 0.0
    %v4864 = vmax.f32 %v4832, 0.0
    %v4865 = vmax.f32 %v4833, 0.0
    %v4866 = vmax.f32 %v4834, 0.0
    %v4867 = vmax.f32 %v4835, 0.0
    %v4868 = vmax.f32 %v4836, 0.0
    %v4869 = vmax.f32 %v4837, 0.0
    %v4870 = vmax.f32 %v4838, 0.0
    %v4871 = vmax.f32 %v4839, 0.0
    %v4872 = vmax.f32 %v4840, 0.0
    %v4873 = vmax.f32 %v4841, 0.0
    %v4874 = vmax.f32 %v4842, 0.0
    %v4875 = vmax.f32 %v4843, 0.0
    %v4876 = vmax.f32 %v4844, 0.0
    %v4877 = vmax.f32 %v4845, 0.0
    %v4878 = vmax.f32 %v4846, 0.0
    %v4879 = vmax.f32 %v4847, 0.0
    %v4880 = vmax.f32 %v4848, 0.0
    %v4881 = vmax.f32 %v4849, 0.0
    %v4882 = vmax.f32 %v4850, 0.0
    %v4883 = vmax.f32 %v4851, 0.0
    %v4884 = vmax.f32 %v4852, 0.0
    %v4885 = vmax.f32 %v4853, 0.0
    %v4886 = vmax.f32 %v4854, 0.0
    %v4887 = vpack.c.bf16 %v4856, %v4855
    %v4888 = vpack.c.bf16 %v4858, %v4857
    %v4889 = vpack.c.bf16 %v4860, %v4859
    %v4890 = vpack.c.bf16 %v4862, %v4861
    %v4891 = vpack.c.bf16 %v4864, %v4863
    %v4892 = vpack.c.bf16 %v4866, %v4865
    %v4893 = vpack.c.bf16 %v4868, %v4867
    %v4894 = vpack.c.bf16 %v4870, %v4869
    %v4895 = vpack.c.bf16 %v4872, %v4871
    %v4896 = vpack.c.bf16 %v4874, %v4873
    %v4897 = vpack.c.bf16 %v4876, %v4875
    %v4898 = vpack.c.bf16 %v4878, %v4877
    %v4899 = vpack.c.bf16 %v4880, %v4879
    %v4900 = vpack.c.bf16 %v4882, %v4881
    %v4901 = vpack.c.bf16 %v4884, %v4883
    %v4902 = vpack.c.bf16 %v4886, %v4885
    %v4903 = vld [vmem:[#allocation8] sm:$0xf]
    %v4904 = vld [vmem:[#allocation8 + $0x4] sm:$0xf]
    %v4905 = vld [vmem:[#allocation8 + $0x8] sm:$0xf]
    %v4906 = vld [vmem:[#allocation8 + $0xc] sm:$0xf]
    %v4907 = vld [vmem:[#allocation8 + $0x10] sm:$0xf]
    %v4908 = vld [vmem:[#allocation8 + $0x14] sm:$0xf]
    %v4909 = vld [vmem:[#allocation8 + $0x18] sm:$0xf]
    %v4910 = vld [vmem:[#allocation8 + $0x1c] sm:$0xf]
    %v4911 = vld [vmem:[#allocation8 + $0x20] sm:$0xf]
    %v4912 = vld [vmem:[#allocation8 + $0x24] sm:$0xf]
    %v4913 = vld [vmem:[#allocation8 + $0x28] sm:$0xf]
    %v4914 = vld [vmem:[#allocation8 + $0x2c] sm:$0xf]
    %v4915 = vld [vmem:[#allocation8 + $0x30] sm:$0xf]
    %v4916 = vld [vmem:[#allocation8 + $0x34] sm:$0xf]
    %v4917 = vld [vmem:[#allocation8 + $0x38] sm:$0xf]
    %v4918 = vld [vmem:[#allocation8 + $0x3c] sm:$0xf]
    %v4919 = vld [vmem:[%s5] sm:$0x1]
    %v4921 = vlaneseq
    %v4922 = vshrl.u32 %v4921, 7
    %v4923 = vsub.s32 0, %v4922
    %v4924 = vrot.slane %v4919, %v4923
    %v4942 = vunpack.c.l.b16 %v4903
    %v4943 = vunpack.c.l.b16 %v4904
    %v4944 = vunpack.c.l.b16 %v4905
    %v4945 = vunpack.c.l.b16 %v4906
    %v4946 = vunpack.c.l.b16 %v4907
    %v4947 = vunpack.c.l.b16 %v4908
    %v4948 = vunpack.c.l.b16 %v4909
    %v4949 = vunpack.c.l.b16 %v4910
    %v4950 = vunpack.c.l.b16 %v4911
    %v4951 = vunpack.c.l.b16 %v4912
    %v4952 = vunpack.c.l.b16 %v4913
    %v4953 = vunpack.c.l.b16 %v4914
    %v4954 = vunpack.c.l.b16 %v4915
    %v4955 = vunpack.c.l.b16 %v4916
    %v4956 = vunpack.c.l.b16 %v4917
    %v4957 = vunpack.c.l.b16 %v4918
    %v4958 = vpack.c.b16 %v4943, %v4942
    %v4959 = vpack.c.b16 %v4945, %v4944
    %v4960 = vpack.c.b16 %v4947, %v4946
    %v4961 = vpack.c.b16 %v4949, %v4948
    %v4962 = vpack.c.b16 %v4951, %v4950
    %v4963 = vpack.c.b16 %v4953, %v4952
    %v4964 = vpack.c.b16 %v4955, %v4954
    %v4965 = vpack.c.b16 %v4957, %v4956
    %4974 = vmatprep.subr.bf16.mxu0 0
    %4975 = vmatpush1.bf16.msra.mxu0 %v4958
    %4976 = vmatprep.subr.bf16.mxu0 0
    %4977 = vmatpush1.bf16.msra.mxu0 %v4959
    %4978 = vmatprep.subr.bf16.mxu0 0
    %4979 = vmatpush1.bf16.msra.mxu0 %v4960
    %4980 = vmatprep.subr.bf16.mxu0 0
    %4981 = vmatpush1.bf16.msra.mxu0 %v4961
    %4982 = vmatprep.subr.bf16.mxu0 0
    %4983 = vmatpush1.bf16.msra.mxu0 %v4962
    %4984 = vmatprep.subr.bf16.mxu0 0
    %4985 = vmatpush1.bf16.msra.mxu0 %v4963
    %4986 = vmatprep.subr.bf16.mxu0 0
    %4987 = vmatpush1.bf16.msra.mxu0 %v4964
    %4988 = vmatprep.subr.bf16.mxu0 0
    %4989 = vmatpush1.bf16.msra.mxu0 %v4965
    %4990 = vmatprep.subr.bf16.mxu0 0
    %4991 = vmatpush1.bf16.msra.mxu0 0
    %4992 = vmatprep.subr.bf16.mxu0 0
    %4993 = vmatpush1.bf16.msra.mxu0 0
    %4994 = vmatprep.subr.bf16.mxu0 0
    %4995 = vmatpush1.bf16.msra.mxu0 0
    %4996 = vmatprep.subr.bf16.mxu0 0
    %4997 = vmatpush1.bf16.msra.mxu0 0
    %4998 = vmatprep.subr.bf16.mxu0 0
    %4999 = vmatpush1.bf16.msra.mxu0 0
    %5000 = vmatprep.subr.bf16.mxu0 0
    %5001 = vmatpush1.bf16.msra.mxu0 0
    %5002 = vmatprep.subr.bf16.mxu0 0
    %5003 = vmatpush1.bf16.msra.mxu0 0
    %5004 = vmatprep.subr.bf16.mxu0 0
    %5005 = vmatpush1.bf16.msra.mxu0 0
    %5006 = vmatprep.mubr.bf16.mxu0 0
    %5007 = vmatmul.mubr.bf16.gmra.mrb[0].mxu0 %v4887
    %v5008 = vpop.f32.mrb[0].mxu0
    %v5009 = vadd.f32 %v4924, %v5008
    %v5010 = vpop.f32.mrb[0].mxu0
    %v5011 = vpop.f32.mrb[0].mxu0
    %v5012 = vadd.f32 %v4924, %v5011
    %v5013 = vpop.f32.mrb[0].mxu0
    %5014 = vmatprep.mubr.bf16.mxu0 0
    %5015 = vmatmul.mubr.bf16.gmra.mrb[0].mxu0 %v4888
    %v5016 = vpop.f32.mrb[0].mxu0
    %v5017 = vadd.f32 %v4924, %v5016
    %v5018 = vpop.f32.mrb[0].mxu0
    %v5019 = vpop.f32.mrb[0].mxu0
    %v5020 = vadd.f32 %v4924, %v5019
    %v5021 = vpop.f32.mrb[0].mxu0
    %5022 = vmatprep.mubr.bf16.mxu0 0
    %5023 = vmatmul.mubr.bf16.gmra.mrb[0].mxu0 %v4889
    %v5024 = vpop.f32.mrb[0].mxu0
    %v5025 = vadd.f32 %v4924, %v5024
    %v5026 = vpop.f32.mrb[0].mxu0
    %v5027 = vpop.f32.mrb[0].mxu0
    %v5028 = vadd.f32 %v4924, %v5027
    %v5029 = vpop.f32.mrb[0].mxu0
    %5030 = vmatprep.mubr.bf16.mxu0 0
    %5031 = vmatmul.mubr.bf16.gmra.mrb[0].mxu0 %v4890
    %v5032 = vpop.f32.mrb[0].mxu0
    %v5033 = vadd.f32 %v4924, %v5032
    %v5034 = vpop.f32.mrb[0].mxu0
    %v5035 = vpop.f32.mrb[0].mxu0
    %v5036 = vadd.f32 %v4924, %v5035
    %v5037 = vpop.f32.mrb[0].mxu0
    %5038 = vmatprep.mubr.bf16.mxu0 0
    %5039 = vmatmul.mubr.bf16.gmra.mrb[0].mxu0 %v4891
    %v5040 = vpop.f32.mrb[0].mxu0
    %v5041 = vadd.f32 %v4924, %v5040
    %v5042 = vpop.f32.mrb[0].mxu0
    %v5043 = vpop.f32.mrb[0].mxu0
    %v5044 = vadd.f32 %v4924, %v5043
    %v5045 = vpop.f32.mrb[0].mxu0
    %5046 = vmatprep.mubr.bf16.mxu0 0
    %5047 = vmatmul.mubr.bf16.gmra.mrb[0].mxu0 %v4892
    %v5048 = vpop.f32.mrb[0].mxu0
    %v5049 = vadd.f32 %v4924, %v5048
    %v5050 = vpop.f32.mrb[0].mxu0
    %v5051 = vpop.f32.mrb[0].mxu0
    %v5052 = vadd.f32 %v4924, %v5051
    %v5053 = vpop.f32.mrb[0].mxu0
    %5054 = vmatprep.mubr.bf16.mxu0 0
    %5055 = vmatmul.mubr.bf16.gmra.mrb[0].mxu0 %v4893
    %v5056 = vpop.f32.mrb[0].mxu0
    %v5057 = vadd.f32 %v4924, %v5056
    %v5058 = vpop.f32.mrb[0].mxu0
    %v5059 = vpop.f32.mrb[0].mxu0
    %v5060 = vadd.f32 %v4924, %v5059
    %v5061 = vpop.f32.mrb[0].mxu0
    %5062 = vmatprep.mubr.bf16.mxu0 0
    %5063 = vmatmul.mubr.bf16.gmra.mrb[0].mxu0 %v4894
    %v5064 = vpop.f32.mrb[0].mxu0
    %v5065 = vadd.f32 %v4924, %v5064
    %v5066 = vpop.f32.mrb[0].mxu0
    %v5067 = vpop.f32.mrb[0].mxu0
    %v5068 = vadd.f32 %v4924, %v5067
    %v5069 = vpop.f32.mrb[0].mxu0
    %5070 = vmatprep.mubr.bf16.mxu0 0
    %5071 = vmatmul.mubr.bf16.gmra.mrb[0].mxu0 %v4895
    %v5072 = vpop.f32.mrb[0].mxu0
    %v5073 = vadd.f32 %v4924, %v5072
    %v5074 = vpop.f32.mrb[0].mxu0
    %v5075 = vpop.f32.mrb[0].mxu0
    %v5076 = vadd.f32 %v4924, %v5075
    %v5077 = vpop.f32.mrb[0].mxu0
    %5078 = vmatprep.mubr.bf16.mxu0 0
    %5079 = vmatmul.mubr.bf16.gmra.mrb[0].mxu0 %v4896
    %v5080 = vpop.f32.mrb[0].mxu0
    %v5081 = vadd.f32 %v4924, %v5080
    %v5082 = vpop.f32.mrb[0].mxu0
    %v5083 = vpop.f32.mrb[0].mxu0
    %v5084 = vadd.f32 %v4924, %v5083
    %v5085 = vpop.f32.mrb[0].mxu0
    %5086 = vmatprep.mubr.bf16.mxu0 0
    %5087 = vmatmul.mubr.bf16.gmra.mrb[0].mxu0 %v4897
    %v5088 = vpop.f32.mrb[0].mxu0
    %v5089 = vadd.f32 %v4924, %v5088
    %v5090 = vpop.f32.mrb[0].mxu0
    %v5091 = vpop.f32.mrb[0].mxu0
    %v5092 = vadd.f32 %v4924, %v5091
    %v5093 = vpop.f32.mrb[0].mxu0
    %5094 = vmatprep.mubr.bf16.mxu0 0
    %5095 = vmatmul.mubr.bf16.gmra.mrb[0].mxu0 %v4898
    %v5096 = vpop.f32.mrb[0].mxu0
    %v5097 = vadd.f32 %v4924, %v5096
    %v5098 = vpop.f32.mrb[0].mxu0
    %v5099 = vpop.f32.mrb[0].mxu0
    %v5100 = vadd.f32 %v4924, %v5099
    %v5101 = vpop.f32.mrb[0].mxu0
    %5102 = vmatprep.mubr.bf16.mxu0 0
    %5103 = vmatmul.mubr.bf16.gmra.mrb[0].mxu0 %v4899
    %v5104 = vpop.f32.mrb[0].mxu0
    %v5105 = vadd.f32 %v4924, %v5104
    %v5106 = vpop.f32.mrb[0].mxu0
    %v5107 = vpop.f32.mrb[0].mxu0
    %v5108 = vadd.f32 %v4924, %v5107
    %v5109 = vpop.f32.mrb[0].mxu0
    %5110 = vmatprep.mubr.bf16.mxu0 0
    %5111 = vmatmul.mubr.bf16.gmra.mrb[0].mxu0 %v4900
    %v5112 = vpop.f32.mrb[0].mxu0
    %v5113 = vadd.f32 %v4924, %v5112
    %v5114 = vpop.f32.mrb[0].mxu0
    %v5115 = vpop.f32.mrb[0].mxu0
    %v5116 = vadd.f32 %v4924, %v5115
    %v5117 = vpop.f32.mrb[0].mxu0
    %5118 = vmatprep.mubr.bf16.mxu0 0
    %5119 = vmatmul.mubr.bf16.gmra.mrb[0].mxu0 %v4901
    %v5120 = vpop.f32.mrb[0].mxu0
    %v5121 = vadd.f32 %v4924, %v5120
    %v5122 = vpop.f32.mrb[0].mxu0
    %v5123 = vpop.f32.mrb[0].mxu0
    %v5124 = vadd.f32 %v4924, %v5123
    %v5125 = vpop.f32.mrb[0].mxu0
    %5126 = vmatprep.mubr.bf16.mxu0 0
    %5127 = vmatmul.mubr.bf16.gmra.mrb[0].mxu0 %v4902
    %v5128 = vpop.f32.mrb[0].mxu0
    %v5129 = vadd.f32 %v4924, %v5128
    %v5130 = vpop.f32.mrb[0].mxu0
    %v5131 = vpop.f32.mrb[0].mxu0
    %v5132 = vadd.f32 %v4924, %v5131
    %v5133 = vpop.f32.mrb[0].mxu0
    %5134 = vdwg.mxu0
    %5135 = vst [vmem:[#allocation10] sm:$0xff] %v5009
    %5136 = vst [vmem:[#allocation10 + $0x8] sm:$0xff] %v5012
    %5137 = vst [vmem:[#allocation10 + $0x10] sm:$0xff] %v5017
    %5138 = vst [vmem:[#allocation10 + $0x18] sm:$0xff] %v5020
    %5139 = vst [vmem:[#allocation10 + $0x20] sm:$0xff] %v5025
    %5140 = vst [vmem:[#allocation10 + $0x28] sm:$0xff] %v5028
    %5141 = vst [vmem:[#allocation10 + $0x30] sm:$0xff] %v5033
    %5142 = vst [vmem:[#allocation10 + $0x38] sm:$0xff] %v5036
    %5143 = vst [vmem:[#allocation10 + $0x40] sm:$0xff] %v5041
    %5144 = vst [vmem:[#allocation10 + $0x48] sm:$0xff] %v5044
    %5145 = vst [vmem:[#allocation10 + $0x50] sm:$0xff] %v5049
    %5146 = vst [vmem:[#allocation10 + $0x58] sm:$0xff] %v5052
    %5147 = vst [vmem:[#allocation10 + $0x60] sm:$0xff] %v5057
    %5148 = vst [vmem:[#allocation10 + $0x68] sm:$0xff] %v5060
    %5149 = vst [vmem:[#allocation10 + $0x70] sm:$0xff] %v5065
    %5150 = vst [vmem:[#allocation10 + $0x78] sm:$0xff] %v5068
    %5151 = vst [vmem:[#allocation10 + $0x80] sm:$0xff] %v5073
    %5152 = vst [vmem:[#allocation10 + $0x88] sm:$0xff] %v5076
    %5153 = vst [vmem:[#allocation10 + $0x90] sm:$0xff] %v5081
    %5154 = vst [vmem:[#allocation10 + $0x98] sm:$0xff] %v5084
    %5155 = vst [vmem:[#allocation10 + $0xa0] sm:$0xff] %v5089
    %5156 = vst [vmem:[#allocation10 + $0xa8] sm:$0xff] %v5092
    %5157 = vst [vmem:[#allocation10 + $0xb0] sm:$0xff] %v5097
    %5158 = vst [vmem:[#allocation10 + $0xb8] sm:$0xff] %v5100
    %5159 = vst [vmem:[#allocation10 + $0xc0] sm:$0xff] %v5105
    %5160 = vst [vmem:[#allocation10 + $0xc8] sm:$0xff] %v5108
    %5161 = vst [vmem:[#allocation10 + $0xd0] sm:$0xff] %v5113
    %5162 = vst [vmem:[#allocation10 + $0xd8] sm:$0xff] %v5116
    %5163 = vst [vmem:[#allocation10 + $0xe0] sm:$0xff] %v5121
    %5164 = vst [vmem:[#allocation10 + $0xe8] sm:$0xff] %v5124
    %5165 = vst [vmem:[#allocation10 + $0xf0] sm:$0xff] %v5129
    %5166 = vst [vmem:[#allocation10 + $0xf8] sm:$0xff] %v5132
    // Predicated region
    $region42: #{tpu_custom_call.1} parent=1 // pred_check
      _
    $region43: #{tpu_custom_call.1} parent=1 // pred_check_branch
      %5168 = sbr.rel (0) target = $region45
    $region44: #{tpu_custom_call.1} parent=1 // pred_region
      %s5170 = ssub.s32 4096, 4096
      %5171 = vsyncadd [#allocation4], %s5170
      %s5172 = sshll.u32 [#allocation10], 4
      %s5173 = int_to_ptr.vmem [resolvable:$true] %s5172
      %5178 = dma.vmem_to_hbm [thread:$0]  %s5173, 4096, %s6, [#allocation4], 128, 128, 8
    $region45: #{tpu_custom_call.1} parent=1 // pred_fallthru
      _
    // Predicated region
    $region46: #{tpu_custom_call.1} parent=1 // pred_check
      _
    $region47: #{tpu_custom_call.1} parent=1 // pred_check_branch
      %5180 = sbr.rel (0) target = $region49
    $region48: #{tpu_custom_call.1} parent=1 // pred_region
      %5181 = dma.done [#allocation4], 4096
    $region49: #{tpu_custom_call.1} parent=1 // pred_fallthru
      _
    %5182 = vsyncpa [#allocation3], 1
    %5183 = vsyncpa [#allocation6], 1
    %5184 = vsyncpa [#allocation9], 1
    %5185 = vsyncpa [#allocation4], 1

</llo_original>
